<compile_context>
chip_gen: v7x
topology: tpu7x:2x2x1
jax: 0.10.0
libtpu: 0.0.40
codegen_flags: <defaults>
</compile_context>

<pallas_src>
import functools
import math

import jax
import jax.numpy as jnp
from jax.experimental import pallas as pl
from jax.experimental.pallas import tpu as pltpu


def _round_up(a: int, b: int) -> int:
    return ((a + b - 1) // b) * b


def _cdiv(a: int, b: int) -> int:
    return (a + b - 1) // b


def _sinusoidal_kernel(x_ref, o_ref, *, scales, use_identity):
    """x_ref: (TR, C) dense flat input slab; o_ref: (P, TR, C) part-major output."""
    num_deg = len(scales)
    p_off = 1 if use_identity else 0
    if use_identity:
        # Exact pass-through of the input values (no float roundtrip when
        # dtypes match).
        o_ref[0, :, :] = x_ref[...].astype(o_ref.dtype)
    # Hoisted: one load + f32 upcast per tile, reused for every degree (item 6).
    xf = x_ref[...].astype(jnp.float32)
    for d, s in enumerate(scales):
        xb = xf * s
        # cos(xb) instead of sin(xb + pi/2): same cost, one less add,
        # <= 1 ulp from the reference.
        o_ref[p_off + d, :, :] = jnp.sin(xb).astype(o_ref.dtype)
        o_ref[p_off + num_deg + d, :, :] = jnp.cos(xb).astype(o_ref.dtype)


class SinusoidalEncoderPallas:
    """JAX/Pallas port of the PyTorch SinusoidalEncoder."""

    def __init__(self, x_dim, min_deg, max_deg, use_identity: bool = True,
                 *, row_tile: int = 512, lane_tile: int = 512, out_dtype=None):
        self.x_dim = x_dim
        self.min_deg = min_deg
        self.max_deg = max_deg
        self.use_identity = use_identity
        # Tile sizes: rows must be a multiple of 8 (sublanes), lanes of 128.
        self.row_tile = max(8, _round_up(row_tile, 8))
        self.lane_tile = max(128, _round_up(lane_tile, 128))
        # Optional narrower output dtype (item 5). None -> input dtype
        # (PyTorch-identical semantics).
        self.out_dtype = out_dtype
        # Deterministic "parameters" (buffer): scales = 2^i.
        self.scales = tuple(float(2 ** i) for i in range(min_deg, max_deg))

    @property
    def latent_dim(self) -> int:
        return (int(self.use_identity) + (self.max_deg - self.min_deg) * 2) * self.x_dim

    def _pick_row_tile(self, r: int, in_itemsize: int, out_itemsize: int,
                       num_parts: int) -> int:
        """Row-tile selection (items 2/3/4): big tiles, >=2 grid steps when
        possible (megacore), double-buffered footprint kept under ~22 MiB."""
        c = self.lane_tile
        if r >= 16:
            tr = min(self.row_tile, _round_up(_cdiv(r, 2), 8))
            if r >= 4 * 128:
                # Plenty of rows: prefer >=4 steps while keeping >=128-row tiles.
                tr = min(tr, _round_up(_cdiv(r, 4), 8))
        else:
            tr = _round_up(max(r, 1), 8)
        tr = max(8, tr)

        def footprint(t):
            # double-buffered input block + output block
            return 2 * (t * c * in_itemsize + num_parts * t * c * out_itemsize)

        while tr > 8 and footprint(tr) > 22 * (1 << 20):
            tr = max(8, _round_up(tr // 2, 8))
        return tr

    def __call__(self, x: jnp.ndarray, *, part_major: bool = False) -> jnp.ndarray:
        if self.max_deg == self.min_deg:
            return x

        batch_shape = x.shape[:-1]
        x_dim = x.shape[-1]
        assert x_dim == self.x_dim
        latent_dim = self.latent_dim
        num_deg = self.max_deg - self.min_deg
        num_parts = int(self.use_identity) + 2 * num_deg
        out_dtype = jnp.dtype(self.out_dtype) if self.out_dtype is not None else x.dtype

        n = math.prod(batch_shape) if batch_shape else 1
        total = n * x_dim
        if total == 0:
            if part_major:
                return jnp.zeros((num_parts, *batch_shape, x_dim), out_dtype)
            return jnp.zeros((*batch_shape, latent_dim), out_dtype)

        # Flatten to a dense [R, C] slab; pad only the (cheap) input side,
        # and only when actually needed (item 8).
        c = self.lane_tile
        r = _cdiv(total, c)
        tr = self._pick_row_tile(r, jnp.dtype(x.dtype).itemsize,
                                 jnp.dtype(out_dtype).itemsize, num_parts)
        r_pad = _round_up(r, tr)
        total_pad = r_pad * c

        x_flat = x.reshape(total)
        if total_pad != total:
            x_flat = jnp.pad(x_flat, ((0, total_pad - total),))
        x2d = x_flat.reshape(r_pad, c)

        grid = (r_pad // tr,)
        kernel = functools.partial(
            _sinusoidal_kernel, scales=self.scales, use_identity=self.use_identity)

        out = pl.pallas_call(
            kernel,
            out_shape=jax.ShapeDtypeStruct((num_parts, r_pad, c), out_dtype),
            grid_spec=pltpu.PrefetchScalarGridSpec(
                num_scalar_prefetch=0,
                grid=grid,
                in_specs=[pl.BlockSpec((tr, c), lambda i: (i, 0))],
                out_specs=pl.BlockSpec((num_parts, tr, c), lambda i: (0, i, 0)),
            ),
            compiler_params=pltpu.CompilerParams(
                dimension_semantics=("parallel",),
                vmem_limit_bytes=32 * 1024 * 1024),
        )(x2d)

        # Part-major [P, R*C] -> drop flat padding -> [P, n, x_dim].
        out = out.reshape(num_parts, total_pad)
        if total_pad != total:
            out = out[:, :total]
        out = out.reshape(num_parts, n, x_dim)

        if part_major:
            # Review item 1, option (a): no permutation at all — the consumer
            # (e.g. the first MLP layer) folds it into its weight indexing.
            return out.reshape(num_parts, *batch_shape, x_dim)

        # PyTorch layout [n, P*x_dim]: one fused XLA slice/reshape/transpose.
        out = jnp.transpose(out, (1, 0, 2)).reshape(*batch_shape, latent_dim)
        return out


def _reference(x, min_deg, max_deg, use_identity):
    """Pure-JAX reference matching the PyTorch module exactly."""
    if max_deg == min_deg:
        return x
    scales = jnp.asarray([2.0 ** i for i in range(min_deg, max_deg)], dtype=x.dtype)
    xb = (x[..., None, :] * scales[:, None]).reshape(
        *x.shape[:-1], (max_deg - min_deg) * x.shape[-1]
    )
    latent = jnp.sin(jnp.concatenate([xb, xb + 0.5 * math.pi], axis=-1))
    if use_identity:
        latent = jnp.concatenate([x, latent], axis=-1)
    return latent


if __name__ == "__main__":
    key = jax.random.PRNGKey(0)
    # NeRF-style config: 3-D positions, degrees [0, 4), with identity.
    x_dim, min_deg, max_deg = 3, 0, 4
    enc = SinusoidalEncoderPallas(x_dim, min_deg, max_deg, use_identity=True)

    # Small test: batch (2, 16), last dim 3 (single-tile grid).
    x = jax.random.normal(key, (2, 16, x_dim), dtype=jnp.float32)
    out = jax.block_until_ready(enc(x))
    ref = _reference(x, min_deg, max_deg, use_identity=True)
    assert out.shape == (2, 16, enc.latent_dim), out.shape
    assert jnp.allclose(out, ref, atol=1e-5, rtol=1e-5), "mismatch vs reference (small)"

    # Larger test exercising a multi-step "parallel" grid (48 slab rows -> 2 steps).
    x2 = jax.random.normal(jax.random.PRNGKey(1), (32, 256, x_dim), dtype=jnp.float32)
    out2 = jax.block_until_ready(enc(x2))
    ref2 = _reference(x2, min_deg, max_deg, use_identity=True)
    assert out2.shape == (32, 256, enc.latent_dim), out2.shape
    assert jnp.allclose(out2, ref2, atol=1e-5, rtol=1e-5), "mismatch vs reference (large)"

    # No-identity variant.
    enc_ni = SinusoidalEncoderPallas(x_dim, min_deg, max_deg, use_identity=False)
    out3 = jax.block_until_ready(enc_ni(x))
    ref3 = _reference(x, min_deg, max_deg, use_identity=False)
    assert out3.shape == (2, 16, enc_ni.latent_dim), out3.shape
    assert jnp.allclose(out3, ref3, atol=1e-5, rtol=1e-5), "mismatch vs reference (no id)"

    # Part-major output (review item 1a): no post-kernel permutation; a consumer
    # folds the permutation into its weights for free.
    pm = jax.block_until_ready(enc(x, part_major=True))
    num_parts = 1 + 2 * (max_deg - min_deg)
    ref_pm = jnp.moveaxis(ref.reshape(2, 16, num_parts, x_dim), -2, 0)
    assert pm.shape == (num_parts, 2, 16, x_dim), pm.shape
    assert jnp.allclose(pm, ref_pm, atol=1e-5, rtol=1e-5), "mismatch vs reference (pm)"

    print("KERNEL_OK")
</pallas_src>

<mosaic_0001>
module attributes {stable_mosaic.version = 11 : i64} {
  func.func @_sinusoidal_kernel(%arg0: i32, %arg1: memref<8x512xf32, #tpu.memory_space<vmem>>, %arg2: memref<9x8x512xf32, #tpu.memory_space<vmem>>) attributes {dimension_semantics = [#tpu.dimension_semantics<parallel>], iteration_bounds = array<i64: 1>, scalar_prefetch = 0 : i64, scratch_operands = 0 : i64, tpu.core_type = #tpu.core_type<tc>, window_params = [{transform_indices = @transform_0, window_bounds = array<i64: 8, 512>}, {transform_indices = @transform_1, window_bounds = array<i64: 9, 8, 512>}]} {
    %c0 = arith.constant 0 : index
    %c0_0 = arith.constant 0 : index
    %0 = vector.load %arg1[%c0, %c0_0] : memref<8x512xf32, #tpu.memory_space<vmem>>, vector<8x512xf32>
    %c0_1 = arith.constant 0 : index
    %c0_2 = arith.constant 0 : index
    %c0_3 = arith.constant 0 : index
    %1 = vector.load %arg2[%c0_1, %c0_2, %c0_3] : memref<9x8x512xf32, #tpu.memory_space<vmem>>, vector<1x8x512xf32>
    %2 = vector.shape_cast %1 : vector<1x8x512xf32> to vector<8x512xf32>
    %3 = vector.shape_cast %0 : vector<8x512xf32> to vector<1x8x512xf32>
    tpu.vector_store %arg2[%c0_1, %c0_2, %c0_3], %3 {strides = array<i32>} : memref<9x8x512xf32, #tpu.memory_space<vmem>>, vector<1x8x512xf32>,
    %c0_4 = arith.constant 0 : index
    %c0_5 = arith.constant 0 : index
    %4 = vector.load %arg1[%c0_4, %c0_5] : memref<8x512xf32, #tpu.memory_space<vmem>>, vector<8x512xf32>
    %cst = arith.constant 1.000000e+00 : f32
    %5 = vector.broadcast %cst : f32 to vector<8x512xf32>
    %6 = arith.mulf %4, %5 : vector<8x512xf32>
    %7 = math.sin %6 : vector<8x512xf32>
    %c1 = arith.constant 1 : index
    %c0_6 = arith.constant 0 : index
    %c0_7 = arith.constant 0 : index
    %8 = vector.load %arg2[%c1, %c0_6, %c0_7] : memref<9x8x512xf32, #tpu.memory_space<vmem>>, vector<1x8x512xf32>
    %9 = vector.shape_cast %8 : vector<1x8x512xf32> to vector<8x512xf32>
    %10 = vector.shape_cast %7 : vector<8x512xf32> to vector<1x8x512xf32>
    tpu.vector_store %arg2[%c1, %c0_6, %c0_7], %10 {strides = array<i32>} : memref<9x8x512xf32, #tpu.memory_space<vmem>>, vector<1x8x512xf32>,
    %11 = math.cos %6 : vector<8x512xf32>
    %c5 = arith.constant 5 : index
    %c0_8 = arith.constant 0 : index
    %c0_9 = arith.constant 0 : index
    %12 = vector.load %arg2[%c5, %c0_8, %c0_9] : memref<9x8x512xf32, #tpu.memory_space<vmem>>, vector<1x8x512xf32>
    %13 = vector.shape_cast %12 : vector<1x8x512xf32> to vector<8x512xf32>
    %14 = vector.shape_cast %11 : vector<8x512xf32> to vector<1x8x512xf32>
    tpu.vector_store %arg2[%c5, %c0_8, %c0_9], %14 {strides = array<i32>} : memref<9x8x512xf32, #tpu.memory_space<vmem>>, vector<1x8x512xf32>,
    %cst_10 = arith.constant 2.000000e+00 : f32
    %15 = vector.broadcast %cst_10 : f32 to vector<8x512xf32>
    %16 = arith.mulf %4, %15 : vector<8x512xf32>
    %17 = math.sin %16 : vector<8x512xf32>
    %c2 = arith.constant 2 : index
    %c0_11 = arith.constant 0 : index
    %c0_12 = arith.constant 0 : index
    %18 = vector.load %arg2[%c2, %c0_11, %c0_12] : memref<9x8x512xf32, #tpu.memory_space<vmem>>, vector<1x8x512xf32>
    %19 = vector.shape_cast %18 : vector<1x8x512xf32> to vector<8x512xf32>
    %20 = vector.shape_cast %17 : vector<8x512xf32> to vector<1x8x512xf32>
    tpu.vector_store %arg2[%c2, %c0_11, %c0_12], %20 {strides = array<i32>} : memref<9x8x512xf32, #tpu.memory_space<vmem>>, vector<1x8x512xf32>,
    %21 = math.cos %16 : vector<8x512xf32>
    %c6 = arith.constant 6 : index
    %c0_13 = arith.constant 0 : index
    %c0_14 = arith.constant 0 : index
    %22 = vector.load %arg2[%c6, %c0_13, %c0_14] : memref<9x8x512xf32, #tpu.memory_space<vmem>>, vector<1x8x512xf32>
    %23 = vector.shape_cast %22 : vector<1x8x512xf32> to vector<8x512xf32>
    %24 = vector.shape_cast %21 : vector<8x512xf32> to vector<1x8x512xf32>
    tpu.vector_store %arg2[%c6, %c0_13, %c0_14], %24 {strides = array<i32>} : memref<9x8x512xf32, #tpu.memory_space<vmem>>, vector<1x8x512xf32>,
    %cst_15 = arith.constant 4.000000e+00 : f32
    %25 = vector.broadcast %cst_15 : f32 to vector<8x512xf32>
    %26 = arith.mulf %4, %25 : vector<8x512xf32>
    %27 = math.sin %26 : vector<8x512xf32>
    %c3 = arith.constant 3 : index
    %c0_16 = arith.constant 0 : index
    %c0_17 = arith.constant 0 : index
    %28 = vector.load %arg2[%c3, %c0_16, %c0_17] : memref<9x8x512xf32, #tpu.memory_space<vmem>>, vector<1x8x512xf32>
    %29 = vector.shape_cast %28 : vector<1x8x512xf32> to vector<8x512xf32>
    %30 = vector.shape_cast %27 : vector<8x512xf32> to vector<1x8x512xf32>
    tpu.vector_store %arg2[%c3, %c0_16, %c0_17], %30 {strides = array<i32>} : memref<9x8x512xf32, #tpu.memory_space<vmem>>, vector<1x8x512xf32>,
    %31 = math.cos %26 : vector<8x512xf32>
    %c7 = arith.constant 7 : index
    %c0_18 = arith.constant 0 : index
    %c0_19 = arith.constant 0 : index
    %32 = vector.load %arg2[%c7, %c0_18, %c0_19] : memref<9x8x512xf32, #tpu.memory_space<vmem>>, vector<1x8x512xf32>
    %33 = vector.shape_cast %32 : vector<1x8x512xf32> to vector<8x512xf32>
    %34 = vector.shape_cast %31 : vector<8x512xf32> to vector<1x8x512xf32>
    tpu.vector_store %arg2[%c7, %c0_18, %c0_19], %34 {strides = array<i32>} : memref<9x8x512xf32, #tpu.memory_space<vmem>>, vector<1x8x512xf32>,
    %cst_20 = arith.constant 8.000000e+00 : f32
    %35 = vector.broadcast %cst_20 : f32 to vector<8x512xf32>
    %36 = arith.mulf %4, %35 : vector<8x512xf32>
    %37 = math.sin %36 : vector<8x512xf32>
    %c4 = arith.constant 4 : index
    %c0_21 = arith.constant 0 : index
    %c0_22 = arith.constant 0 : index
    %38 = vector.load %arg2[%c4, %c0_21, %c0_22] : memref<9x8x512xf32, #tpu.memory_space<vmem>>, vector<1x8x512xf32>
    %39 = vector.shape_cast %38 : vector<1x8x512xf32> to vector<8x512xf32>
    %40 = vector.shape_cast %37 : vector<8x512xf32> to vector<1x8x512xf32>
    tpu.vector_store %arg2[%c4, %c0_21, %c0_22], %40 {strides = array<i32>} : memref<9x8x512xf32, #tpu.memory_space<vmem>>, vector<1x8x512xf32>,
    %41 = math.cos %36 : vector<8x512xf32>
    %c8 = arith.constant 8 : index
    %c0_23 = arith.constant 0 : index
    %c0_24 = arith.constant 0 : index
    %42 = vector.load %arg2[%c8, %c0_23, %c0_24] : memref<9x8x512xf32, #tpu.memory_space<vmem>>, vector<1x8x512xf32>
    %43 = vector.shape_cast %42 : vector<1x8x512xf32> to vector<8x512xf32>
    %44 = vector.shape_cast %41 : vector<8x512xf32> to vector<1x8x512xf32>
    tpu.vector_store %arg2[%c8, %c0_23, %c0_24], %44 {strides = array<i32>} : memref<9x8x512xf32, #tpu.memory_space<vmem>>, vector<1x8x512xf32>,
    return
  }
  func.func @transform_0(%arg0: i32) -> (i32, i32) {
    %c0_i32 = arith.constant 0 : i32
    %c0_i32_0 = arith.constant 0 : i32
    return %arg0, %c0_i32 : i32, i32
  }
  func.func @transform_1(%arg0: i32) -> (i32, i32, i32) {
    %c0_i32 = arith.constant 0 : i32
    %c0_i32_0 = arith.constant 0 : i32
    %c0_i32_1 = arith.constant 0 : i32
    return %c0_i32, %arg0, %c0_i32_0 : i32, i32, i32
  }
}

</mosaic_0001>

<llo_original>
// kernel: tpu_custom_call.1
$region0: #{tpu_custom_call.1}
  #allocation0 [shape = 'u32[]', space=smem, size = 0x4, offset = 0x4, fixed_abs, tag = 'smem constant byte address 0x4 - core index']
  #allocation1 [shape = 'u32[144,128]{1,0:T(1,128)}', space=vmem, size = 0x12000, scoped, tag = 'internal scratch']
  %s0 = inlined_call_operand.hbm [shape: f32[8,512], index: 0, kind: input, shape index: {}]
  %s1 = inlined_call_operand.hbm [shape: f32[9,8,512], index: 1, kind: output, shape index: {}]
  %s2 = sld [smem:[#allocation0]]
  $region18: #{tpu_custom_call.1} parent=0
    _
  %s4 = ssub.s32 1, %s2
  %s5 = scalar_select 0, %s4, %s2
  $region1: #{tpu_custom_call.1} parent=0
    #allocation2 [shape = 'u8[16384]{0}', space=vmem, size = 0x4000, scoped, tag = 'input window, operand 0, single buffered']
    #allocation3 [shape = 's32[1]{0}', space=sflag, size = 0x4, scoped, tag = 'scoped memory for tpu_custom_call.1']
    #allocation4 [shape = 's32[1]{0}', space=sflag, size = 0x4, scoped, tag = 'scoped memory for tpu_custom_call.1']
    #allocation5 [shape = 'u8[147456]{0}', space=vmem, size = 0x24000, scoped, tag = 'output window, operand 0, single buffered']
    %6 = vsyncpa [#allocation3], 0
    %7 = vsyncpa [#allocation4], 0
    // Predicated region
    $region2: #{tpu_custom_call.1} parent=1 // pred_check
      _
    $region3: #{tpu_custom_call.1} parent=1 // pred_check_branch
      %9 = sbr.rel (0) target = $region5
    $region4: #{tpu_custom_call.1} parent=1 // pred_region
      %s11 = ssub.s32 512, 512
      %12 = vsyncadd [#allocation3], %s11
      %s14 = sshll.u32 [#allocation2], 4
      %s15 = int_to_ptr.vmem [resolvable:$true] %s14
      %17 = dma.hbm_to_vmem [thread:$0]  %s0, 512, %s15, [#allocation3]
    $region5: #{tpu_custom_call.1} parent=1 // pred_fallthru
      _
    // Predicated region
    $region6: #{tpu_custom_call.1} parent=1 // pred_check
      _
    $region7: #{tpu_custom_call.1} parent=1 // pred_check_branch
      %19 = sbr.rel (0) target = $region9
    $region8: #{tpu_custom_call.1} parent=1 // pred_region
      %20 = dma.done [#allocation3], 512
    $region9: #{tpu_custom_call.1} parent=1 // pred_fallthru
      _
    %v21 = vld [vmem:[#allocation2] sm:$0xff]
    %v22 = vld [vmem:[#allocation2 + $0x8] sm:$0xff]
    %v23 = vld [vmem:[#allocation2 + $0x10] sm:$0xff]
    %v24 = vld [vmem:[#allocation2 + $0x18] sm:$0xff]
    %25 = vst [vmem:[#allocation5] sm:$0xff] %v21
    %26 = vst [vmem:[#allocation5 + $0x8] sm:$0xff] %v22
    %27 = vst [vmem:[#allocation5 + $0x10] sm:$0xff] %v23
    %28 = vst [vmem:[#allocation5 + $0x18] sm:$0xff] %v24
    %v29 = vld [vmem:[#allocation2] sm:$0xff]
    %v30 = vld [vmem:[#allocation2 + $0x8] sm:$0xff]
    %v31 = vld [vmem:[#allocation2 + $0x10] sm:$0xff]
    %v32 = vld [vmem:[#allocation2 + $0x18] sm:$0xff]
    %v33 = vand.u32 2147483647, %v29
    %vm34 = vcmp.le.f32.partialorder %v33, 0.7853982
    %vm35 = vcmp.lt.s32.totalorder %v29, 0
    %v36 = vand.u32 %v29, 2139095040
    %v37 = vshrl.u32 %v36, 23
    %v38 = vsub.s32 %v37, 127
    %v39 = vand.u32 2147483647, %v29
    %v40 = vand.u32 %v39, 8388607
    %v41 = vor.u32 %v40, 8388608
    %v42 = vsub.s32 0, %v41
    %v43 = vadd.s32 %v38, 1
    %vm44 = vcmp.gt.s32.totalorder %v43, 0
    %v45 = vsel %vm44, %v43, 0
    %v46 = vshrl.u32 %v45, 5
    %v47 = vand.u32 %v45, 31
    %v48 = vsub.s32 32, %v47
    %v49 = vshrl.u32 683565275, %v48
    %v50 = vshll.u32 683565275, %v47
    %v51 = vshrl.u32 2475754826, %v48
    %v52 = vor.u32 %v50, %v51
    %v53 = vshll.u32 2475754826, %v47
    %v54 = vshrl.u32 2131351028, %v48
    %v55 = vor.u32 %v53, %v54
    %v56 = vshll.u32 2131351028, %v47
    %v57 = vshrl.u32 2102212464, %v48
    %v58 = vor.u32 %v56, %v57
    %v59 = vshll.u32 2102212464, %v47
    %v60 = vshrl.u32 920167782, %v48
    %v61 = vor.u32 %v59, %v60
    %v62 = vshll.u32 920167782, %v47
    %v63 = vshrl.u32 1326507024, %v48
    %v64 = vor.u32 %v62, %v63
    %vm65 = vcmp.lt.s32.totalorder %v46, 1
    %vm66 = vcmp.lt.s32.totalorder %v46, 2
    %vm67 = vcmp.lt.s32.totalorder %v46, 3
    %vm68 = vcmp.lt.s32.totalorder %v46, 4
    %v69 = vsel %vm65, %v49, %v52
    %v70 = vsel %vm68, %v58, 2102212464
    %v71 = vsel %vm67, %v55, %v70
    %v72 = vsel %vm66, %v69, %v71
    %v73 = vsel %vm65, %v52, %v55
    %v74 = vsel %vm68, %v61, 920167782
    %v75 = vsel %vm67, %v58, %v74
    %v76 = vsel %vm66, %v73, %v75
    %v77 = vsel %vm65, %v55, %v58
    %v78 = vsel %vm68, %v64, 1326507024
    %v79 = vsel %vm67, %v61, %v78
    %v80 = vsel %vm66, %v77, %v79
    %v81 = vshll.u32 %v41, 8
    %v82 = vmul.u32.u64.compose %v81, %v80
    %v83 = vextract.low.u32 %v82
    %v84 = vextract.high.u32 %v82
    %v85 = vmul.u32.u64.compose %v81, %v76
    %v86 = vextract.low.u32 %v85
    %v87 = vextract.high.u32 %v85
    %v88 = vmul.u32 %v81, %v72
    %v89 = vadd.s32 %v84, %v86
    %vm90 = vc.u32 %v84, %v86
    %v91 = vadd.s32 %v87, 1
    %v92 = vsel %vm90, %v91, %v87
    %v93 = vadd.s32 %v88, %v92
    %v94 = vadd.s32 %v93, 536870912
    %v95 = vshrl.u32 %v94, 30
    %v96 = vshll.u32 %v95, 30
    %v97 = vsub.s32 %v93, %v96
    %vm98 = vcmp.lt.s32.totalorder %v97, 0
    %v99 = vsub.s32 0, %v97
    %v100 = vsel %vm98, %v99, %v97
    %v101 = vclz %v100
    %v102 = vsub.s32 %v101, 2
    %vm103 = vcmp.gt.s32.totalorder 0, %v102
    %v104 = vsel %vm103, 0, %v102
    %v105 = vsub.s32 32, %v104
    %v106 = vshll.u32 %v97, %v104
    %v107 = vshrl.u32 %v89, %v105
    %v108 = vor.u32 %v106, %v107
    %v109 = vsub.s32 4294967266, %v104
    %v110 = vadd.s32 %v109, 127
    %v111 = vshll.u32 %v110, 23
    %v112 = vor.u32 4788187, %v111
    %v113 = vand.u32 2147483647, %v112
    %v115 = vcvt.s32.f32 %v108
    %v116 = vmul.f32 %v115, %v113
    %v117 = vxor.u32 %v116, 2147483648
    %v118 = vsel %vm35, %v117, %v116
    %v119 = vsub.s32 4, %v95
    %v120 = vsel %vm35, %v119, %v95
    %v121 = vsel %vm34, %v29, %v118
    %v122 = vsel %vm34, 0, %v120
    %v123 = vcosq.f32.pop %v121
    %v124 = vsinq.f32.pop %v121
    %vm125 = vweird.f32 %v29
    %v126 = vadd.s32 %v122, 3
    %v127 = vand.u32 %v126, 3
    %vm128 = vcmp.lt.s32.totalorder %v127, 2
    %vm129 = vcmp.eq.s32.totalorder %v127, 0
    %v130 = vxor.u32 %v124, 2147483648
    %v131 = vsel %vm129, %v123, %v130
    %vm132 = vcmp.eq.s32.totalorder %v127, 2
    %v133 = vxor.u32 %v123, 2147483648
    %v134 = vsel %vm132, %v133, %v124
    %v135 = vsel %vm128, %v131, %v134
    %v136 = vsel %vm125, nan, %v135
    %v137 = vand.u32 2147483647, %v30
    %vm138 = vcmp.le.f32.partialorder %v137, 0.7853982
    %vm139 = vcmp.lt.s32.totalorder %v30, 0
    %v140 = vand.u32 %v30, 2139095040
    %v141 = vshrl.u32 %v140, 23
    %v142 = vsub.s32 %v141, 127
    %v143 = vand.u32 2147483647, %v30
    %v144 = vand.u32 %v143, 8388607
    %v145 = vor.u32 %v144, 8388608
    %v146 = vsub.s32 0, %v145
    %v147 = vadd.s32 %v142, 1
    %vm148 = vcmp.gt.s32.totalorder %v147, 0
    %v149 = vsel %vm148, %v147, 0
    %v150 = vshrl.u32 %v149, 5
    %v151 = vand.u32 %v149, 31
    %v152 = vsub.s32 32, %v151
    %v153 = vshrl.u32 683565275, %v152
    %v154 = vshll.u32 683565275, %v151
    %v155 = vshrl.u32 2475754826, %v152
    %v156 = vor.u32 %v154, %v155
    %v157 = vshll.u32 2475754826, %v151
    %v158 = vshrl.u32 2131351028, %v152
    %v159 = vor.u32 %v157, %v158
    %v160 = vshll.u32 2131351028, %v151
    %v161 = vshrl.u32 2102212464, %v152
    %v162 = vor.u32 %v160, %v161
    %v163 = vshll.u32 2102212464, %v151
    %v164 = vshrl.u32 920167782, %v152
    %v165 = vor.u32 %v163, %v164
    %v166 = vshll.u32 920167782, %v151
    %v167 = vshrl.u32 1326507024, %v152
    %v168 = vor.u32 %v166, %v167
    %vm169 = vcmp.lt.s32.totalorder %v150, 1
    %vm170 = vcmp.lt.s32.totalorder %v150, 2
    %vm171 = vcmp.lt.s32.totalorder %v150, 3
    %vm172 = vcmp.lt.s32.totalorder %v150, 4
    %v173 = vsel %vm169, %v153, %v156
    %v174 = vsel %vm172, %v162, 2102212464
    %v175 = vsel %vm171, %v159, %v174
    %v176 = vsel %vm170, %v173, %v175
    %v177 = vsel %vm169, %v156, %v159
    %v178 = vsel %vm172, %v165, 920167782
    %v179 = vsel %vm171, %v162, %v178
    %v180 = vsel %vm170, %v177, %v179
    %v181 = vsel %vm169, %v159, %v162
    %v182 = vsel %vm172, %v168, 1326507024
    %v183 = vsel %vm171, %v165, %v182
    %v184 = vsel %vm170, %v181, %v183
    %v185 = vshll.u32 %v145, 8
    %v186 = vmul.u32.u64.compose %v185, %v184
    %v187 = vextract.low.u32 %v186
    %v188 = vextract.high.u32 %v186
    %v189 = vmul.u32.u64.compose %v185, %v180
    %v190 = vextract.low.u32 %v189
    %v191 = vextract.high.u32 %v189
    %v192 = vmul.u32 %v185, %v176
    %v193 = vadd.s32 %v188, %v190
    %vm194 = vc.u32 %v188, %v190
    %v195 = vadd.s32 %v191, 1
    %v196 = vsel %vm194, %v195, %v191
    %v197 = vadd.s32 %v192, %v196
    %v198 = vadd.s32 %v197, 536870912
    %v199 = vshrl.u32 %v198, 30
    %v200 = vshll.u32 %v199, 30
    %v201 = vsub.s32 %v197, %v200
    %vm202 = vcmp.lt.s32.totalorder %v201, 0
    %v203 = vsub.s32 0, %v201
    %v204 = vsel %vm202, %v203, %v201
    %v205 = vclz %v204
    %v206 = vsub.s32 %v205, 2
    %vm207 = vcmp.gt.s32.totalorder 0, %v206
    %v208 = vsel %vm207, 0, %v206
    %v209 = vsub.s32 32, %v208
    %v210 = vshll.u32 %v201, %v208
    %v211 = vshrl.u32 %v193, %v209
    %v212 = vor.u32 %v210, %v211
    %v213 = vsub.s32 4294967266, %v208
    %v214 = vadd.s32 %v213, 127
    %v215 = vshll.u32 %v214, 23
    %v216 = vor.u32 4788187, %v215
    %v217 = vand.u32 2147483647, %v216
    %v219 = vcvt.s32.f32 %v212
    %v220 = vmul.f32 %v219, %v217
    %v221 = vxor.u32 %v220, 2147483648
    %v222 = vsel %vm139, %v221, %v220
    %v223 = vsub.s32 4, %v199
    %v224 = vsel %vm139, %v223, %v199
    %v225 = vsel %vm138, %v30, %v222
    %v226 = vsel %vm138, 0, %v224
    %v227 = vcosq.f32.pop %v225
    %v228 = vsinq.f32.pop %v225
    %vm229 = vweird.f32 %v30
    %v230 = vadd.s32 %v226, 3
    %v231 = vand.u32 %v230, 3
    %vm232 = vcmp.lt.s32.totalorder %v231, 2
    %vm233 = vcmp.eq.s32.totalorder %v231, 0
    %v234 = vxor.u32 %v228, 2147483648
    %v235 = vsel %vm233, %v227, %v234
    %vm236 = vcmp.eq.s32.totalorder %v231, 2
    %v237 = vxor.u32 %v227, 2147483648
    %v238 = vsel %vm236, %v237, %v228
    %v239 = vsel %vm232, %v235, %v238
    %v240 = vsel %vm229, nan, %v239
    %v241 = vand.u32 2147483647, %v31
    %vm242 = vcmp.le.f32.partialorder %v241, 0.7853982
    %vm243 = vcmp.lt.s32.totalorder %v31, 0
    %v244 = vand.u32 %v31, 2139095040
    %v245 = vshrl.u32 %v244, 23
    %v246 = vsub.s32 %v245, 127
    %v247 = vand.u32 2147483647, %v31
    %v248 = vand.u32 %v247, 8388607
    %v249 = vor.u32 %v248, 8388608
    %v250 = vsub.s32 0, %v249
    %v251 = vadd.s32 %v246, 1
    %vm252 = vcmp.gt.s32.totalorder %v251, 0
    %v253 = vsel %vm252, %v251, 0
    %v254 = vshrl.u32 %v253, 5
    %v255 = vand.u32 %v253, 31
    %v256 = vsub.s32 32, %v255
    %v257 = vshrl.u32 683565275, %v256
    %v258 = vshll.u32 683565275, %v255
    %v259 = vshrl.u32 2475754826, %v256
    %v260 = vor.u32 %v258, %v259
    %v261 = vshll.u32 2475754826, %v255
    %v262 = vshrl.u32 2131351028, %v256
    %v263 = vor.u32 %v261, %v262
    %v264 = vshll.u32 2131351028, %v255
    %v265 = vshrl.u32 2102212464, %v256
    %v266 = vor.u32 %v264, %v265
    %v267 = vshll.u32 2102212464, %v255
    %v268 = vshrl.u32 920167782, %v256
    %v269 = vor.u32 %v267, %v268
    %v270 = vshll.u32 920167782, %v255
    %v271 = vshrl.u32 1326507024, %v256
    %v272 = vor.u32 %v270, %v271
    %vm273 = vcmp.lt.s32.totalorder %v254, 1
    %vm274 = vcmp.lt.s32.totalorder %v254, 2
    %vm275 = vcmp.lt.s32.totalorder %v254, 3
    %vm276 = vcmp.lt.s32.totalorder %v254, 4
    %v277 = vsel %vm273, %v257, %v260
    %v278 = vsel %vm276, %v266, 2102212464
    %v279 = vsel %vm275, %v263, %v278
    %v280 = vsel %vm274, %v277, %v279
    %v281 = vsel %vm273, %v260, %v263
    %v282 = vsel %vm276, %v269, 920167782
    %v283 = vsel %vm275, %v266, %v282
    %v284 = vsel %vm274, %v281, %v283
    %v285 = vsel %vm273, %v263, %v266
    %v286 = vsel %vm276, %v272, 1326507024
    %v287 = vsel %vm275, %v269, %v286
    %v288 = vsel %vm274, %v285, %v287
    %v289 = vshll.u32 %v249, 8
    %v290 = vmul.u32.u64.compose %v289, %v288
    %v291 = vextract.low.u32 %v290
    %v292 = vextract.high.u32 %v290
    %v293 = vmul.u32.u64.compose %v289, %v284
    %v294 = vextract.low.u32 %v293
    %v295 = vextract.high.u32 %v293
    %v296 = vmul.u32 %v289, %v280
    %v297 = vadd.s32 %v292, %v294
    %vm298 = vc.u32 %v292, %v294
    %v299 = vadd.s32 %v295, 1
    %v300 = vsel %vm298, %v299, %v295
    %v301 = vadd.s32 %v296, %v300
    %v302 = vadd.s32 %v301, 536870912
    %v303 = vshrl.u32 %v302, 30
    %v304 = vshll.u32 %v303, 30
    %v305 = vsub.s32 %v301, %v304
    %vm306 = vcmp.lt.s32.totalorder %v305, 0
    %v307 = vsub.s32 0, %v305
    %v308 = vsel %vm306, %v307, %v305
    %v309 = vclz %v308
    %v310 = vsub.s32 %v309, 2
    %vm311 = vcmp.gt.s32.totalorder 0, %v310
    %v312 = vsel %vm311, 0, %v310
    %v313 = vsub.s32 32, %v312
    %v314 = vshll.u32 %v305, %v312
    %v315 = vshrl.u32 %v297, %v313
    %v316 = vor.u32 %v314, %v315
    %v317 = vsub.s32 4294967266, %v312
    %v318 = vadd.s32 %v317, 127
    %v319 = vshll.u32 %v318, 23
    %v320 = vor.u32 4788187, %v319
    %v321 = vand.u32 2147483647, %v320
    %v323 = vcvt.s32.f32 %v316
    %v324 = vmul.f32 %v323, %v321
    %v325 = vxor.u32 %v324, 2147483648
    %v326 = vsel %vm243, %v325, %v324
    %v327 = vsub.s32 4, %v303
    %v328 = vsel %vm243, %v327, %v303
    %v329 = vsel %vm242, %v31, %v326
    %v330 = vsel %vm242, 0, %v328
    %v331 = vcosq.f32.pop %v329
    %v332 = vsinq.f32.pop %v329
    %vm333 = vweird.f32 %v31
    %v334 = vadd.s32 %v330, 3
    %v335 = vand.u32 %v334, 3
    %vm336 = vcmp.lt.s32.totalorder %v335, 2
    %vm337 = vcmp.eq.s32.totalorder %v335, 0
    %v338 = vxor.u32 %v332, 2147483648
    %v339 = vsel %vm337, %v331, %v338
    %vm340 = vcmp.eq.s32.totalorder %v335, 2
    %v341 = vxor.u32 %v331, 2147483648
    %v342 = vsel %vm340, %v341, %v332
    %v343 = vsel %vm336, %v339, %v342
    %v344 = vsel %vm333, nan, %v343
    %v345 = vand.u32 2147483647, %v32
    %vm346 = vcmp.le.f32.partialorder %v345, 0.7853982
    %vm347 = vcmp.lt.s32.totalorder %v32, 0
    %v348 = vand.u32 %v32, 2139095040
    %v349 = vshrl.u32 %v348, 23
    %v350 = vsub.s32 %v349, 127
    %v351 = vand.u32 2147483647, %v32
    %v352 = vand.u32 %v351, 8388607
    %v353 = vor.u32 %v352, 8388608
    %v354 = vsub.s32 0, %v353
    %v355 = vadd.s32 %v350, 1
    %vm356 = vcmp.gt.s32.totalorder %v355, 0
    %v357 = vsel %vm356, %v355, 0
    %v358 = vshrl.u32 %v357, 5
    %v359 = vand.u32 %v357, 31
    %v360 = vsub.s32 32, %v359
    %v361 = vshrl.u32 683565275, %v360
    %v362 = vshll.u32 683565275, %v359
    %v363 = vshrl.u32 2475754826, %v360
    %v364 = vor.u32 %v362, %v363
    %v365 = vshll.u32 2475754826, %v359
    %v366 = vshrl.u32 2131351028, %v360
    %v367 = vor.u32 %v365, %v366
    %v368 = vshll.u32 2131351028, %v359
    %v369 = vshrl.u32 2102212464, %v360
    %v370 = vor.u32 %v368, %v369
    %v371 = vshll.u32 2102212464, %v359
    %v372 = vshrl.u32 920167782, %v360
    %v373 = vor.u32 %v371, %v372
    %v374 = vshll.u32 920167782, %v359
    %v375 = vshrl.u32 1326507024, %v360
    %v376 = vor.u32 %v374, %v375
    %vm377 = vcmp.lt.s32.totalorder %v358, 1
    %vm378 = vcmp.lt.s32.totalorder %v358, 2
    %vm379 = vcmp.lt.s32.totalorder %v358, 3
    %vm380 = vcmp.lt.s32.totalorder %v358, 4
    %v381 = vsel %vm377, %v361, %v364
    %v382 = vsel %vm380, %v370, 2102212464
    %v383 = vsel %vm379, %v367, %v382
    %v384 = vsel %vm378, %v381, %v383
    %v385 = vsel %vm377, %v364, %v367
    %v386 = vsel %vm380, %v373, 920167782
    %v387 = vsel %vm379, %v370, %v386
    %v388 = vsel %vm378, %v385, %v387
    %v389 = vsel %vm377, %v367, %v370
    %v390 = vsel %vm380, %v376, 1326507024
    %v391 = vsel %vm379, %v373, %v390
    %v392 = vsel %vm378, %v389, %v391
    %v393 = vshll.u32 %v353, 8
    %v394 = vmul.u32.u64.compose %v393, %v392
    %v395 = vextract.low.u32 %v394
    %v396 = vextract.high.u32 %v394
    %v397 = vmul.u32.u64.compose %v393, %v388
    %v398 = vextract.low.u32 %v397
    %v399 = vextract.high.u32 %v397
    %v400 = vmul.u32 %v393, %v384
    %v401 = vadd.s32 %v396, %v398
    %vm402 = vc.u32 %v396, %v398
    %v403 = vadd.s32 %v399, 1
    %v404 = vsel %vm402, %v403, %v399
    %v405 = vadd.s32 %v400, %v404
    %v406 = vadd.s32 %v405, 536870912
    %v407 = vshrl.u32 %v406, 30
    %v408 = vshll.u32 %v407, 30
    %v409 = vsub.s32 %v405, %v408
    %vm410 = vcmp.lt.s32.totalorder %v409, 0
    %v411 = vsub.s32 0, %v409
    %v412 = vsel %vm410, %v411, %v409
    %v413 = vclz %v412
    %v414 = vsub.s32 %v413, 2
    %vm415 = vcmp.gt.s32.totalorder 0, %v414
    %v416 = vsel %vm415, 0, %v414
    %v417 = vsub.s32 32, %v416
    %v418 = vshll.u32 %v409, %v416
    %v419 = vshrl.u32 %v401, %v417
    %v420 = vor.u32 %v418, %v419
    %v421 = vsub.s32 4294967266, %v416
    %v422 = vadd.s32 %v421, 127
    %v423 = vshll.u32 %v422, 23
    %v424 = vor.u32 4788187, %v423
    %v425 = vand.u32 2147483647, %v424
    %v427 = vcvt.s32.f32 %v420
    %v428 = vmul.f32 %v427, %v425
    %v429 = vxor.u32 %v428, 2147483648
    %v430 = vsel %vm347, %v429, %v428
    %v431 = vsub.s32 4, %v407
    %v432 = vsel %vm347, %v431, %v407
    %v433 = vsel %vm346, %v32, %v430
    %v434 = vsel %vm346, 0, %v432
    %v435 = vcosq.f32.pop %v433
    %v436 = vsinq.f32.pop %v433
    %vm437 = vweird.f32 %v32
    %v438 = vadd.s32 %v434, 3
    %v439 = vand.u32 %v438, 3
    %vm440 = vcmp.lt.s32.totalorder %v439, 2
    %vm441 = vcmp.eq.s32.totalorder %v439, 0
    %v442 = vxor.u32 %v436, 2147483648
    %v443 = vsel %vm441, %v435, %v442
    %vm444 = vcmp.eq.s32.totalorder %v439, 2
    %v445 = vxor.u32 %v435, 2147483648
    %v446 = vsel %vm444, %v445, %v436
    %v447 = vsel %vm440, %v443, %v446
    %v448 = vsel %vm437, nan, %v447
    %s449 = scalar_lea.vmem [#allocation5], 32
    %450 = vst [vmem:[%s449] sm:$0xff] %v136
    %451 = vst [vmem:[%s449 + $0x8] sm:$0xff] %v240
    %452 = vst [vmem:[%s449 + $0x10] sm:$0xff] %v344
    %453 = vst [vmem:[%s449 + $0x18] sm:$0xff] %v448
    %v454 = vand.u32 2147483647, %v29
    %vm455 = vcmp.le.f32.partialorder %v454, 0.7853982
    %vm456 = vcmp.lt.s32.totalorder %v29, 0
    %v457 = vand.u32 %v29, 2139095040
    %v458 = vshrl.u32 %v457, 23
    %v459 = vsub.s32 %v458, 127
    %v460 = vand.u32 2147483647, %v29
    %v461 = vand.u32 %v460, 8388607
    %v462 = vor.u32 %v461, 8388608
    %v463 = vsub.s32 0, %v462
    %v464 = vadd.s32 %v459, 1
    %vm465 = vcmp.gt.s32.totalorder %v464, 0
    %v466 = vsel %vm465, %v464, 0
    %v467 = vshrl.u32 %v466, 5
    %v468 = vand.u32 %v466, 31
    %v469 = vsub.s32 32, %v468
    %v470 = vshrl.u32 683565275, %v469
    %v471 = vshll.u32 683565275, %v468
    %v472 = vshrl.u32 2475754826, %v469
    %v473 = vor.u32 %v471, %v472
    %v474 = vshll.u32 2475754826, %v468
    %v475 = vshrl.u32 2131351028, %v469
    %v476 = vor.u32 %v474, %v475
    %v477 = vshll.u32 2131351028, %v468
    %v478 = vshrl.u32 2102212464, %v469
    %v479 = vor.u32 %v477, %v478
    %v480 = vshll.u32 2102212464, %v468
    %v481 = vshrl.u32 920167782, %v469
    %v482 = vor.u32 %v480, %v481
    %v483 = vshll.u32 920167782, %v468
    %v484 = vshrl.u32 1326507024, %v469
    %v485 = vor.u32 %v483, %v484
    %vm486 = vcmp.lt.s32.totalorder %v467, 1
    %vm487 = vcmp.lt.s32.totalorder %v467, 2
    %vm488 = vcmp.lt.s32.totalorder %v467, 3
    %vm489 = vcmp.lt.s32.totalorder %v467, 4
    %v490 = vsel %vm486, %v470, %v473
    %v491 = vsel %vm489, %v479, 2102212464
    %v492 = vsel %vm488, %v476, %v491
    %v493 = vsel %vm487, %v490, %v492
    %v494 = vsel %vm486, %v473, %v476
    %v495 = vsel %vm489, %v482, 920167782
    %v496 = vsel %vm488, %v479, %v495
    %v497 = vsel %vm487, %v494, %v496
    %v498 = vsel %vm486, %v476, %v479
    %v499 = vsel %vm489, %v485, 1326507024
    %v500 = vsel %vm488, %v482, %v499
    %v501 = vsel %vm487, %v498, %v500
    %v502 = vshll.u32 %v462, 8
    %v503 = vmul.u32.u64.compose %v502, %v501
    %v504 = vextract.low.u32 %v503
    %v505 = vextract.high.u32 %v503
    %v506 = vmul.u32.u64.compose %v502, %v497
    %v507 = vextract.low.u32 %v506
    %v508 = vextract.high.u32 %v506
    %v509 = vmul.u32 %v502, %v493
    %v510 = vadd.s32 %v505, %v507
    %vm511 = vc.u32 %v505, %v507
    %v512 = vadd.s32 %v508, 1
    %v513 = vsel %vm511, %v512, %v508
    %v514 = vadd.s32 %v509, %v513
    %v515 = vadd.s32 %v514, 536870912
    %v516 = vshrl.u32 %v515, 30
    %v517 = vshll.u32 %v516, 30
    %v518 = vsub.s32 %v514, %v517
    %vm519 = vcmp.lt.s32.totalorder %v518, 0
    %v520 = vsub.s32 0, %v518
    %v521 = vsel %vm519, %v520, %v518
    %v522 = vclz %v521
    %v523 = vsub.s32 %v522, 2
    %vm524 = vcmp.gt.s32.totalorder 0, %v523
    %v525 = vsel %vm524, 0, %v523
    %v526 = vsub.s32 32, %v525
    %v527 = vshll.u32 %v518, %v525
    %v528 = vshrl.u32 %v510, %v526
    %v529 = vor.u32 %v527, %v528
    %v530 = vsub.s32 4294967266, %v525
    %v531 = vadd.s32 %v530, 127
    %v532 = vshll.u32 %v531, 23
    %v533 = vor.u32 4788187, %v532
    %v534 = vand.u32 2147483647, %v533
    %v536 = vcvt.s32.f32 %v529
    %v537 = vmul.f32 %v536, %v534
    %v538 = vxor.u32 %v537, 2147483648
    %v539 = vsel %vm456, %v538, %v537
    %v540 = vsub.s32 4, %v516
    %v541 = vsel %vm456, %v540, %v516
    %v542 = vsel %vm455, %v29, %v539
    %v543 = vsel %vm455, 0, %v541
    %v544 = vcosq.f32.pop %v542
    %v545 = vsinq.f32.pop %v542
    %vm546 = vweird.f32 %v29
    %v547 = vand.u32 %v543, 3
    %vm548 = vcmp.lt.s32.totalorder %v547, 2
    %vm549 = vcmp.eq.s32.totalorder %v547, 0
    %v550 = vxor.u32 %v545, 2147483648
    %v551 = vsel %vm549, %v544, %v550
    %vm552 = vcmp.eq.s32.totalorder %v547, 2
    %v553 = vxor.u32 %v544, 2147483648
    %v554 = vsel %vm552, %v553, %v545
    %v555 = vsel %vm548, %v551, %v554
    %v556 = vsel %vm546, nan, %v555
    %v557 = vand.u32 2147483647, %v30
    %vm558 = vcmp.le.f32.partialorder %v557, 0.7853982
    %vm559 = vcmp.lt.s32.totalorder %v30, 0
    %v560 = vand.u32 %v30, 2139095040
    %v561 = vshrl.u32 %v560, 23
    %v562 = vsub.s32 %v561, 127
    %v563 = vand.u32 2147483647, %v30
    %v564 = vand.u32 %v563, 8388607
    %v565 = vor.u32 %v564, 8388608
    %v566 = vsub.s32 0, %v565
    %v567 = vadd.s32 %v562, 1
    %vm568 = vcmp.gt.s32.totalorder %v567, 0
    %v569 = vsel %vm568, %v567, 0
    %v570 = vshrl.u32 %v569, 5
    %v571 = vand.u32 %v569, 31
    %v572 = vsub.s32 32, %v571
    %v573 = vshrl.u32 683565275, %v572
    %v574 = vshll.u32 683565275, %v571
    %v575 = vshrl.u32 2475754826, %v572
    %v576 = vor.u32 %v574, %v575
    %v577 = vshll.u32 2475754826, %v571
    %v578 = vshrl.u32 2131351028, %v572
    %v579 = vor.u32 %v577, %v578
    %v580 = vshll.u32 2131351028, %v571
    %v581 = vshrl.u32 2102212464, %v572
    %v582 = vor.u32 %v580, %v581
    %v583 = vshll.u32 2102212464, %v571
    %v584 = vshrl.u32 920167782, %v572
    %v585 = vor.u32 %v583, %v584
    %v586 = vshll.u32 920167782, %v571
    %v587 = vshrl.u32 1326507024, %v572
    %v588 = vor.u32 %v586, %v587
    %vm589 = vcmp.lt.s32.totalorder %v570, 1
    %vm590 = vcmp.lt.s32.totalorder %v570, 2
    %vm591 = vcmp.lt.s32.totalorder %v570, 3
    %vm592 = vcmp.lt.s32.totalorder %v570, 4
    %v593 = vsel %vm589, %v573, %v576
    %v594 = vsel %vm592, %v582, 2102212464
    %v595 = vsel %vm591, %v579, %v594
    %v596 = vsel %vm590, %v593, %v595
    %v597 = vsel %vm589, %v576, %v579
    %v598 = vsel %vm592, %v585, 920167782
    %v599 = vsel %vm591, %v582, %v598
    %v600 = vsel %vm590, %v597, %v599
    %v601 = vsel %vm589, %v579, %v582
    %v602 = vsel %vm592, %v588, 1326507024
    %v603 = vsel %vm591, %v585, %v602
    %v604 = vsel %vm590, %v601, %v603
    %v605 = vshll.u32 %v565, 8
    %v606 = vmul.u32.u64.compose %v605, %v604
    %v607 = vextract.low.u32 %v606
    %v608 = vextract.high.u32 %v606
    %v609 = vmul.u32.u64.compose %v605, %v600
    %v610 = vextract.low.u32 %v609
    %v611 = vextract.high.u32 %v609
    %v612 = vmul.u32 %v605, %v596
    %v613 = vadd.s32 %v608, %v610
    %vm614 = vc.u32 %v608, %v610
    %v615 = vadd.s32 %v611, 1
    %v616 = vsel %vm614, %v615, %v611
    %v617 = vadd.s32 %v612, %v616
    %v618 = vadd.s32 %v617, 536870912
    %v619 = vshrl.u32 %v618, 30
    %v620 = vshll.u32 %v619, 30
    %v621 = vsub.s32 %v617, %v620
    %vm622 = vcmp.lt.s32.totalorder %v621, 0
    %v623 = vsub.s32 0, %v621
    %v624 = vsel %vm622, %v623, %v621
    %v625 = vclz %v624
    %v626 = vsub.s32 %v625, 2
    %vm627 = vcmp.gt.s32.totalorder 0, %v626
    %v628 = vsel %vm627, 0, %v626
    %v629 = vsub.s32 32, %v628
    %v630 = vshll.u32 %v621, %v628
    %v631 = vshrl.u32 %v613, %v629
    %v632 = vor.u32 %v630, %v631
    %v633 = vsub.s32 4294967266, %v628
    %v634 = vadd.s32 %v633, 127
    %v635 = vshll.u32 %v634, 23
    %v636 = vor.u32 4788187, %v635
    %v637 = vand.u32 2147483647, %v636
    %v639 = vcvt.s32.f32 %v632
    %v640 = vmul.f32 %v639, %v637
    %v641 = vxor.u32 %v640, 2147483648
    %v642 = vsel %vm559, %v641, %v640
    %v643 = vsub.s32 4, %v619
    %v644 = vsel %vm559, %v643, %v619
    %v645 = vsel %vm558, %v30, %v642
    %v646 = vsel %vm558, 0, %v644
    %v647 = vcosq.f32.pop %v645
    %v648 = vsinq.f32.pop %v645
    %vm649 = vweird.f32 %v30
    %v650 = vand.u32 %v646, 3
    %vm651 = vcmp.lt.s32.totalorder %v650, 2
    %vm652 = vcmp.eq.s32.totalorder %v650, 0
    %v653 = vxor.u32 %v648, 2147483648
    %v654 = vsel %vm652, %v647, %v653
    %vm655 = vcmp.eq.s32.totalorder %v650, 2
    %v656 = vxor.u32 %v647, 2147483648
    %v657 = vsel %vm655, %v656, %v648
    %v658 = vsel %vm651, %v654, %v657
    %v659 = vsel %vm649, nan, %v658
    %v660 = vand.u32 2147483647, %v31
    %vm661 = vcmp.le.f32.partialorder %v660, 0.7853982
    %vm662 = vcmp.lt.s32.totalorder %v31, 0
    %v663 = vand.u32 %v31, 2139095040
    %v664 = vshrl.u32 %v663, 23
    %v665 = vsub.s32 %v664, 127
    %v666 = vand.u32 2147483647, %v31
    %v667 = vand.u32 %v666, 8388607
    %v668 = vor.u32 %v667, 8388608
    %v669 = vsub.s32 0, %v668
    %v670 = vadd.s32 %v665, 1
    %vm671 = vcmp.gt.s32.totalorder %v670, 0
    %v672 = vsel %vm671, %v670, 0
    %v673 = vshrl.u32 %v672, 5
    %v674 = vand.u32 %v672, 31
    %v675 = vsub.s32 32, %v674
    %v676 = vshrl.u32 683565275, %v675
    %v677 = vshll.u32 683565275, %v674
    %v678 = vshrl.u32 2475754826, %v675
    %v679 = vor.u32 %v677, %v678
    %v680 = vshll.u32 2475754826, %v674
    %v681 = vshrl.u32 2131351028, %v675
    %v682 = vor.u32 %v680, %v681
    %v683 = vshll.u32 2131351028, %v674
    %v684 = vshrl.u32 2102212464, %v675
    %v685 = vor.u32 %v683, %v684
    %v686 = vshll.u32 2102212464, %v674
    %v687 = vshrl.u32 920167782, %v675
    %v688 = vor.u32 %v686, %v687
    %v689 = vshll.u32 920167782, %v674
    %v690 = vshrl.u32 1326507024, %v675
    %v691 = vor.u32 %v689, %v690
    %vm692 = vcmp.lt.s32.totalorder %v673, 1
    %vm693 = vcmp.lt.s32.totalorder %v673, 2
    %vm694 = vcmp.lt.s32.totalorder %v673, 3
    %vm695 = vcmp.lt.s32.totalorder %v673, 4
    %v696 = vsel %vm692, %v676, %v679
    %v697 = vsel %vm695, %v685, 2102212464
    %v698 = vsel %vm694, %v682, %v697
    %v699 = vsel %vm693, %v696, %v698
    %v700 = vsel %vm692, %v679, %v682
    %v701 = vsel %vm695, %v688, 920167782
    %v702 = vsel %vm694, %v685, %v701
    %v703 = vsel %vm693, %v700, %v702
    %v704 = vsel %vm692, %v682, %v685
    %v705 = vsel %vm695, %v691, 1326507024
    %v706 = vsel %vm694, %v688, %v705
    %v707 = vsel %vm693, %v704, %v706
    %v708 = vshll.u32 %v668, 8
    %v709 = vmul.u32.u64.compose %v708, %v707
    %v710 = vextract.low.u32 %v709
    %v711 = vextract.high.u32 %v709
    %v712 = vmul.u32.u64.compose %v708, %v703
    %v713 = vextract.low.u32 %v712
    %v714 = vextract.high.u32 %v712
    %v715 = vmul.u32 %v708, %v699
    %v716 = vadd.s32 %v711, %v713
    %vm717 = vc.u32 %v711, %v713
    %v718 = vadd.s32 %v714, 1
    %v719 = vsel %vm717, %v718, %v714
    %v720 = vadd.s32 %v715, %v719
    %v721 = vadd.s32 %v720, 536870912
    %v722 = vshrl.u32 %v721, 30
    %v723 = vshll.u32 %v722, 30
    %v724 = vsub.s32 %v720, %v723
    %vm725 = vcmp.lt.s32.totalorder %v724, 0
    %v726 = vsub.s32 0, %v724
    %v727 = vsel %vm725, %v726, %v724
    %v728 = vclz %v727
    %v729 = vsub.s32 %v728, 2
    %vm730 = vcmp.gt.s32.totalorder 0, %v729
    %v731 = vsel %vm730, 0, %v729
    %v732 = vsub.s32 32, %v731
    %v733 = vshll.u32 %v724, %v731
    %v734 = vshrl.u32 %v716, %v732
    %v735 = vor.u32 %v733, %v734
    %v736 = vsub.s32 4294967266, %v731
    %v737 = vadd.s32 %v736, 127
    %v738 = vshll.u32 %v737, 23
    %v739 = vor.u32 4788187, %v738
    %v740 = vand.u32 2147483647, %v739
    %v742 = vcvt.s32.f32 %v735
    %v743 = vmul.f32 %v742, %v740
    %v744 = vxor.u32 %v743, 2147483648
    %v745 = vsel %vm662, %v744, %v743
    %v746 = vsub.s32 4, %v722
    %v747 = vsel %vm662, %v746, %v722
    %v748 = vsel %vm661, %v31, %v745
    %v749 = vsel %vm661, 0, %v747
    %v750 = vcosq.f32.pop %v748
    %v751 = vsinq.f32.pop %v748
    %vm752 = vweird.f32 %v31
    %v753 = vand.u32 %v749, 3
    %vm754 = vcmp.lt.s32.totalorder %v753, 2
    %vm755 = vcmp.eq.s32.totalorder %v753, 0
    %v756 = vxor.u32 %v751, 2147483648
    %v757 = vsel %vm755, %v750, %v756
    %vm758 = vcmp.eq.s32.totalorder %v753, 2
    %v759 = vxor.u32 %v750, 2147483648
    %v760 = vsel %vm758, %v759, %v751
    %v761 = vsel %vm754, %v757, %v760
    %v762 = vsel %vm752, nan, %v761
    %v763 = vand.u32 2147483647, %v32
    %vm764 = vcmp.le.f32.partialorder %v763, 0.7853982
    %vm765 = vcmp.lt.s32.totalorder %v32, 0
    %v766 = vand.u32 %v32, 2139095040
    %v767 = vshrl.u32 %v766, 23
    %v768 = vsub.s32 %v767, 127
    %v769 = vand.u32 2147483647, %v32
    %v770 = vand.u32 %v769, 8388607
    %v771 = vor.u32 %v770, 8388608
    %v772 = vsub.s32 0, %v771
    %v773 = vadd.s32 %v768, 1
    %vm774 = vcmp.gt.s32.totalorder %v773, 0
    %v775 = vsel %vm774, %v773, 0
    %v776 = vshrl.u32 %v775, 5
    %v777 = vand.u32 %v775, 31
    %v778 = vsub.s32 32, %v777
    %v779 = vshrl.u32 683565275, %v778
    %v780 = vshll.u32 683565275, %v777
    %v781 = vshrl.u32 2475754826, %v778
    %v782 = vor.u32 %v780, %v781
    %v783 = vshll.u32 2475754826, %v777
    %v784 = vshrl.u32 2131351028, %v778
    %v785 = vor.u32 %v783, %v784
    %v786 = vshll.u32 2131351028, %v777
    %v787 = vshrl.u32 2102212464, %v778
    %v788 = vor.u32 %v786, %v787
    %v789 = vshll.u32 2102212464, %v777
    %v790 = vshrl.u32 920167782, %v778
    %v791 = vor.u32 %v789, %v790
    %v792 = vshll.u32 920167782, %v777
    %v793 = vshrl.u32 1326507024, %v778
    %v794 = vor.u32 %v792, %v793
    %vm795 = vcmp.lt.s32.totalorder %v776, 1
    %vm796 = vcmp.lt.s32.totalorder %v776, 2
    %vm797 = vcmp.lt.s32.totalorder %v776, 3
    %vm798 = vcmp.lt.s32.totalorder %v776, 4
    %v799 = vsel %vm795, %v779, %v782
    %v800 = vsel %vm798, %v788, 2102212464
    %v801 = vsel %vm797, %v785, %v800
    %v802 = vsel %vm796, %v799, %v801
    %v803 = vsel %vm795, %v782, %v785
    %v804 = vsel %vm798, %v791, 920167782
    %v805 = vsel %vm797, %v788, %v804
    %v806 = vsel %vm796, %v803, %v805
    %v807 = vsel %vm795, %v785, %v788
    %v808 = vsel %vm798, %v794, 1326507024
    %v809 = vsel %vm797, %v791, %v808
    %v810 = vsel %vm796, %v807, %v809
    %v811 = vshll.u32 %v771, 8
    %v812 = vmul.u32.u64.compose %v811, %v810
    %v813 = vextract.low.u32 %v812
    %v814 = vextract.high.u32 %v812
    %v815 = vmul.u32.u64.compose %v811, %v806
    %v816 = vextract.low.u32 %v815
    %v817 = vextract.high.u32 %v815
    %v818 = vmul.u32 %v811, %v802
    %v819 = vadd.s32 %v814, %v816
    %vm820 = vc.u32 %v814, %v816
    %v821 = vadd.s32 %v817, 1
    %v822 = vsel %vm820, %v821, %v817
    %v823 = vadd.s32 %v818, %v822
    %v824 = vadd.s32 %v823, 536870912
    %v825 = vshrl.u32 %v824, 30
    %v826 = vshll.u32 %v825, 30
    %v827 = vsub.s32 %v823, %v826
    %vm828 = vcmp.lt.s32.totalorder %v827, 0
    %v829 = vsub.s32 0, %v827
    %v830 = vsel %vm828, %v829, %v827
    %v831 = vclz %v830
    %v832 = vsub.s32 %v831, 2
    %vm833 = vcmp.gt.s32.totalorder 0, %v832
    %v834 = vsel %vm833, 0, %v832
    %v835 = vsub.s32 32, %v834
    %v836 = vshll.u32 %v827, %v834
    %v837 = vshrl.u32 %v819, %v835
    %v838 = vor.u32 %v836, %v837
    %v839 = vsub.s32 4294967266, %v834
    %v840 = vadd.s32 %v839, 127
    %v841 = vshll.u32 %v840, 23
    %v842 = vor.u32 4788187, %v841
    %v843 = vand.u32 2147483647, %v842
    %v845 = vcvt.s32.f32 %v838
    %v846 = vmul.f32 %v845, %v843
    %v847 = vxor.u32 %v846, 2147483648
    %v848 = vsel %vm765, %v847, %v846
    %v849 = vsub.s32 4, %v825
    %v850 = vsel %vm765, %v849, %v825
    %v851 = vsel %vm764, %v32, %v848
    %v852 = vsel %vm764, 0, %v850
    %v853 = vcosq.f32.pop %v851
    %v854 = vsinq.f32.pop %v851
    %vm855 = vweird.f32 %v32
    %v856 = vand.u32 %v852, 3
    %vm857 = vcmp.lt.s32.totalorder %v856, 2
    %vm858 = vcmp.eq.s32.totalorder %v856, 0
    %v859 = vxor.u32 %v854, 2147483648
    %v860 = vsel %vm858, %v853, %v859
    %vm861 = vcmp.eq.s32.totalorder %v856, 2
    %v862 = vxor.u32 %v853, 2147483648
    %v863 = vsel %vm861, %v862, %v854
    %v864 = vsel %vm857, %v860, %v863
    %v865 = vsel %vm855, nan, %v864
    %s866 = scalar_lea.vmem [#allocation5], 160
    %867 = vst [vmem:[%s866] sm:$0xff] %v556
    %868 = vst [vmem:[%s866 + $0x8] sm:$0xff] %v659
    %869 = vst [vmem:[%s866 + $0x10] sm:$0xff] %v762
    %870 = vst [vmem:[%s866 + $0x18] sm:$0xff] %v865
    %v871 = vmul.f32 %v29, 2.0
    %v872 = vmul.f32 %v30, 2.0
    %v873 = vmul.f32 %v31, 2.0
    %v874 = vmul.f32 %v32, 2.0
    %v875 = vand.u32 2147483647, %v871
    %vm876 = vcmp.le.f32.partialorder %v875, 0.7853982
    %vm877 = vcmp.lt.s32.totalorder %v871, 0
    %v878 = vand.u32 %v871, 2139095040
    %v879 = vshrl.u32 %v878, 23
    %v880 = vsub.s32 %v879, 127
    %v881 = vand.u32 2147483647, %v871
    %v882 = vand.u32 %v881, 8388607
    %v883 = vor.u32 %v882, 8388608
    %v884 = vsub.s32 0, %v883
    %v885 = vadd.s32 %v880, 1
    %vm886 = vcmp.gt.s32.totalorder %v885, 0
    %v887 = vsel %vm886, %v885, 0
    %v888 = vshrl.u32 %v887, 5
    %v889 = vand.u32 %v887, 31
    %v890 = vsub.s32 32, %v889
    %v891 = vshrl.u32 683565275, %v890
    %v892 = vshll.u32 683565275, %v889
    %v893 = vshrl.u32 2475754826, %v890
    %v894 = vor.u32 %v892, %v893
    %v895 = vshll.u32 2475754826, %v889
    %v896 = vshrl.u32 2131351028, %v890
    %v897 = vor.u32 %v895, %v896
    %v898 = vshll.u32 2131351028, %v889
    %v899 = vshrl.u32 2102212464, %v890
    %v900 = vor.u32 %v898, %v899
    %v901 = vshll.u32 2102212464, %v889
    %v902 = vshrl.u32 920167782, %v890
    %v903 = vor.u32 %v901, %v902
    %v904 = vshll.u32 920167782, %v889
    %v905 = vshrl.u32 1326507024, %v890
    %v906 = vor.u32 %v904, %v905
    %vm907 = vcmp.lt.s32.totalorder %v888, 1
    %vm908 = vcmp.lt.s32.totalorder %v888, 2
    %vm909 = vcmp.lt.s32.totalorder %v888, 3
    %vm910 = vcmp.lt.s32.totalorder %v888, 4
    %v911 = vsel %vm907, %v891, %v894
    %v912 = vsel %vm910, %v900, 2102212464
    %v913 = vsel %vm909, %v897, %v912
    %v914 = vsel %vm908, %v911, %v913
    %v915 = vsel %vm907, %v894, %v897
    %v916 = vsel %vm910, %v903, 920167782
    %v917 = vsel %vm909, %v900, %v916
    %v918 = vsel %vm908, %v915, %v917
    %v919 = vsel %vm907, %v897, %v900
    %v920 = vsel %vm910, %v906, 1326507024
    %v921 = vsel %vm909, %v903, %v920
    %v922 = vsel %vm908, %v919, %v921
    %v923 = vshll.u32 %v883, 8
    %v924 = vmul.u32.u64.compose %v923, %v922
    %v925 = vextract.low.u32 %v924
    %v926 = vextract.high.u32 %v924
    %v927 = vmul.u32.u64.compose %v923, %v918
    %v928 = vextract.low.u32 %v927
    %v929 = vextract.high.u32 %v927
    %v930 = vmul.u32 %v923, %v914
    %v931 = vadd.s32 %v926, %v928
    %vm932 = vc.u32 %v926, %v928
    %v933 = vadd.s32 %v929, 1
    %v934 = vsel %vm932, %v933, %v929
    %v935 = vadd.s32 %v930, %v934
    %v936 = vadd.s32 %v935, 536870912
    %v937 = vshrl.u32 %v936, 30
    %v938 = vshll.u32 %v937, 30
    %v939 = vsub.s32 %v935, %v938
    %vm940 = vcmp.lt.s32.totalorder %v939, 0
    %v941 = vsub.s32 0, %v939
    %v942 = vsel %vm940, %v941, %v939
    %v943 = vclz %v942
    %v944 = vsub.s32 %v943, 2
    %vm945 = vcmp.gt.s32.totalorder 0, %v944
    %v946 = vsel %vm945, 0, %v944
    %v947 = vsub.s32 32, %v946
    %v948 = vshll.u32 %v939, %v946
    %v949 = vshrl.u32 %v931, %v947
    %v950 = vor.u32 %v948, %v949
    %v951 = vsub.s32 4294967266, %v946
    %v952 = vadd.s32 %v951, 127
    %v953 = vshll.u32 %v952, 23
    %v954 = vor.u32 4788187, %v953
    %v955 = vand.u32 2147483647, %v954
    %v957 = vcvt.s32.f32 %v950
    %v958 = vmul.f32 %v957, %v955
    %v959 = vxor.u32 %v958, 2147483648
    %v960 = vsel %vm877, %v959, %v958
    %v961 = vsub.s32 4, %v937
    %v962 = vsel %vm877, %v961, %v937
    %v963 = vsel %vm876, %v871, %v960
    %v964 = vsel %vm876, 0, %v962
    %v965 = vcosq.f32.pop %v963
    %v966 = vsinq.f32.pop %v963
    %vm967 = vweird.f32 %v871
    %v968 = vadd.s32 %v964, 3
    %v969 = vand.u32 %v968, 3
    %vm970 = vcmp.lt.s32.totalorder %v969, 2
    %vm971 = vcmp.eq.s32.totalorder %v969, 0
    %v972 = vxor.u32 %v966, 2147483648
    %v973 = vsel %vm971, %v965, %v972
    %vm974 = vcmp.eq.s32.totalorder %v969, 2
    %v975 = vxor.u32 %v965, 2147483648
    %v976 = vsel %vm974, %v975, %v966
    %v977 = vsel %vm970, %v973, %v976
    %v978 = vsel %vm967, nan, %v977
    %v979 = vand.u32 2147483647, %v872
    %vm980 = vcmp.le.f32.partialorder %v979, 0.7853982
    %vm981 = vcmp.lt.s32.totalorder %v872, 0
    %v982 = vand.u32 %v872, 2139095040
    %v983 = vshrl.u32 %v982, 23
    %v984 = vsub.s32 %v983, 127
    %v985 = vand.u32 2147483647, %v872
    %v986 = vand.u32 %v985, 8388607
    %v987 = vor.u32 %v986, 8388608
    %v988 = vsub.s32 0, %v987
    %v989 = vadd.s32 %v984, 1
    %vm990 = vcmp.gt.s32.totalorder %v989, 0
    %v991 = vsel %vm990, %v989, 0
    %v992 = vshrl.u32 %v991, 5
    %v993 = vand.u32 %v991, 31
    %v994 = vsub.s32 32, %v993
    %v995 = vshrl.u32 683565275, %v994
    %v996 = vshll.u32 683565275, %v993
    %v997 = vshrl.u32 2475754826, %v994
    %v998 = vor.u32 %v996, %v997
    %v999 = vshll.u32 2475754826, %v993
    %v1000 = vshrl.u32 2131351028, %v994
    %v1001 = vor.u32 %v999, %v1000
    %v1002 = vshll.u32 2131351028, %v993
    %v1003 = vshrl.u32 2102212464, %v994
    %v1004 = vor.u32 %v1002, %v1003
    %v1005 = vshll.u32 2102212464, %v993
    %v1006 = vshrl.u32 920167782, %v994
    %v1007 = vor.u32 %v1005, %v1006
    %v1008 = vshll.u32 920167782, %v993
    %v1009 = vshrl.u32 1326507024, %v994
    %v1010 = vor.u32 %v1008, %v1009
    %vm1011 = vcmp.lt.s32.totalorder %v992, 1
    %vm1012 = vcmp.lt.s32.totalorder %v992, 2
    %vm1013 = vcmp.lt.s32.totalorder %v992, 3
    %vm1014 = vcmp.lt.s32.totalorder %v992, 4
    %v1015 = vsel %vm1011, %v995, %v998
    %v1016 = vsel %vm1014, %v1004, 2102212464
    %v1017 = vsel %vm1013, %v1001, %v1016
    %v1018 = vsel %vm1012, %v1015, %v1017
    %v1019 = vsel %vm1011, %v998, %v1001
    %v1020 = vsel %vm1014, %v1007, 920167782
    %v1021 = vsel %vm1013, %v1004, %v1020
    %v1022 = vsel %vm1012, %v1019, %v1021
    %v1023 = vsel %vm1011, %v1001, %v1004
    %v1024 = vsel %vm1014, %v1010, 1326507024
    %v1025 = vsel %vm1013, %v1007, %v1024
    %v1026 = vsel %vm1012, %v1023, %v1025
    %v1027 = vshll.u32 %v987, 8
    %v1028 = vmul.u32.u64.compose %v1027, %v1026
    %v1029 = vextract.low.u32 %v1028
    %v1030 = vextract.high.u32 %v1028
    %v1031 = vmul.u32.u64.compose %v1027, %v1022
    %v1032 = vextract.low.u32 %v1031
    %v1033 = vextract.high.u32 %v1031
    %v1034 = vmul.u32 %v1027, %v1018
    %v1035 = vadd.s32 %v1030, %v1032
    %vm1036 = vc.u32 %v1030, %v1032
    %v1037 = vadd.s32 %v1033, 1
    %v1038 = vsel %vm1036, %v1037, %v1033
    %v1039 = vadd.s32 %v1034, %v1038
    %v1040 = vadd.s32 %v1039, 536870912
    %v1041 = vshrl.u32 %v1040, 30
    %v1042 = vshll.u32 %v1041, 30
    %v1043 = vsub.s32 %v1039, %v1042
    %vm1044 = vcmp.lt.s32.totalorder %v1043, 0
    %v1045 = vsub.s32 0, %v1043
    %v1046 = vsel %vm1044, %v1045, %v1043
    %v1047 = vclz %v1046
    %v1048 = vsub.s32 %v1047, 2
    %vm1049 = vcmp.gt.s32.totalorder 0, %v1048
    %v1050 = vsel %vm1049, 0, %v1048
    %v1051 = vsub.s32 32, %v1050
    %v1052 = vshll.u32 %v1043, %v1050
    %v1053 = vshrl.u32 %v1035, %v1051
    %v1054 = vor.u32 %v1052, %v1053
    %v1055 = vsub.s32 4294967266, %v1050
    %v1056 = vadd.s32 %v1055, 127
    %v1057 = vshll.u32 %v1056, 23
    %v1058 = vor.u32 4788187, %v1057
    %v1059 = vand.u32 2147483647, %v1058
    %v1061 = vcvt.s32.f32 %v1054
    %v1062 = vmul.f32 %v1061, %v1059
    %v1063 = vxor.u32 %v1062, 2147483648
    %v1064 = vsel %vm981, %v1063, %v1062
    %v1065 = vsub.s32 4, %v1041
    %v1066 = vsel %vm981, %v1065, %v1041
    %v1067 = vsel %vm980, %v872, %v1064
    %v1068 = vsel %vm980, 0, %v1066
    %v1069 = vcosq.f32.pop %v1067
    %v1070 = vsinq.f32.pop %v1067
    %vm1071 = vweird.f32 %v872
    %v1072 = vadd.s32 %v1068, 3
    %v1073 = vand.u32 %v1072, 3
    %vm1074 = vcmp.lt.s32.totalorder %v1073, 2
    %vm1075 = vcmp.eq.s32.totalorder %v1073, 0
    %v1076 = vxor.u32 %v1070, 2147483648
    %v1077 = vsel %vm1075, %v1069, %v1076
    %vm1078 = vcmp.eq.s32.totalorder %v1073, 2
    %v1079 = vxor.u32 %v1069, 2147483648
    %v1080 = vsel %vm1078, %v1079, %v1070
    %v1081 = vsel %vm1074, %v1077, %v1080
    %v1082 = vsel %vm1071, nan, %v1081
    %v1083 = vand.u32 2147483647, %v873
    %vm1084 = vcmp.le.f32.partialorder %v1083, 0.7853982
    %vm1085 = vcmp.lt.s32.totalorder %v873, 0
    %v1086 = vand.u32 %v873, 2139095040
    %v1087 = vshrl.u32 %v1086, 23
    %v1088 = vsub.s32 %v1087, 127
    %v1089 = vand.u32 2147483647, %v873
    %v1090 = vand.u32 %v1089, 8388607
    %v1091 = vor.u32 %v1090, 8388608
    %v1092 = vsub.s32 0, %v1091
    %v1093 = vadd.s32 %v1088, 1
    %vm1094 = vcmp.gt.s32.totalorder %v1093, 0
    %v1095 = vsel %vm1094, %v1093, 0
    %v1096 = vshrl.u32 %v1095, 5
    %v1097 = vand.u32 %v1095, 31
    %v1098 = vsub.s32 32, %v1097
    %v1099 = vshrl.u32 683565275, %v1098
    %v1100 = vshll.u32 683565275, %v1097
    %v1101 = vshrl.u32 2475754826, %v1098
    %v1102 = vor.u32 %v1100, %v1101
    %v1103 = vshll.u32 2475754826, %v1097
    %v1104 = vshrl.u32 2131351028, %v1098
    %v1105 = vor.u32 %v1103, %v1104
    %v1106 = vshll.u32 2131351028, %v1097
    %v1107 = vshrl.u32 2102212464, %v1098
    %v1108 = vor.u32 %v1106, %v1107
    %v1109 = vshll.u32 2102212464, %v1097
    %v1110 = vshrl.u32 920167782, %v1098
    %v1111 = vor.u32 %v1109, %v1110
    %v1112 = vshll.u32 920167782, %v1097
    %v1113 = vshrl.u32 1326507024, %v1098
    %v1114 = vor.u32 %v1112, %v1113
    %vm1115 = vcmp.lt.s32.totalorder %v1096, 1
    %vm1116 = vcmp.lt.s32.totalorder %v1096, 2
    %vm1117 = vcmp.lt.s32.totalorder %v1096, 3
    %vm1118 = vcmp.lt.s32.totalorder %v1096, 4
    %v1119 = vsel %vm1115, %v1099, %v1102
    %v1120 = vsel %vm1118, %v1108, 2102212464
    %v1121 = vsel %vm1117, %v1105, %v1120
    %v1122 = vsel %vm1116, %v1119, %v1121
    %v1123 = vsel %vm1115, %v1102, %v1105
    %v1124 = vsel %vm1118, %v1111, 920167782
    %v1125 = vsel %vm1117, %v1108, %v1124
    %v1126 = vsel %vm1116, %v1123, %v1125
    %v1127 = vsel %vm1115, %v1105, %v1108
    %v1128 = vsel %vm1118, %v1114, 1326507024
    %v1129 = vsel %vm1117, %v1111, %v1128
    %v1130 = vsel %vm1116, %v1127, %v1129
    %v1131 = vshll.u32 %v1091, 8
    %v1132 = vmul.u32.u64.compose %v1131, %v1130
    %v1133 = vextract.low.u32 %v1132
    %v1134 = vextract.high.u32 %v1132
    %v1135 = vmul.u32.u64.compose %v1131, %v1126
    %v1136 = vextract.low.u32 %v1135
    %v1137 = vextract.high.u32 %v1135
    %v1138 = vmul.u32 %v1131, %v1122
    %v1139 = vadd.s32 %v1134, %v1136
    %vm1140 = vc.u32 %v1134, %v1136
    %v1141 = vadd.s32 %v1137, 1
    %v1142 = vsel %vm1140, %v1141, %v1137
    %v1143 = vadd.s32 %v1138, %v1142
    %v1144 = vadd.s32 %v1143, 536870912
    %v1145 = vshrl.u32 %v1144, 30
    %v1146 = vshll.u32 %v1145, 30
    %v1147 = vsub.s32 %v1143, %v1146
    %vm1148 = vcmp.lt.s32.totalorder %v1147, 0
    %v1149 = vsub.s32 0, %v1147
    %v1150 = vsel %vm1148, %v1149, %v1147
    %v1151 = vclz %v1150
    %v1152 = vsub.s32 %v1151, 2
    %vm1153 = vcmp.gt.s32.totalorder 0, %v1152
    %v1154 = vsel %vm1153, 0, %v1152
    %v1155 = vsub.s32 32, %v1154
    %v1156 = vshll.u32 %v1147, %v1154
    %v1157 = vshrl.u32 %v1139, %v1155
    %v1158 = vor.u32 %v1156, %v1157
    %v1159 = vsub.s32 4294967266, %v1154
    %v1160 = vadd.s32 %v1159, 127
    %v1161 = vshll.u32 %v1160, 23
    %v1162 = vor.u32 4788187, %v1161
    %v1163 = vand.u32 2147483647, %v1162
    %v1165 = vcvt.s32.f32 %v1158
    %v1166 = vmul.f32 %v1165, %v1163
    %v1167 = vxor.u32 %v1166, 2147483648
    %v1168 = vsel %vm1085, %v1167, %v1166
    %v1169 = vsub.s32 4, %v1145
    %v1170 = vsel %vm1085, %v1169, %v1145
    %v1171 = vsel %vm1084, %v873, %v1168
    %v1172 = vsel %vm1084, 0, %v1170
    %v1173 = vcosq.f32.pop %v1171
    %v1174 = vsinq.f32.pop %v1171
    %vm1175 = vweird.f32 %v873
    %v1176 = vadd.s32 %v1172, 3
    %v1177 = vand.u32 %v1176, 3
    %vm1178 = vcmp.lt.s32.totalorder %v1177, 2
    %vm1179 = vcmp.eq.s32.totalorder %v1177, 0
    %v1180 = vxor.u32 %v1174, 2147483648
    %v1181 = vsel %vm1179, %v1173, %v1180
    %vm1182 = vcmp.eq.s32.totalorder %v1177, 2
    %v1183 = vxor.u32 %v1173, 2147483648
    %v1184 = vsel %vm1182, %v1183, %v1174
    %v1185 = vsel %vm1178, %v1181, %v1184
    %v1186 = vsel %vm1175, nan, %v1185
    %v1187 = vand.u32 2147483647, %v874
    %vm1188 = vcmp.le.f32.partialorder %v1187, 0.7853982
    %vm1189 = vcmp.lt.s32.totalorder %v874, 0
    %v1190 = vand.u32 %v874, 2139095040
    %v1191 = vshrl.u32 %v1190, 23
    %v1192 = vsub.s32 %v1191, 127
    %v1193 = vand.u32 2147483647, %v874
    %v1194 = vand.u32 %v1193, 8388607
    %v1195 = vor.u32 %v1194, 8388608
    %v1196 = vsub.s32 0, %v1195
    %v1197 = vadd.s32 %v1192, 1
    %vm1198 = vcmp.gt.s32.totalorder %v1197, 0
    %v1199 = vsel %vm1198, %v1197, 0
    %v1200 = vshrl.u32 %v1199, 5
    %v1201 = vand.u32 %v1199, 31
    %v1202 = vsub.s32 32, %v1201
    %v1203 = vshrl.u32 683565275, %v1202
    %v1204 = vshll.u32 683565275, %v1201
    %v1205 = vshrl.u32 2475754826, %v1202
    %v1206 = vor.u32 %v1204, %v1205
    %v1207 = vshll.u32 2475754826, %v1201
    %v1208 = vshrl.u32 2131351028, %v1202
    %v1209 = vor.u32 %v1207, %v1208
    %v1210 = vshll.u32 2131351028, %v1201
    %v1211 = vshrl.u32 2102212464, %v1202
    %v1212 = vor.u32 %v1210, %v1211
    %v1213 = vshll.u32 2102212464, %v1201
    %v1214 = vshrl.u32 920167782, %v1202
    %v1215 = vor.u32 %v1213, %v1214
    %v1216 = vshll.u32 920167782, %v1201
    %v1217 = vshrl.u32 1326507024, %v1202
    %v1218 = vor.u32 %v1216, %v1217
    %vm1219 = vcmp.lt.s32.totalorder %v1200, 1
    %vm1220 = vcmp.lt.s32.totalorder %v1200, 2
    %vm1221 = vcmp.lt.s32.totalorder %v1200, 3
    %vm1222 = vcmp.lt.s32.totalorder %v1200, 4
    %v1223 = vsel %vm1219, %v1203, %v1206
    %v1224 = vsel %vm1222, %v1212, 2102212464
    %v1225 = vsel %vm1221, %v1209, %v1224
    %v1226 = vsel %vm1220, %v1223, %v1225
    %v1227 = vsel %vm1219, %v1206, %v1209
    %v1228 = vsel %vm1222, %v1215, 920167782
    %v1229 = vsel %vm1221, %v1212, %v1228
    %v1230 = vsel %vm1220, %v1227, %v1229
    %v1231 = vsel %vm1219, %v1209, %v1212
    %v1232 = vsel %vm1222, %v1218, 1326507024
    %v1233 = vsel %vm1221, %v1215, %v1232
    %v1234 = vsel %vm1220, %v1231, %v1233
    %v1235 = vshll.u32 %v1195, 8
    %v1236 = vmul.u32.u64.compose %v1235, %v1234
    %v1237 = vextract.low.u32 %v1236
    %v1238 = vextract.high.u32 %v1236
    %v1239 = vmul.u32.u64.compose %v1235, %v1230
    %v1240 = vextract.low.u32 %v1239
    %v1241 = vextract.high.u32 %v1239
    %v1242 = vmul.u32 %v1235, %v1226
    %v1243 = vadd.s32 %v1238, %v1240
    %vm1244 = vc.u32 %v1238, %v1240
    %v1245 = vadd.s32 %v1241, 1
    %v1246 = vsel %vm1244, %v1245, %v1241
    %v1247 = vadd.s32 %v1242, %v1246
    %v1248 = vadd.s32 %v1247, 536870912
    %v1249 = vshrl.u32 %v1248, 30
    %v1250 = vshll.u32 %v1249, 30
    %v1251 = vsub.s32 %v1247, %v1250
    %vm1252 = vcmp.lt.s32.totalorder %v1251, 0
    %v1253 = vsub.s32 0, %v1251
    %v1254 = vsel %vm1252, %v1253, %v1251
    %v1255 = vclz %v1254
    %v1256 = vsub.s32 %v1255, 2
    %vm1257 = vcmp.gt.s32.totalorder 0, %v1256
    %v1258 = vsel %vm1257, 0, %v1256
    %v1259 = vsub.s32 32, %v1258
    %v1260 = vshll.u32 %v1251, %v1258
    %v1261 = vshrl.u32 %v1243, %v1259
    %v1262 = vor.u32 %v1260, %v1261
    %v1263 = vsub.s32 4294967266, %v1258
    %v1264 = vadd.s32 %v1263, 127
    %v1265 = vshll.u32 %v1264, 23
    %v1266 = vor.u32 4788187, %v1265
    %v1267 = vand.u32 2147483647, %v1266
    %v1269 = vcvt.s32.f32 %v1262
    %v1270 = vmul.f32 %v1269, %v1267
    %v1271 = vxor.u32 %v1270, 2147483648
    %v1272 = vsel %vm1189, %v1271, %v1270
    %v1273 = vsub.s32 4, %v1249
    %v1274 = vsel %vm1189, %v1273, %v1249
    %v1275 = vsel %vm1188, %v874, %v1272
    %v1276 = vsel %vm1188, 0, %v1274
    %v1277 = vcosq.f32.pop %v1275
    %v1278 = vsinq.f32.pop %v1275
    %vm1279 = vweird.f32 %v874
    %v1280 = vadd.s32 %v1276, 3
    %v1281 = vand.u32 %v1280, 3
    %vm1282 = vcmp.lt.s32.totalorder %v1281, 2
    %vm1283 = vcmp.eq.s32.totalorder %v1281, 0
    %v1284 = vxor.u32 %v1278, 2147483648
    %v1285 = vsel %vm1283, %v1277, %v1284
    %vm1286 = vcmp.eq.s32.totalorder %v1281, 2
    %v1287 = vxor.u32 %v1277, 2147483648
    %v1288 = vsel %vm1286, %v1287, %v1278
    %v1289 = vsel %vm1282, %v1285, %v1288
    %v1290 = vsel %vm1279, nan, %v1289
    %s1291 = scalar_lea.vmem [#allocation5], 64
    %1292 = vst [vmem:[%s1291] sm:$0xff] %v978
    %1293 = vst [vmem:[%s1291 + $0x8] sm:$0xff] %v1082
    %1294 = vst [vmem:[%s1291 + $0x10] sm:$0xff] %v1186
    %1295 = vst [vmem:[%s1291 + $0x18] sm:$0xff] %v1290
    %v1296 = vand.u32 2147483647, %v871
    %vm1297 = vcmp.le.f32.partialorder %v1296, 0.7853982
    %vm1298 = vcmp.lt.s32.totalorder %v871, 0
    %v1299 = vand.u32 %v871, 2139095040
    %v1300 = vshrl.u32 %v1299, 23
    %v1301 = vsub.s32 %v1300, 127
    %v1302 = vand.u32 2147483647, %v871
    %v1303 = vand.u32 %v1302, 8388607
    %v1304 = vor.u32 %v1303, 8388608
    %v1305 = vsub.s32 0, %v1304
    %v1306 = vadd.s32 %v1301, 1
    %vm1307 = vcmp.gt.s32.totalorder %v1306, 0
    %v1308 = vsel %vm1307, %v1306, 0
    %v1309 = vshrl.u32 %v1308, 5
    %v1310 = vand.u32 %v1308, 31
    %v1311 = vsub.s32 32, %v1310
    %v1312 = vshrl.u32 683565275, %v1311
    %v1313 = vshll.u32 683565275, %v1310
    %v1314 = vshrl.u32 2475754826, %v1311
    %v1315 = vor.u32 %v1313, %v1314
    %v1316 = vshll.u32 2475754826, %v1310
    %v1317 = vshrl.u32 2131351028, %v1311
    %v1318 = vor.u32 %v1316, %v1317
    %v1319 = vshll.u32 2131351028, %v1310
    %v1320 = vshrl.u32 2102212464, %v1311
    %v1321 = vor.u32 %v1319, %v1320
    %v1322 = vshll.u32 2102212464, %v1310
    %v1323 = vshrl.u32 920167782, %v1311
    %v1324 = vor.u32 %v1322, %v1323
    %v1325 = vshll.u32 920167782, %v1310
    %v1326 = vshrl.u32 1326507024, %v1311
    %v1327 = vor.u32 %v1325, %v1326
    %vm1328 = vcmp.lt.s32.totalorder %v1309, 1
    %vm1329 = vcmp.lt.s32.totalorder %v1309, 2
    %vm1330 = vcmp.lt.s32.totalorder %v1309, 3
    %vm1331 = vcmp.lt.s32.totalorder %v1309, 4
    %v1332 = vsel %vm1328, %v1312, %v1315
    %v1333 = vsel %vm1331, %v1321, 2102212464
    %v1334 = vsel %vm1330, %v1318, %v1333
    %v1335 = vsel %vm1329, %v1332, %v1334
    %v1336 = vsel %vm1328, %v1315, %v1318
    %v1337 = vsel %vm1331, %v1324, 920167782
    %v1338 = vsel %vm1330, %v1321, %v1337
    %v1339 = vsel %vm1329, %v1336, %v1338
    %v1340 = vsel %vm1328, %v1318, %v1321
    %v1341 = vsel %vm1331, %v1327, 1326507024
    %v1342 = vsel %vm1330, %v1324, %v1341
    %v1343 = vsel %vm1329, %v1340, %v1342
    %v1344 = vshll.u32 %v1304, 8
    %v1345 = vmul.u32.u64.compose %v1344, %v1343
    %v1346 = vextract.low.u32 %v1345
    %v1347 = vextract.high.u32 %v1345
    %v1348 = vmul.u32.u64.compose %v1344, %v1339
    %v1349 = vextract.low.u32 %v1348
    %v1350 = vextract.high.u32 %v1348
    %v1351 = vmul.u32 %v1344, %v1335
    %v1352 = vadd.s32 %v1347, %v1349
    %vm1353 = vc.u32 %v1347, %v1349
    %v1354 = vadd.s32 %v1350, 1
    %v1355 = vsel %vm1353, %v1354, %v1350
    %v1356 = vadd.s32 %v1351, %v1355
    %v1357 = vadd.s32 %v1356, 536870912
    %v1358 = vshrl.u32 %v1357, 30
    %v1359 = vshll.u32 %v1358, 30
    %v1360 = vsub.s32 %v1356, %v1359
    %vm1361 = vcmp.lt.s32.totalorder %v1360, 0
    %v1362 = vsub.s32 0, %v1360
    %v1363 = vsel %vm1361, %v1362, %v1360
    %v1364 = vclz %v1363
    %v1365 = vsub.s32 %v1364, 2
    %vm1366 = vcmp.gt.s32.totalorder 0, %v1365
    %v1367 = vsel %vm1366, 0, %v1365
    %v1368 = vsub.s32 32, %v1367
    %v1369 = vshll.u32 %v1360, %v1367
    %v1370 = vshrl.u32 %v1352, %v1368
    %v1371 = vor.u32 %v1369, %v1370
    %v1372 = vsub.s32 4294967266, %v1367
    %v1373 = vadd.s32 %v1372, 127
    %v1374 = vshll.u32 %v1373, 23
    %v1375 = vor.u32 4788187, %v1374
    %v1376 = vand.u32 2147483647, %v1375
    %v1378 = vcvt.s32.f32 %v1371
    %v1379 = vmul.f32 %v1378, %v1376
    %v1380 = vxor.u32 %v1379, 2147483648
    %v1381 = vsel %vm1298, %v1380, %v1379
    %v1382 = vsub.s32 4, %v1358
    %v1383 = vsel %vm1298, %v1382, %v1358
    %v1384 = vsel %vm1297, %v871, %v1381
    %v1385 = vsel %vm1297, 0, %v1383
    %v1386 = vcosq.f32.pop %v1384
    %v1387 = vsinq.f32.pop %v1384
    %vm1388 = vweird.f32 %v871
    %v1389 = vand.u32 %v1385, 3
    %vm1390 = vcmp.lt.s32.totalorder %v1389, 2
    %vm1391 = vcmp.eq.s32.totalorder %v1389, 0
    %v1392 = vxor.u32 %v1387, 2147483648
    %v1393 = vsel %vm1391, %v1386, %v1392
    %vm1394 = vcmp.eq.s32.totalorder %v1389, 2
    %v1395 = vxor.u32 %v1386, 2147483648
    %v1396 = vsel %vm1394, %v1395, %v1387
    %v1397 = vsel %vm1390, %v1393, %v1396
    %v1398 = vsel %vm1388, nan, %v1397
    %v1399 = vand.u32 2147483647, %v872
    %vm1400 = vcmp.le.f32.partialorder %v1399, 0.7853982
    %vm1401 = vcmp.lt.s32.totalorder %v872, 0
    %v1402 = vand.u32 %v872, 2139095040
    %v1403 = vshrl.u32 %v1402, 23
    %v1404 = vsub.s32 %v1403, 127
    %v1405 = vand.u32 2147483647, %v872
    %v1406 = vand.u32 %v1405, 8388607
    %v1407 = vor.u32 %v1406, 8388608
    %v1408 = vsub.s32 0, %v1407
    %v1409 = vadd.s32 %v1404, 1
    %vm1410 = vcmp.gt.s32.totalorder %v1409, 0
    %v1411 = vsel %vm1410, %v1409, 0
    %v1412 = vshrl.u32 %v1411, 5
    %v1413 = vand.u32 %v1411, 31
    %v1414 = vsub.s32 32, %v1413
    %v1415 = vshrl.u32 683565275, %v1414
    %v1416 = vshll.u32 683565275, %v1413
    %v1417 = vshrl.u32 2475754826, %v1414
    %v1418 = vor.u32 %v1416, %v1417
    %v1419 = vshll.u32 2475754826, %v1413
    %v1420 = vshrl.u32 2131351028, %v1414
    %v1421 = vor.u32 %v1419, %v1420
    %v1422 = vshll.u32 2131351028, %v1413
    %v1423 = vshrl.u32 2102212464, %v1414
    %v1424 = vor.u32 %v1422, %v1423
    %v1425 = vshll.u32 2102212464, %v1413
    %v1426 = vshrl.u32 920167782, %v1414
    %v1427 = vor.u32 %v1425, %v1426
    %v1428 = vshll.u32 920167782, %v1413
    %v1429 = vshrl.u32 1326507024, %v1414
    %v1430 = vor.u32 %v1428, %v1429
    %vm1431 = vcmp.lt.s32.totalorder %v1412, 1
    %vm1432 = vcmp.lt.s32.totalorder %v1412, 2
    %vm1433 = vcmp.lt.s32.totalorder %v1412, 3
    %vm1434 = vcmp.lt.s32.totalorder %v1412, 4
    %v1435 = vsel %vm1431, %v1415, %v1418
    %v1436 = vsel %vm1434, %v1424, 2102212464
    %v1437 = vsel %vm1433, %v1421, %v1436
    %v1438 = vsel %vm1432, %v1435, %v1437
    %v1439 = vsel %vm1431, %v1418, %v1421
    %v1440 = vsel %vm1434, %v1427, 920167782
    %v1441 = vsel %vm1433, %v1424, %v1440
    %v1442 = vsel %vm1432, %v1439, %v1441
    %v1443 = vsel %vm1431, %v1421, %v1424
    %v1444 = vsel %vm1434, %v1430, 1326507024
    %v1445 = vsel %vm1433, %v1427, %v1444
    %v1446 = vsel %vm1432, %v1443, %v1445
    %v1447 = vshll.u32 %v1407, 8
    %v1448 = vmul.u32.u64.compose %v1447, %v1446
    %v1449 = vextract.low.u32 %v1448
    %v1450 = vextract.high.u32 %v1448
    %v1451 = vmul.u32.u64.compose %v1447, %v1442
    %v1452 = vextract.low.u32 %v1451
    %v1453 = vextract.high.u32 %v1451
    %v1454 = vmul.u32 %v1447, %v1438
    %v1455 = vadd.s32 %v1450, %v1452
    %vm1456 = vc.u32 %v1450, %v1452
    %v1457 = vadd.s32 %v1453, 1
    %v1458 = vsel %vm1456, %v1457, %v1453
    %v1459 = vadd.s32 %v1454, %v1458
    %v1460 = vadd.s32 %v1459, 536870912
    %v1461 = vshrl.u32 %v1460, 30
    %v1462 = vshll.u32 %v1461, 30
    %v1463 = vsub.s32 %v1459, %v1462
    %vm1464 = vcmp.lt.s32.totalorder %v1463, 0
    %v1465 = vsub.s32 0, %v1463
    %v1466 = vsel %vm1464, %v1465, %v1463
    %v1467 = vclz %v1466
    %v1468 = vsub.s32 %v1467, 2
    %vm1469 = vcmp.gt.s32.totalorder 0, %v1468
    %v1470 = vsel %vm1469, 0, %v1468
    %v1471 = vsub.s32 32, %v1470
    %v1472 = vshll.u32 %v1463, %v1470
    %v1473 = vshrl.u32 %v1455, %v1471
    %v1474 = vor.u32 %v1472, %v1473
    %v1475 = vsub.s32 4294967266, %v1470
    %v1476 = vadd.s32 %v1475, 127
    %v1477 = vshll.u32 %v1476, 23
    %v1478 = vor.u32 4788187, %v1477
    %v1479 = vand.u32 2147483647, %v1478
    %v1481 = vcvt.s32.f32 %v1474
    %v1482 = vmul.f32 %v1481, %v1479
    %v1483 = vxor.u32 %v1482, 2147483648
    %v1484 = vsel %vm1401, %v1483, %v1482
    %v1485 = vsub.s32 4, %v1461
    %v1486 = vsel %vm1401, %v1485, %v1461
    %v1487 = vsel %vm1400, %v872, %v1484
    %v1488 = vsel %vm1400, 0, %v1486
    %v1489 = vcosq.f32.pop %v1487
    %v1490 = vsinq.f32.pop %v1487
    %vm1491 = vweird.f32 %v872
    %v1492 = vand.u32 %v1488, 3
    %vm1493 = vcmp.lt.s32.totalorder %v1492, 2
    %vm1494 = vcmp.eq.s32.totalorder %v1492, 0
    %v1495 = vxor.u32 %v1490, 2147483648
    %v1496 = vsel %vm1494, %v1489, %v1495
    %vm1497 = vcmp.eq.s32.totalorder %v1492, 2
    %v1498 = vxor.u32 %v1489, 2147483648
    %v1499 = vsel %vm1497, %v1498, %v1490
    %v1500 = vsel %vm1493, %v1496, %v1499
    %v1501 = vsel %vm1491, nan, %v1500
    %v1502 = vand.u32 2147483647, %v873
    %vm1503 = vcmp.le.f32.partialorder %v1502, 0.7853982
    %vm1504 = vcmp.lt.s32.totalorder %v873, 0
    %v1505 = vand.u32 %v873, 2139095040
    %v1506 = vshrl.u32 %v1505, 23
    %v1507 = vsub.s32 %v1506, 127
    %v1508 = vand.u32 2147483647, %v873
    %v1509 = vand.u32 %v1508, 8388607
    %v1510 = vor.u32 %v1509, 8388608
    %v1511 = vsub.s32 0, %v1510
    %v1512 = vadd.s32 %v1507, 1
    %vm1513 = vcmp.gt.s32.totalorder %v1512, 0
    %v1514 = vsel %vm1513, %v1512, 0
    %v1515 = vshrl.u32 %v1514, 5
    %v1516 = vand.u32 %v1514, 31
    %v1517 = vsub.s32 32, %v1516
    %v1518 = vshrl.u32 683565275, %v1517
    %v1519 = vshll.u32 683565275, %v1516
    %v1520 = vshrl.u32 2475754826, %v1517
    %v1521 = vor.u32 %v1519, %v1520
    %v1522 = vshll.u32 2475754826, %v1516
    %v1523 = vshrl.u32 2131351028, %v1517
    %v1524 = vor.u32 %v1522, %v1523
    %v1525 = vshll.u32 2131351028, %v1516
    %v1526 = vshrl.u32 2102212464, %v1517
    %v1527 = vor.u32 %v1525, %v1526
    %v1528 = vshll.u32 2102212464, %v1516
    %v1529 = vshrl.u32 920167782, %v1517
    %v1530 = vor.u32 %v1528, %v1529
    %v1531 = vshll.u32 920167782, %v1516
    %v1532 = vshrl.u32 1326507024, %v1517
    %v1533 = vor.u32 %v1531, %v1532
    %vm1534 = vcmp.lt.s32.totalorder %v1515, 1
    %vm1535 = vcmp.lt.s32.totalorder %v1515, 2
    %vm1536 = vcmp.lt.s32.totalorder %v1515, 3
    %vm1537 = vcmp.lt.s32.totalorder %v1515, 4
    %v1538 = vsel %vm1534, %v1518, %v1521
    %v1539 = vsel %vm1537, %v1527, 2102212464
    %v1540 = vsel %vm1536, %v1524, %v1539
    %v1541 = vsel %vm1535, %v1538, %v1540
    %v1542 = vsel %vm1534, %v1521, %v1524
    %v1543 = vsel %vm1537, %v1530, 920167782
    %v1544 = vsel %vm1536, %v1527, %v1543
    %v1545 = vsel %vm1535, %v1542, %v1544
    %v1546 = vsel %vm1534, %v1524, %v1527
    %v1547 = vsel %vm1537, %v1533, 1326507024
    %v1548 = vsel %vm1536, %v1530, %v1547
    %v1549 = vsel %vm1535, %v1546, %v1548
    %v1550 = vshll.u32 %v1510, 8
    %v1551 = vmul.u32.u64.compose %v1550, %v1549
    %v1552 = vextract.low.u32 %v1551
    %v1553 = vextract.high.u32 %v1551
    %v1554 = vmul.u32.u64.compose %v1550, %v1545
    %v1555 = vextract.low.u32 %v1554
    %v1556 = vextract.high.u32 %v1554
    %v1557 = vmul.u32 %v1550, %v1541
    %v1558 = vadd.s32 %v1553, %v1555
    %vm1559 = vc.u32 %v1553, %v1555
    %v1560 = vadd.s32 %v1556, 1
    %v1561 = vsel %vm1559, %v1560, %v1556
    %v1562 = vadd.s32 %v1557, %v1561
    %v1563 = vadd.s32 %v1562, 536870912
    %v1564 = vshrl.u32 %v1563, 30
    %v1565 = vshll.u32 %v1564, 30
    %v1566 = vsub.s32 %v1562, %v1565
    %vm1567 = vcmp.lt.s32.totalorder %v1566, 0
    %v1568 = vsub.s32 0, %v1566
    %v1569 = vsel %vm1567, %v1568, %v1566
    %v1570 = vclz %v1569
    %v1571 = vsub.s32 %v1570, 2
    %vm1572 = vcmp.gt.s32.totalorder 0, %v1571
    %v1573 = vsel %vm1572, 0, %v1571
    %v1574 = vsub.s32 32, %v1573
    %v1575 = vshll.u32 %v1566, %v1573
    %v1576 = vshrl.u32 %v1558, %v1574
    %v1577 = vor.u32 %v1575, %v1576
    %v1578 = vsub.s32 4294967266, %v1573
    %v1579 = vadd.s32 %v1578, 127
    %v1580 = vshll.u32 %v1579, 23
    %v1581 = vor.u32 4788187, %v1580
    %v1582 = vand.u32 2147483647, %v1581
    %v1584 = vcvt.s32.f32 %v1577
    %v1585 = vmul.f32 %v1584, %v1582
    %v1586 = vxor.u32 %v1585, 2147483648
    %v1587 = vsel %vm1504, %v1586, %v1585
    %v1588 = vsub.s32 4, %v1564
    %v1589 = vsel %vm1504, %v1588, %v1564
    %v1590 = vsel %vm1503, %v873, %v1587
    %v1591 = vsel %vm1503, 0, %v1589
    %v1592 = vcosq.f32.pop %v1590
    %v1593 = vsinq.f32.pop %v1590
    %vm1594 = vweird.f32 %v873
    %v1595 = vand.u32 %v1591, 3
    %vm1596 = vcmp.lt.s32.totalorder %v1595, 2
    %vm1597 = vcmp.eq.s32.totalorder %v1595, 0
    %v1598 = vxor.u32 %v1593, 2147483648
    %v1599 = vsel %vm1597, %v1592, %v1598
    %vm1600 = vcmp.eq.s32.totalorder %v1595, 2
    %v1601 = vxor.u32 %v1592, 2147483648
    %v1602 = vsel %vm1600, %v1601, %v1593
    %v1603 = vsel %vm1596, %v1599, %v1602
    %v1604 = vsel %vm1594, nan, %v1603
    %v1605 = vand.u32 2147483647, %v874
    %vm1606 = vcmp.le.f32.partialorder %v1605, 0.7853982
    %vm1607 = vcmp.lt.s32.totalorder %v874, 0
    %v1608 = vand.u32 %v874, 2139095040
    %v1609 = vshrl.u32 %v1608, 23
    %v1610 = vsub.s32 %v1609, 127
    %v1611 = vand.u32 2147483647, %v874
    %v1612 = vand.u32 %v1611, 8388607
    %v1613 = vor.u32 %v1612, 8388608
    %v1614 = vsub.s32 0, %v1613
    %v1615 = vadd.s32 %v1610, 1
    %vm1616 = vcmp.gt.s32.totalorder %v1615, 0
    %v1617 = vsel %vm1616, %v1615, 0
    %v1618 = vshrl.u32 %v1617, 5
    %v1619 = vand.u32 %v1617, 31
    %v1620 = vsub.s32 32, %v1619
    %v1621 = vshrl.u32 683565275, %v1620
    %v1622 = vshll.u32 683565275, %v1619
    %v1623 = vshrl.u32 2475754826, %v1620
    %v1624 = vor.u32 %v1622, %v1623
    %v1625 = vshll.u32 2475754826, %v1619
    %v1626 = vshrl.u32 2131351028, %v1620
    %v1627 = vor.u32 %v1625, %v1626
    %v1628 = vshll.u32 2131351028, %v1619
    %v1629 = vshrl.u32 2102212464, %v1620
    %v1630 = vor.u32 %v1628, %v1629
    %v1631 = vshll.u32 2102212464, %v1619
    %v1632 = vshrl.u32 920167782, %v1620
    %v1633 = vor.u32 %v1631, %v1632
    %v1634 = vshll.u32 920167782, %v1619
    %v1635 = vshrl.u32 1326507024, %v1620
    %v1636 = vor.u32 %v1634, %v1635
    %vm1637 = vcmp.lt.s32.totalorder %v1618, 1
    %vm1638 = vcmp.lt.s32.totalorder %v1618, 2
    %vm1639 = vcmp.lt.s32.totalorder %v1618, 3
    %vm1640 = vcmp.lt.s32.totalorder %v1618, 4
    %v1641 = vsel %vm1637, %v1621, %v1624
    %v1642 = vsel %vm1640, %v1630, 2102212464
    %v1643 = vsel %vm1639, %v1627, %v1642
    %v1644 = vsel %vm1638, %v1641, %v1643
    %v1645 = vsel %vm1637, %v1624, %v1627
    %v1646 = vsel %vm1640, %v1633, 920167782
    %v1647 = vsel %vm1639, %v1630, %v1646
    %v1648 = vsel %vm1638, %v1645, %v1647
    %v1649 = vsel %vm1637, %v1627, %v1630
    %v1650 = vsel %vm1640, %v1636, 1326507024
    %v1651 = vsel %vm1639, %v1633, %v1650
    %v1652 = vsel %vm1638, %v1649, %v1651
    %v1653 = vshll.u32 %v1613, 8
    %v1654 = vmul.u32.u64.compose %v1653, %v1652
    %v1655 = vextract.low.u32 %v1654
    %v1656 = vextract.high.u32 %v1654
    %v1657 = vmul.u32.u64.compose %v1653, %v1648
    %v1658 = vextract.low.u32 %v1657
    %v1659 = vextract.high.u32 %v1657
    %v1660 = vmul.u32 %v1653, %v1644
    %v1661 = vadd.s32 %v1656, %v1658
    %vm1662 = vc.u32 %v1656, %v1658
    %v1663 = vadd.s32 %v1659, 1
    %v1664 = vsel %vm1662, %v1663, %v1659
    %v1665 = vadd.s32 %v1660, %v1664
    %v1666 = vadd.s32 %v1665, 536870912
    %v1667 = vshrl.u32 %v1666, 30
    %v1668 = vshll.u32 %v1667, 30
    %v1669 = vsub.s32 %v1665, %v1668
    %vm1670 = vcmp.lt.s32.totalorder %v1669, 0
    %v1671 = vsub.s32 0, %v1669
    %v1672 = vsel %vm1670, %v1671, %v1669
    %v1673 = vclz %v1672
    %v1674 = vsub.s32 %v1673, 2
    %vm1675 = vcmp.gt.s32.totalorder 0, %v1674
    %v1676 = vsel %vm1675, 0, %v1674
    %v1677 = vsub.s32 32, %v1676
    %v1678 = vshll.u32 %v1669, %v1676
    %v1679 = vshrl.u32 %v1661, %v1677
    %v1680 = vor.u32 %v1678, %v1679
    %v1681 = vsub.s32 4294967266, %v1676
    %v1682 = vadd.s32 %v1681, 127
    %v1683 = vshll.u32 %v1682, 23
    %v1684 = vor.u32 4788187, %v1683
    %v1685 = vand.u32 2147483647, %v1684
    %v1687 = vcvt.s32.f32 %v1680
    %v1688 = vmul.f32 %v1687, %v1685
    %v1689 = vxor.u32 %v1688, 2147483648
    %v1690 = vsel %vm1607, %v1689, %v1688
    %v1691 = vsub.s32 4, %v1667
    %v1692 = vsel %vm1607, %v1691, %v1667
    %v1693 = vsel %vm1606, %v874, %v1690
    %v1694 = vsel %vm1606, 0, %v1692
    %v1695 = vcosq.f32.pop %v1693
    %v1696 = vsinq.f32.pop %v1693
    %vm1697 = vweird.f32 %v874
    %v1698 = vand.u32 %v1694, 3
    %vm1699 = vcmp.lt.s32.totalorder %v1698, 2
    %vm1700 = vcmp.eq.s32.totalorder %v1698, 0
    %v1701 = vxor.u32 %v1696, 2147483648
    %v1702 = vsel %vm1700, %v1695, %v1701
    %vm1703 = vcmp.eq.s32.totalorder %v1698, 2
    %v1704 = vxor.u32 %v1695, 2147483648
    %v1705 = vsel %vm1703, %v1704, %v1696
    %v1706 = vsel %vm1699, %v1702, %v1705
    %v1707 = vsel %vm1697, nan, %v1706
    %s1708 = scalar_lea.vmem [#allocation5], 192
    %1709 = vst [vmem:[%s1708] sm:$0xff] %v1398
    %1710 = vst [vmem:[%s1708 + $0x8] sm:$0xff] %v1501
    %1711 = vst [vmem:[%s1708 + $0x10] sm:$0xff] %v1604
    %1712 = vst [vmem:[%s1708 + $0x18] sm:$0xff] %v1707
    %v1713 = vmul.f32 %v29, 4.0
    %v1714 = vmul.f32 %v30, 4.0
    %v1715 = vmul.f32 %v31, 4.0
    %v1716 = vmul.f32 %v32, 4.0
    %v1717 = vand.u32 2147483647, %v1713
    %vm1718 = vcmp.le.f32.partialorder %v1717, 0.7853982
    %vm1719 = vcmp.lt.s32.totalorder %v1713, 0
    %v1720 = vand.u32 %v1713, 2139095040
    %v1721 = vshrl.u32 %v1720, 23
    %v1722 = vsub.s32 %v1721, 127
    %v1723 = vand.u32 2147483647, %v1713
    %v1724 = vand.u32 %v1723, 8388607
    %v1725 = vor.u32 %v1724, 8388608
    %v1726 = vsub.s32 0, %v1725
    %v1727 = vadd.s32 %v1722, 1
    %vm1728 = vcmp.gt.s32.totalorder %v1727, 0
    %v1729 = vsel %vm1728, %v1727, 0
    %v1730 = vshrl.u32 %v1729, 5
    %v1731 = vand.u32 %v1729, 31
    %v1732 = vsub.s32 32, %v1731
    %v1733 = vshrl.u32 683565275, %v1732
    %v1734 = vshll.u32 683565275, %v1731
    %v1735 = vshrl.u32 2475754826, %v1732
    %v1736 = vor.u32 %v1734, %v1735
    %v1737 = vshll.u32 2475754826, %v1731
    %v1738 = vshrl.u32 2131351028, %v1732
    %v1739 = vor.u32 %v1737, %v1738
    %v1740 = vshll.u32 2131351028, %v1731
    %v1741 = vshrl.u32 2102212464, %v1732
    %v1742 = vor.u32 %v1740, %v1741
    %v1743 = vshll.u32 2102212464, %v1731
    %v1744 = vshrl.u32 920167782, %v1732
    %v1745 = vor.u32 %v1743, %v1744
    %v1746 = vshll.u32 920167782, %v1731
    %v1747 = vshrl.u32 1326507024, %v1732
    %v1748 = vor.u32 %v1746, %v1747
    %vm1749 = vcmp.lt.s32.totalorder %v1730, 1
    %vm1750 = vcmp.lt.s32.totalorder %v1730, 2
    %vm1751 = vcmp.lt.s32.totalorder %v1730, 3
    %vm1752 = vcmp.lt.s32.totalorder %v1730, 4
    %v1753 = vsel %vm1749, %v1733, %v1736
    %v1754 = vsel %vm1752, %v1742, 2102212464
    %v1755 = vsel %vm1751, %v1739, %v1754
    %v1756 = vsel %vm1750, %v1753, %v1755
    %v1757 = vsel %vm1749, %v1736, %v1739
    %v1758 = vsel %vm1752, %v1745, 920167782
    %v1759 = vsel %vm1751, %v1742, %v1758
    %v1760 = vsel %vm1750, %v1757, %v1759
    %v1761 = vsel %vm1749, %v1739, %v1742
    %v1762 = vsel %vm1752, %v1748, 1326507024
    %v1763 = vsel %vm1751, %v1745, %v1762
    %v1764 = vsel %vm1750, %v1761, %v1763
    %v1765 = vshll.u32 %v1725, 8
    %v1766 = vmul.u32.u64.compose %v1765, %v1764
    %v1767 = vextract.low.u32 %v1766
    %v1768 = vextract.high.u32 %v1766
    %v1769 = vmul.u32.u64.compose %v1765, %v1760
    %v1770 = vextract.low.u32 %v1769
    %v1771 = vextract.high.u32 %v1769
    %v1772 = vmul.u32 %v1765, %v1756
    %v1773 = vadd.s32 %v1768, %v1770
    %vm1774 = vc.u32 %v1768, %v1770
    %v1775 = vadd.s32 %v1771, 1
    %v1776 = vsel %vm1774, %v1775, %v1771
    %v1777 = vadd.s32 %v1772, %v1776
    %v1778 = vadd.s32 %v1777, 536870912
    %v1779 = vshrl.u32 %v1778, 30
    %v1780 = vshll.u32 %v1779, 30
    %v1781 = vsub.s32 %v1777, %v1780
    %vm1782 = vcmp.lt.s32.totalorder %v1781, 0
    %v1783 = vsub.s32 0, %v1781
    %v1784 = vsel %vm1782, %v1783, %v1781
    %v1785 = vclz %v1784
    %v1786 = vsub.s32 %v1785, 2
    %vm1787 = vcmp.gt.s32.totalorder 0, %v1786
    %v1788 = vsel %vm1787, 0, %v1786
    %v1789 = vsub.s32 32, %v1788
    %v1790 = vshll.u32 %v1781, %v1788
    %v1791 = vshrl.u32 %v1773, %v1789
    %v1792 = vor.u32 %v1790, %v1791
    %v1793 = vsub.s32 4294967266, %v1788
    %v1794 = vadd.s32 %v1793, 127
    %v1795 = vshll.u32 %v1794, 23
    %v1796 = vor.u32 4788187, %v1795
    %v1797 = vand.u32 2147483647, %v1796
    %v1799 = vcvt.s32.f32 %v1792
    %v1800 = vmul.f32 %v1799, %v1797
    %v1801 = vxor.u32 %v1800, 2147483648
    %v1802 = vsel %vm1719, %v1801, %v1800
    %v1803 = vsub.s32 4, %v1779
    %v1804 = vsel %vm1719, %v1803, %v1779
    %v1805 = vsel %vm1718, %v1713, %v1802
    %v1806 = vsel %vm1718, 0, %v1804
    %v1807 = vcosq.f32.pop %v1805
    %v1808 = vsinq.f32.pop %v1805
    %vm1809 = vweird.f32 %v1713
    %v1810 = vadd.s32 %v1806, 3
    %v1811 = vand.u32 %v1810, 3
    %vm1812 = vcmp.lt.s32.totalorder %v1811, 2
    %vm1813 = vcmp.eq.s32.totalorder %v1811, 0
    %v1814 = vxor.u32 %v1808, 2147483648
    %v1815 = vsel %vm1813, %v1807, %v1814
    %vm1816 = vcmp.eq.s32.totalorder %v1811, 2
    %v1817 = vxor.u32 %v1807, 2147483648
    %v1818 = vsel %vm1816, %v1817, %v1808
    %v1819 = vsel %vm1812, %v1815, %v1818
    %v1820 = vsel %vm1809, nan, %v1819
    %v1821 = vand.u32 2147483647, %v1714
    %vm1822 = vcmp.le.f32.partialorder %v1821, 0.7853982
    %vm1823 = vcmp.lt.s32.totalorder %v1714, 0
    %v1824 = vand.u32 %v1714, 2139095040
    %v1825 = vshrl.u32 %v1824, 23
    %v1826 = vsub.s32 %v1825, 127
    %v1827 = vand.u32 2147483647, %v1714
    %v1828 = vand.u32 %v1827, 8388607
    %v1829 = vor.u32 %v1828, 8388608
    %v1830 = vsub.s32 0, %v1829
    %v1831 = vadd.s32 %v1826, 1
    %vm1832 = vcmp.gt.s32.totalorder %v1831, 0
    %v1833 = vsel %vm1832, %v1831, 0
    %v1834 = vshrl.u32 %v1833, 5
    %v1835 = vand.u32 %v1833, 31
    %v1836 = vsub.s32 32, %v1835
    %v1837 = vshrl.u32 683565275, %v1836
    %v1838 = vshll.u32 683565275, %v1835
    %v1839 = vshrl.u32 2475754826, %v1836
    %v1840 = vor.u32 %v1838, %v1839
    %v1841 = vshll.u32 2475754826, %v1835
    %v1842 = vshrl.u32 2131351028, %v1836
    %v1843 = vor.u32 %v1841, %v1842
    %v1844 = vshll.u32 2131351028, %v1835
    %v1845 = vshrl.u32 2102212464, %v1836
    %v1846 = vor.u32 %v1844, %v1845
    %v1847 = vshll.u32 2102212464, %v1835
    %v1848 = vshrl.u32 920167782, %v1836
    %v1849 = vor.u32 %v1847, %v1848
    %v1850 = vshll.u32 920167782, %v1835
    %v1851 = vshrl.u32 1326507024, %v1836
    %v1852 = vor.u32 %v1850, %v1851
    %vm1853 = vcmp.lt.s32.totalorder %v1834, 1
    %vm1854 = vcmp.lt.s32.totalorder %v1834, 2
    %vm1855 = vcmp.lt.s32.totalorder %v1834, 3
    %vm1856 = vcmp.lt.s32.totalorder %v1834, 4
    %v1857 = vsel %vm1853, %v1837, %v1840
    %v1858 = vsel %vm1856, %v1846, 2102212464
    %v1859 = vsel %vm1855, %v1843, %v1858
    %v1860 = vsel %vm1854, %v1857, %v1859
    %v1861 = vsel %vm1853, %v1840, %v1843
    %v1862 = vsel %vm1856, %v1849, 920167782
    %v1863 = vsel %vm1855, %v1846, %v1862
    %v1864 = vsel %vm1854, %v1861, %v1863
    %v1865 = vsel %vm1853, %v1843, %v1846
    %v1866 = vsel %vm1856, %v1852, 1326507024
    %v1867 = vsel %vm1855, %v1849, %v1866
    %v1868 = vsel %vm1854, %v1865, %v1867
    %v1869 = vshll.u32 %v1829, 8
    %v1870 = vmul.u32.u64.compose %v1869, %v1868
    %v1871 = vextract.low.u32 %v1870
    %v1872 = vextract.high.u32 %v1870
    %v1873 = vmul.u32.u64.compose %v1869, %v1864
    %v1874 = vextract.low.u32 %v1873
    %v1875 = vextract.high.u32 %v1873
    %v1876 = vmul.u32 %v1869, %v1860
    %v1877 = vadd.s32 %v1872, %v1874
    %vm1878 = vc.u32 %v1872, %v1874
    %v1879 = vadd.s32 %v1875, 1
    %v1880 = vsel %vm1878, %v1879, %v1875
    %v1881 = vadd.s32 %v1876, %v1880
    %v1882 = vadd.s32 %v1881, 536870912
    %v1883 = vshrl.u32 %v1882, 30
    %v1884 = vshll.u32 %v1883, 30
    %v1885 = vsub.s32 %v1881, %v1884
    %vm1886 = vcmp.lt.s32.totalorder %v1885, 0
    %v1887 = vsub.s32 0, %v1885
    %v1888 = vsel %vm1886, %v1887, %v1885
    %v1889 = vclz %v1888
    %v1890 = vsub.s32 %v1889, 2
    %vm1891 = vcmp.gt.s32.totalorder 0, %v1890
    %v1892 = vsel %vm1891, 0, %v1890
    %v1893 = vsub.s32 32, %v1892
    %v1894 = vshll.u32 %v1885, %v1892
    %v1895 = vshrl.u32 %v1877, %v1893
    %v1896 = vor.u32 %v1894, %v1895
    %v1897 = vsub.s32 4294967266, %v1892
    %v1898 = vadd.s32 %v1897, 127
    %v1899 = vshll.u32 %v1898, 23
    %v1900 = vor.u32 4788187, %v1899
    %v1901 = vand.u32 2147483647, %v1900
    %v1903 = vcvt.s32.f32 %v1896
    %v1904 = vmul.f32 %v1903, %v1901
    %v1905 = vxor.u32 %v1904, 2147483648
    %v1906 = vsel %vm1823, %v1905, %v1904
    %v1907 = vsub.s32 4, %v1883
    %v1908 = vsel %vm1823, %v1907, %v1883
    %v1909 = vsel %vm1822, %v1714, %v1906
    %v1910 = vsel %vm1822, 0, %v1908
    %v1911 = vcosq.f32.pop %v1909
    %v1912 = vsinq.f32.pop %v1909
    %vm1913 = vweird.f32 %v1714
    %v1914 = vadd.s32 %v1910, 3
    %v1915 = vand.u32 %v1914, 3
    %vm1916 = vcmp.lt.s32.totalorder %v1915, 2
    %vm1917 = vcmp.eq.s32.totalorder %v1915, 0
    %v1918 = vxor.u32 %v1912, 2147483648
    %v1919 = vsel %vm1917, %v1911, %v1918
    %vm1920 = vcmp.eq.s32.totalorder %v1915, 2
    %v1921 = vxor.u32 %v1911, 2147483648
    %v1922 = vsel %vm1920, %v1921, %v1912
    %v1923 = vsel %vm1916, %v1919, %v1922
    %v1924 = vsel %vm1913, nan, %v1923
    %v1925 = vand.u32 2147483647, %v1715
    %vm1926 = vcmp.le.f32.partialorder %v1925, 0.7853982
    %vm1927 = vcmp.lt.s32.totalorder %v1715, 0
    %v1928 = vand.u32 %v1715, 2139095040
    %v1929 = vshrl.u32 %v1928, 23
    %v1930 = vsub.s32 %v1929, 127
    %v1931 = vand.u32 2147483647, %v1715
    %v1932 = vand.u32 %v1931, 8388607
    %v1933 = vor.u32 %v1932, 8388608
    %v1934 = vsub.s32 0, %v1933
    %v1935 = vadd.s32 %v1930, 1
    %vm1936 = vcmp.gt.s32.totalorder %v1935, 0
    %v1937 = vsel %vm1936, %v1935, 0
    %v1938 = vshrl.u32 %v1937, 5
    %v1939 = vand.u32 %v1937, 31
    %v1940 = vsub.s32 32, %v1939
    %v1941 = vshrl.u32 683565275, %v1940
    %v1942 = vshll.u32 683565275, %v1939
    %v1943 = vshrl.u32 2475754826, %v1940
    %v1944 = vor.u32 %v1942, %v1943
    %v1945 = vshll.u32 2475754826, %v1939
    %v1946 = vshrl.u32 2131351028, %v1940
    %v1947 = vor.u32 %v1945, %v1946
    %v1948 = vshll.u32 2131351028, %v1939
    %v1949 = vshrl.u32 2102212464, %v1940
    %v1950 = vor.u32 %v1948, %v1949
    %v1951 = vshll.u32 2102212464, %v1939
    %v1952 = vshrl.u32 920167782, %v1940
    %v1953 = vor.u32 %v1951, %v1952
    %v1954 = vshll.u32 920167782, %v1939
    %v1955 = vshrl.u32 1326507024, %v1940
    %v1956 = vor.u32 %v1954, %v1955
    %vm1957 = vcmp.lt.s32.totalorder %v1938, 1
    %vm1958 = vcmp.lt.s32.totalorder %v1938, 2
    %vm1959 = vcmp.lt.s32.totalorder %v1938, 3
    %vm1960 = vcmp.lt.s32.totalorder %v1938, 4
    %v1961 = vsel %vm1957, %v1941, %v1944
    %v1962 = vsel %vm1960, %v1950, 2102212464
    %v1963 = vsel %vm1959, %v1947, %v1962
    %v1964 = vsel %vm1958, %v1961, %v1963
    %v1965 = vsel %vm1957, %v1944, %v1947
    %v1966 = vsel %vm1960, %v1953, 920167782
    %v1967 = vsel %vm1959, %v1950, %v1966
    %v1968 = vsel %vm1958, %v1965, %v1967
    %v1969 = vsel %vm1957, %v1947, %v1950
    %v1970 = vsel %vm1960, %v1956, 1326507024
    %v1971 = vsel %vm1959, %v1953, %v1970
    %v1972 = vsel %vm1958, %v1969, %v1971
    %v1973 = vshll.u32 %v1933, 8
    %v1974 = vmul.u32.u64.compose %v1973, %v1972
    %v1975 = vextract.low.u32 %v1974
    %v1976 = vextract.high.u32 %v1974
    %v1977 = vmul.u32.u64.compose %v1973, %v1968
    %v1978 = vextract.low.u32 %v1977
    %v1979 = vextract.high.u32 %v1977
    %v1980 = vmul.u32 %v1973, %v1964
    %v1981 = vadd.s32 %v1976, %v1978
    %vm1982 = vc.u32 %v1976, %v1978
    %v1983 = vadd.s32 %v1979, 1
    %v1984 = vsel %vm1982, %v1983, %v1979
    %v1985 = vadd.s32 %v1980, %v1984
    %v1986 = vadd.s32 %v1985, 536870912
    %v1987 = vshrl.u32 %v1986, 30
    %v1988 = vshll.u32 %v1987, 30
    %v1989 = vsub.s32 %v1985, %v1988
    %vm1990 = vcmp.lt.s32.totalorder %v1989, 0
    %v1991 = vsub.s32 0, %v1989
    %v1992 = vsel %vm1990, %v1991, %v1989
    %v1993 = vclz %v1992
    %v1994 = vsub.s32 %v1993, 2
    %vm1995 = vcmp.gt.s32.totalorder 0, %v1994
    %v1996 = vsel %vm1995, 0, %v1994
    %v1997 = vsub.s32 32, %v1996
    %v1998 = vshll.u32 %v1989, %v1996
    %v1999 = vshrl.u32 %v1981, %v1997
    %v2000 = vor.u32 %v1998, %v1999
    %v2001 = vsub.s32 4294967266, %v1996
    %v2002 = vadd.s32 %v2001, 127
    %v2003 = vshll.u32 %v2002, 23
    %v2004 = vor.u32 4788187, %v2003
    %v2005 = vand.u32 2147483647, %v2004
    %v2007 = vcvt.s32.f32 %v2000
    %v2008 = vmul.f32 %v2007, %v2005
    %v2009 = vxor.u32 %v2008, 2147483648
    %v2010 = vsel %vm1927, %v2009, %v2008
    %v2011 = vsub.s32 4, %v1987
    %v2012 = vsel %vm1927, %v2011, %v1987
    %v2013 = vsel %vm1926, %v1715, %v2010
    %v2014 = vsel %vm1926, 0, %v2012
    %v2015 = vcosq.f32.pop %v2013
    %v2016 = vsinq.f32.pop %v2013
    %vm2017 = vweird.f32 %v1715
    %v2018 = vadd.s32 %v2014, 3
    %v2019 = vand.u32 %v2018, 3
    %vm2020 = vcmp.lt.s32.totalorder %v2019, 2
    %vm2021 = vcmp.eq.s32.totalorder %v2019, 0
    %v2022 = vxor.u32 %v2016, 2147483648
    %v2023 = vsel %vm2021, %v2015, %v2022
    %vm2024 = vcmp.eq.s32.totalorder %v2019, 2
    %v2025 = vxor.u32 %v2015, 2147483648
    %v2026 = vsel %vm2024, %v2025, %v2016
    %v2027 = vsel %vm2020, %v2023, %v2026
    %v2028 = vsel %vm2017, nan, %v2027
    %v2029 = vand.u32 2147483647, %v1716
    %vm2030 = vcmp.le.f32.partialorder %v2029, 0.7853982
    %vm2031 = vcmp.lt.s32.totalorder %v1716, 0
    %v2032 = vand.u32 %v1716, 2139095040
    %v2033 = vshrl.u32 %v2032, 23
    %v2034 = vsub.s32 %v2033, 127
    %v2035 = vand.u32 2147483647, %v1716
    %v2036 = vand.u32 %v2035, 8388607
    %v2037 = vor.u32 %v2036, 8388608
    %v2038 = vsub.s32 0, %v2037
    %v2039 = vadd.s32 %v2034, 1
    %vm2040 = vcmp.gt.s32.totalorder %v2039, 0
    %v2041 = vsel %vm2040, %v2039, 0
    %v2042 = vshrl.u32 %v2041, 5
    %v2043 = vand.u32 %v2041, 31
    %v2044 = vsub.s32 32, %v2043
    %v2045 = vshrl.u32 683565275, %v2044
    %v2046 = vshll.u32 683565275, %v2043
    %v2047 = vshrl.u32 2475754826, %v2044
    %v2048 = vor.u32 %v2046, %v2047
    %v2049 = vshll.u32 2475754826, %v2043
    %v2050 = vshrl.u32 2131351028, %v2044
    %v2051 = vor.u32 %v2049, %v2050
    %v2052 = vshll.u32 2131351028, %v2043
    %v2053 = vshrl.u32 2102212464, %v2044
    %v2054 = vor.u32 %v2052, %v2053
    %v2055 = vshll.u32 2102212464, %v2043
    %v2056 = vshrl.u32 920167782, %v2044
    %v2057 = vor.u32 %v2055, %v2056
    %v2058 = vshll.u32 920167782, %v2043
    %v2059 = vshrl.u32 1326507024, %v2044
    %v2060 = vor.u32 %v2058, %v2059
    %vm2061 = vcmp.lt.s32.totalorder %v2042, 1
    %vm2062 = vcmp.lt.s32.totalorder %v2042, 2
    %vm2063 = vcmp.lt.s32.totalorder %v2042, 3
    %vm2064 = vcmp.lt.s32.totalorder %v2042, 4
    %v2065 = vsel %vm2061, %v2045, %v2048
    %v2066 = vsel %vm2064, %v2054, 2102212464
    %v2067 = vsel %vm2063, %v2051, %v2066
    %v2068 = vsel %vm2062, %v2065, %v2067
    %v2069 = vsel %vm2061, %v2048, %v2051
    %v2070 = vsel %vm2064, %v2057, 920167782
    %v2071 = vsel %vm2063, %v2054, %v2070
    %v2072 = vsel %vm2062, %v2069, %v2071
    %v2073 = vsel %vm2061, %v2051, %v2054
    %v2074 = vsel %vm2064, %v2060, 1326507024
    %v2075 = vsel %vm2063, %v2057, %v2074
    %v2076 = vsel %vm2062, %v2073, %v2075
    %v2077 = vshll.u32 %v2037, 8
    %v2078 = vmul.u32.u64.compose %v2077, %v2076
    %v2079 = vextract.low.u32 %v2078
    %v2080 = vextract.high.u32 %v2078
    %v2081 = vmul.u32.u64.compose %v2077, %v2072
    %v2082 = vextract.low.u32 %v2081
    %v2083 = vextract.high.u32 %v2081
    %v2084 = vmul.u32 %v2077, %v2068
    %v2085 = vadd.s32 %v2080, %v2082
    %vm2086 = vc.u32 %v2080, %v2082
    %v2087 = vadd.s32 %v2083, 1
    %v2088 = vsel %vm2086, %v2087, %v2083
    %v2089 = vadd.s32 %v2084, %v2088
    %v2090 = vadd.s32 %v2089, 536870912
    %v2091 = vshrl.u32 %v2090, 30
    %v2092 = vshll.u32 %v2091, 30
    %v2093 = vsub.s32 %v2089, %v2092
    %vm2094 = vcmp.lt.s32.totalorder %v2093, 0
    %v2095 = vsub.s32 0, %v2093
    %v2096 = vsel %vm2094, %v2095, %v2093
    %v2097 = vclz %v2096
    %v2098 = vsub.s32 %v2097, 2
    %vm2099 = vcmp.gt.s32.totalorder 0, %v2098
    %v2100 = vsel %vm2099, 0, %v2098
    %v2101 = vsub.s32 32, %v2100
    %v2102 = vshll.u32 %v2093, %v2100
    %v2103 = vshrl.u32 %v2085, %v2101
    %v2104 = vor.u32 %v2102, %v2103
    %v2105 = vsub.s32 4294967266, %v2100
    %v2106 = vadd.s32 %v2105, 127
    %v2107 = vshll.u32 %v2106, 23
    %v2108 = vor.u32 4788187, %v2107
    %v2109 = vand.u32 2147483647, %v2108
    %v2111 = vcvt.s32.f32 %v2104
    %v2112 = vmul.f32 %v2111, %v2109
    %v2113 = vxor.u32 %v2112, 2147483648
    %v2114 = vsel %vm2031, %v2113, %v2112
    %v2115 = vsub.s32 4, %v2091
    %v2116 = vsel %vm2031, %v2115, %v2091
    %v2117 = vsel %vm2030, %v1716, %v2114
    %v2118 = vsel %vm2030, 0, %v2116
    %v2119 = vcosq.f32.pop %v2117
    %v2120 = vsinq.f32.pop %v2117
    %vm2121 = vweird.f32 %v1716
    %v2122 = vadd.s32 %v2118, 3
    %v2123 = vand.u32 %v2122, 3
    %vm2124 = vcmp.lt.s32.totalorder %v2123, 2
    %vm2125 = vcmp.eq.s32.totalorder %v2123, 0
    %v2126 = vxor.u32 %v2120, 2147483648
    %v2127 = vsel %vm2125, %v2119, %v2126
    %vm2128 = vcmp.eq.s32.totalorder %v2123, 2
    %v2129 = vxor.u32 %v2119, 2147483648
    %v2130 = vsel %vm2128, %v2129, %v2120
    %v2131 = vsel %vm2124, %v2127, %v2130
    %v2132 = vsel %vm2121, nan, %v2131
    %s2133 = scalar_lea.vmem [#allocation5], 96
    %2134 = vst [vmem:[%s2133] sm:$0xff] %v1820
    %2135 = vst [vmem:[%s2133 + $0x8] sm:$0xff] %v1924
    %2136 = vst [vmem:[%s2133 + $0x10] sm:$0xff] %v2028
    %2137 = vst [vmem:[%s2133 + $0x18] sm:$0xff] %v2132
    %v2138 = vand.u32 2147483647, %v1713
    %vm2139 = vcmp.le.f32.partialorder %v2138, 0.7853982
    %vm2140 = vcmp.lt.s32.totalorder %v1713, 0
    %v2141 = vand.u32 %v1713, 2139095040
    %v2142 = vshrl.u32 %v2141, 23
    %v2143 = vsub.s32 %v2142, 127
    %v2144 = vand.u32 2147483647, %v1713
    %v2145 = vand.u32 %v2144, 8388607
    %v2146 = vor.u32 %v2145, 8388608
    %v2147 = vsub.s32 0, %v2146
    %v2148 = vadd.s32 %v2143, 1
    %vm2149 = vcmp.gt.s32.totalorder %v2148, 0
    %v2150 = vsel %vm2149, %v2148, 0
    %v2151 = vshrl.u32 %v2150, 5
    %v2152 = vand.u32 %v2150, 31
    %v2153 = vsub.s32 32, %v2152
    %v2154 = vshrl.u32 683565275, %v2153
    %v2155 = vshll.u32 683565275, %v2152
    %v2156 = vshrl.u32 2475754826, %v2153
    %v2157 = vor.u32 %v2155, %v2156
    %v2158 = vshll.u32 2475754826, %v2152
    %v2159 = vshrl.u32 2131351028, %v2153
    %v2160 = vor.u32 %v2158, %v2159
    %v2161 = vshll.u32 2131351028, %v2152
    %v2162 = vshrl.u32 2102212464, %v2153
    %v2163 = vor.u32 %v2161, %v2162
    %v2164 = vshll.u32 2102212464, %v2152
    %v2165 = vshrl.u32 920167782, %v2153
    %v2166 = vor.u32 %v2164, %v2165
    %v2167 = vshll.u32 920167782, %v2152
    %v2168 = vshrl.u32 1326507024, %v2153
    %v2169 = vor.u32 %v2167, %v2168
    %vm2170 = vcmp.lt.s32.totalorder %v2151, 1
    %vm2171 = vcmp.lt.s32.totalorder %v2151, 2
    %vm2172 = vcmp.lt.s32.totalorder %v2151, 3
    %vm2173 = vcmp.lt.s32.totalorder %v2151, 4
    %v2174 = vsel %vm2170, %v2154, %v2157
    %v2175 = vsel %vm2173, %v2163, 2102212464
    %v2176 = vsel %vm2172, %v2160, %v2175
    %v2177 = vsel %vm2171, %v2174, %v2176
    %v2178 = vsel %vm2170, %v2157, %v2160
    %v2179 = vsel %vm2173, %v2166, 920167782
    %v2180 = vsel %vm2172, %v2163, %v2179
    %v2181 = vsel %vm2171, %v2178, %v2180
    %v2182 = vsel %vm2170, %v2160, %v2163
    %v2183 = vsel %vm2173, %v2169, 1326507024
    %v2184 = vsel %vm2172, %v2166, %v2183
    %v2185 = vsel %vm2171, %v2182, %v2184
    %v2186 = vshll.u32 %v2146, 8
    %v2187 = vmul.u32.u64.compose %v2186, %v2185
    %v2188 = vextract.low.u32 %v2187
    %v2189 = vextract.high.u32 %v2187
    %v2190 = vmul.u32.u64.compose %v2186, %v2181
    %v2191 = vextract.low.u32 %v2190
    %v2192 = vextract.high.u32 %v2190
    %v2193 = vmul.u32 %v2186, %v2177
    %v2194 = vadd.s32 %v2189, %v2191
    %vm2195 = vc.u32 %v2189, %v2191
    %v2196 = vadd.s32 %v2192, 1
    %v2197 = vsel %vm2195, %v2196, %v2192
    %v2198 = vadd.s32 %v2193, %v2197
    %v2199 = vadd.s32 %v2198, 536870912
    %v2200 = vshrl.u32 %v2199, 30
    %v2201 = vshll.u32 %v2200, 30
    %v2202 = vsub.s32 %v2198, %v2201
    %vm2203 = vcmp.lt.s32.totalorder %v2202, 0
    %v2204 = vsub.s32 0, %v2202
    %v2205 = vsel %vm2203, %v2204, %v2202
    %v2206 = vclz %v2205
    %v2207 = vsub.s32 %v2206, 2
    %vm2208 = vcmp.gt.s32.totalorder 0, %v2207
    %v2209 = vsel %vm2208, 0, %v2207
    %v2210 = vsub.s32 32, %v2209
    %v2211 = vshll.u32 %v2202, %v2209
    %v2212 = vshrl.u32 %v2194, %v2210
    %v2213 = vor.u32 %v2211, %v2212
    %v2214 = vsub.s32 4294967266, %v2209
    %v2215 = vadd.s32 %v2214, 127
    %v2216 = vshll.u32 %v2215, 23
    %v2217 = vor.u32 4788187, %v2216
    %v2218 = vand.u32 2147483647, %v2217
    %v2220 = vcvt.s32.f32 %v2213
    %v2221 = vmul.f32 %v2220, %v2218
    %v2222 = vxor.u32 %v2221, 2147483648
    %v2223 = vsel %vm2140, %v2222, %v2221
    %v2224 = vsub.s32 4, %v2200
    %v2225 = vsel %vm2140, %v2224, %v2200
    %v2226 = vsel %vm2139, %v1713, %v2223
    %v2227 = vsel %vm2139, 0, %v2225
    %v2228 = vcosq.f32.pop %v2226
    %v2229 = vsinq.f32.pop %v2226
    %vm2230 = vweird.f32 %v1713
    %v2231 = vand.u32 %v2227, 3
    %vm2232 = vcmp.lt.s32.totalorder %v2231, 2
    %vm2233 = vcmp.eq.s32.totalorder %v2231, 0
    %v2234 = vxor.u32 %v2229, 2147483648
    %v2235 = vsel %vm2233, %v2228, %v2234
    %vm2236 = vcmp.eq.s32.totalorder %v2231, 2
    %v2237 = vxor.u32 %v2228, 2147483648
    %v2238 = vsel %vm2236, %v2237, %v2229
    %v2239 = vsel %vm2232, %v2235, %v2238
    %v2240 = vsel %vm2230, nan, %v2239
    %v2241 = vand.u32 2147483647, %v1714
    %vm2242 = vcmp.le.f32.partialorder %v2241, 0.7853982
    %vm2243 = vcmp.lt.s32.totalorder %v1714, 0
    %v2244 = vand.u32 %v1714, 2139095040
    %v2245 = vshrl.u32 %v2244, 23
    %v2246 = vsub.s32 %v2245, 127
    %v2247 = vand.u32 2147483647, %v1714
    %v2248 = vand.u32 %v2247, 8388607
    %v2249 = vor.u32 %v2248, 8388608
    %v2250 = vsub.s32 0, %v2249
    %v2251 = vadd.s32 %v2246, 1
    %vm2252 = vcmp.gt.s32.totalorder %v2251, 0
    %v2253 = vsel %vm2252, %v2251, 0
    %v2254 = vshrl.u32 %v2253, 5
    %v2255 = vand.u32 %v2253, 31
    %v2256 = vsub.s32 32, %v2255
    %v2257 = vshrl.u32 683565275, %v2256
    %v2258 = vshll.u32 683565275, %v2255
    %v2259 = vshrl.u32 2475754826, %v2256
    %v2260 = vor.u32 %v2258, %v2259
    %v2261 = vshll.u32 2475754826, %v2255
    %v2262 = vshrl.u32 2131351028, %v2256
    %v2263 = vor.u32 %v2261, %v2262
    %v2264 = vshll.u32 2131351028, %v2255
    %v2265 = vshrl.u32 2102212464, %v2256
    %v2266 = vor.u32 %v2264, %v2265
    %v2267 = vshll.u32 2102212464, %v2255
    %v2268 = vshrl.u32 920167782, %v2256
    %v2269 = vor.u32 %v2267, %v2268
    %v2270 = vshll.u32 920167782, %v2255
    %v2271 = vshrl.u32 1326507024, %v2256
    %v2272 = vor.u32 %v2270, %v2271
    %vm2273 = vcmp.lt.s32.totalorder %v2254, 1
    %vm2274 = vcmp.lt.s32.totalorder %v2254, 2
    %vm2275 = vcmp.lt.s32.totalorder %v2254, 3
    %vm2276 = vcmp.lt.s32.totalorder %v2254, 4
    %v2277 = vsel %vm2273, %v2257, %v2260
    %v2278 = vsel %vm2276, %v2266, 2102212464
    %v2279 = vsel %vm2275, %v2263, %v2278
    %v2280 = vsel %vm2274, %v2277, %v2279
    %v2281 = vsel %vm2273, %v2260, %v2263
    %v2282 = vsel %vm2276, %v2269, 920167782
    %v2283 = vsel %vm2275, %v2266, %v2282
    %v2284 = vsel %vm2274, %v2281, %v2283
    %v2285 = vsel %vm2273, %v2263, %v2266
    %v2286 = vsel %vm2276, %v2272, 1326507024
    %v2287 = vsel %vm2275, %v2269, %v2286
    %v2288 = vsel %vm2274, %v2285, %v2287
    %v2289 = vshll.u32 %v2249, 8
    %v2290 = vmul.u32.u64.compose %v2289, %v2288
    %v2291 = vextract.low.u32 %v2290
    %v2292 = vextract.high.u32 %v2290
    %v2293 = vmul.u32.u64.compose %v2289, %v2284
    %v2294 = vextract.low.u32 %v2293
    %v2295 = vextract.high.u32 %v2293
    %v2296 = vmul.u32 %v2289, %v2280
    %v2297 = vadd.s32 %v2292, %v2294
    %vm2298 = vc.u32 %v2292, %v2294
    %v2299 = vadd.s32 %v2295, 1
    %v2300 = vsel %vm2298, %v2299, %v2295
    %v2301 = vadd.s32 %v2296, %v2300
    %v2302 = vadd.s32 %v2301, 536870912
    %v2303 = vshrl.u32 %v2302, 30
    %v2304 = vshll.u32 %v2303, 30
    %v2305 = vsub.s32 %v2301, %v2304
    %vm2306 = vcmp.lt.s32.totalorder %v2305, 0
    %v2307 = vsub.s32 0, %v2305
    %v2308 = vsel %vm2306, %v2307, %v2305
    %v2309 = vclz %v2308
    %v2310 = vsub.s32 %v2309, 2
    %vm2311 = vcmp.gt.s32.totalorder 0, %v2310
    %v2312 = vsel %vm2311, 0, %v2310
    %v2313 = vsub.s32 32, %v2312
    %v2314 = vshll.u32 %v2305, %v2312
    %v2315 = vshrl.u32 %v2297, %v2313
    %v2316 = vor.u32 %v2314, %v2315
    %v2317 = vsub.s32 4294967266, %v2312
    %v2318 = vadd.s32 %v2317, 127
    %v2319 = vshll.u32 %v2318, 23
    %v2320 = vor.u32 4788187, %v2319
    %v2321 = vand.u32 2147483647, %v2320
    %v2323 = vcvt.s32.f32 %v2316
    %v2324 = vmul.f32 %v2323, %v2321
    %v2325 = vxor.u32 %v2324, 2147483648
    %v2326 = vsel %vm2243, %v2325, %v2324
    %v2327 = vsub.s32 4, %v2303
    %v2328 = vsel %vm2243, %v2327, %v2303
    %v2329 = vsel %vm2242, %v1714, %v2326
    %v2330 = vsel %vm2242, 0, %v2328
    %v2331 = vcosq.f32.pop %v2329
    %v2332 = vsinq.f32.pop %v2329
    %vm2333 = vweird.f32 %v1714
    %v2334 = vand.u32 %v2330, 3
    %vm2335 = vcmp.lt.s32.totalorder %v2334, 2
    %vm2336 = vcmp.eq.s32.totalorder %v2334, 0
    %v2337 = vxor.u32 %v2332, 2147483648
    %v2338 = vsel %vm2336, %v2331, %v2337
    %vm2339 = vcmp.eq.s32.totalorder %v2334, 2
    %v2340 = vxor.u32 %v2331, 2147483648
    %v2341 = vsel %vm2339, %v2340, %v2332
    %v2342 = vsel %vm2335, %v2338, %v2341
    %v2343 = vsel %vm2333, nan, %v2342
    %v2344 = vand.u32 2147483647, %v1715
    %vm2345 = vcmp.le.f32.partialorder %v2344, 0.7853982
    %vm2346 = vcmp.lt.s32.totalorder %v1715, 0
    %v2347 = vand.u32 %v1715, 2139095040
    %v2348 = vshrl.u32 %v2347, 23
    %v2349 = vsub.s32 %v2348, 127
    %v2350 = vand.u32 2147483647, %v1715
    %v2351 = vand.u32 %v2350, 8388607
    %v2352 = vor.u32 %v2351, 8388608
    %v2353 = vsub.s32 0, %v2352
    %v2354 = vadd.s32 %v2349, 1
    %vm2355 = vcmp.gt.s32.totalorder %v2354, 0
    %v2356 = vsel %vm2355, %v2354, 0
    %v2357 = vshrl.u32 %v2356, 5
    %v2358 = vand.u32 %v2356, 31
    %v2359 = vsub.s32 32, %v2358
    %v2360 = vshrl.u32 683565275, %v2359
    %v2361 = vshll.u32 683565275, %v2358
    %v2362 = vshrl.u32 2475754826, %v2359
    %v2363 = vor.u32 %v2361, %v2362
    %v2364 = vshll.u32 2475754826, %v2358
    %v2365 = vshrl.u32 2131351028, %v2359
    %v2366 = vor.u32 %v2364, %v2365
    %v2367 = vshll.u32 2131351028, %v2358
    %v2368 = vshrl.u32 2102212464, %v2359
    %v2369 = vor.u32 %v2367, %v2368
    %v2370 = vshll.u32 2102212464, %v2358
    %v2371 = vshrl.u32 920167782, %v2359
    %v2372 = vor.u32 %v2370, %v2371
    %v2373 = vshll.u32 920167782, %v2358
    %v2374 = vshrl.u32 1326507024, %v2359
    %v2375 = vor.u32 %v2373, %v2374
    %vm2376 = vcmp.lt.s32.totalorder %v2357, 1
    %vm2377 = vcmp.lt.s32.totalorder %v2357, 2
    %vm2378 = vcmp.lt.s32.totalorder %v2357, 3
    %vm2379 = vcmp.lt.s32.totalorder %v2357, 4
    %v2380 = vsel %vm2376, %v2360, %v2363
    %v2381 = vsel %vm2379, %v2369, 2102212464
    %v2382 = vsel %vm2378, %v2366, %v2381
    %v2383 = vsel %vm2377, %v2380, %v2382
    %v2384 = vsel %vm2376, %v2363, %v2366
    %v2385 = vsel %vm2379, %v2372, 920167782
    %v2386 = vsel %vm2378, %v2369, %v2385
    %v2387 = vsel %vm2377, %v2384, %v2386
    %v2388 = vsel %vm2376, %v2366, %v2369
    %v2389 = vsel %vm2379, %v2375, 1326507024
    %v2390 = vsel %vm2378, %v2372, %v2389
    %v2391 = vsel %vm2377, %v2388, %v2390
    %v2392 = vshll.u32 %v2352, 8
    %v2393 = vmul.u32.u64.compose %v2392, %v2391
    %v2394 = vextract.low.u32 %v2393
    %v2395 = vextract.high.u32 %v2393
    %v2396 = vmul.u32.u64.compose %v2392, %v2387
    %v2397 = vextract.low.u32 %v2396
    %v2398 = vextract.high.u32 %v2396
    %v2399 = vmul.u32 %v2392, %v2383
    %v2400 = vadd.s32 %v2395, %v2397
    %vm2401 = vc.u32 %v2395, %v2397
    %v2402 = vadd.s32 %v2398, 1
    %v2403 = vsel %vm2401, %v2402, %v2398
    %v2404 = vadd.s32 %v2399, %v2403
    %v2405 = vadd.s32 %v2404, 536870912
    %v2406 = vshrl.u32 %v2405, 30
    %v2407 = vshll.u32 %v2406, 30
    %v2408 = vsub.s32 %v2404, %v2407
    %vm2409 = vcmp.lt.s32.totalorder %v2408, 0
    %v2410 = vsub.s32 0, %v2408
    %v2411 = vsel %vm2409, %v2410, %v2408
    %v2412 = vclz %v2411
    %v2413 = vsub.s32 %v2412, 2
    %vm2414 = vcmp.gt.s32.totalorder 0, %v2413
    %v2415 = vsel %vm2414, 0, %v2413
    %v2416 = vsub.s32 32, %v2415
    %v2417 = vshll.u32 %v2408, %v2415
    %v2418 = vshrl.u32 %v2400, %v2416
    %v2419 = vor.u32 %v2417, %v2418
    %v2420 = vsub.s32 4294967266, %v2415
    %v2421 = vadd.s32 %v2420, 127
    %v2422 = vshll.u32 %v2421, 23
    %v2423 = vor.u32 4788187, %v2422
    %v2424 = vand.u32 2147483647, %v2423
    %v2426 = vcvt.s32.f32 %v2419
    %v2427 = vmul.f32 %v2426, %v2424
    %v2428 = vxor.u32 %v2427, 2147483648
    %v2429 = vsel %vm2346, %v2428, %v2427
    %v2430 = vsub.s32 4, %v2406
    %v2431 = vsel %vm2346, %v2430, %v2406
    %v2432 = vsel %vm2345, %v1715, %v2429
    %v2433 = vsel %vm2345, 0, %v2431
    %v2434 = vcosq.f32.pop %v2432
    %v2435 = vsinq.f32.pop %v2432
    %vm2436 = vweird.f32 %v1715
    %v2437 = vand.u32 %v2433, 3
    %vm2438 = vcmp.lt.s32.totalorder %v2437, 2
    %vm2439 = vcmp.eq.s32.totalorder %v2437, 0
    %v2440 = vxor.u32 %v2435, 2147483648
    %v2441 = vsel %vm2439, %v2434, %v2440
    %vm2442 = vcmp.eq.s32.totalorder %v2437, 2
    %v2443 = vxor.u32 %v2434, 2147483648
    %v2444 = vsel %vm2442, %v2443, %v2435
    %v2445 = vsel %vm2438, %v2441, %v2444
    %v2446 = vsel %vm2436, nan, %v2445
    %v2447 = vand.u32 2147483647, %v1716
    %vm2448 = vcmp.le.f32.partialorder %v2447, 0.7853982
    %vm2449 = vcmp.lt.s32.totalorder %v1716, 0
    %v2450 = vand.u32 %v1716, 2139095040
    %v2451 = vshrl.u32 %v2450, 23
    %v2452 = vsub.s32 %v2451, 127
    %v2453 = vand.u32 2147483647, %v1716
    %v2454 = vand.u32 %v2453, 8388607
    %v2455 = vor.u32 %v2454, 8388608
    %v2456 = vsub.s32 0, %v2455
    %v2457 = vadd.s32 %v2452, 1
    %vm2458 = vcmp.gt.s32.totalorder %v2457, 0
    %v2459 = vsel %vm2458, %v2457, 0
    %v2460 = vshrl.u32 %v2459, 5
    %v2461 = vand.u32 %v2459, 31
    %v2462 = vsub.s32 32, %v2461
    %v2463 = vshrl.u32 683565275, %v2462
    %v2464 = vshll.u32 683565275, %v2461
    %v2465 = vshrl.u32 2475754826, %v2462
    %v2466 = vor.u32 %v2464, %v2465
    %v2467 = vshll.u32 2475754826, %v2461
    %v2468 = vshrl.u32 2131351028, %v2462
    %v2469 = vor.u32 %v2467, %v2468
    %v2470 = vshll.u32 2131351028, %v2461
    %v2471 = vshrl.u32 2102212464, %v2462
    %v2472 = vor.u32 %v2470, %v2471
    %v2473 = vshll.u32 2102212464, %v2461
    %v2474 = vshrl.u32 920167782, %v2462
    %v2475 = vor.u32 %v2473, %v2474
    %v2476 = vshll.u32 920167782, %v2461
    %v2477 = vshrl.u32 1326507024, %v2462
    %v2478 = vor.u32 %v2476, %v2477
    %vm2479 = vcmp.lt.s32.totalorder %v2460, 1
    %vm2480 = vcmp.lt.s32.totalorder %v2460, 2
    %vm2481 = vcmp.lt.s32.totalorder %v2460, 3
    %vm2482 = vcmp.lt.s32.totalorder %v2460, 4
    %v2483 = vsel %vm2479, %v2463, %v2466
    %v2484 = vsel %vm2482, %v2472, 2102212464
    %v2485 = vsel %vm2481, %v2469, %v2484
    %v2486 = vsel %vm2480, %v2483, %v2485
    %v2487 = vsel %vm2479, %v2466, %v2469
    %v2488 = vsel %vm2482, %v2475, 920167782
    %v2489 = vsel %vm2481, %v2472, %v2488
    %v2490 = vsel %vm2480, %v2487, %v2489
    %v2491 = vsel %vm2479, %v2469, %v2472
    %v2492 = vsel %vm2482, %v2478, 1326507024
    %v2493 = vsel %vm2481, %v2475, %v2492
    %v2494 = vsel %vm2480, %v2491, %v2493
    %v2495 = vshll.u32 %v2455, 8
    %v2496 = vmul.u32.u64.compose %v2495, %v2494
    %v2497 = vextract.low.u32 %v2496
    %v2498 = vextract.high.u32 %v2496
    %v2499 = vmul.u32.u64.compose %v2495, %v2490
    %v2500 = vextract.low.u32 %v2499
    %v2501 = vextract.high.u32 %v2499
    %v2502 = vmul.u32 %v2495, %v2486
    %v2503 = vadd.s32 %v2498, %v2500
    %vm2504 = vc.u32 %v2498, %v2500
    %v2505 = vadd.s32 %v2501, 1
    %v2506 = vsel %vm2504, %v2505, %v2501
    %v2507 = vadd.s32 %v2502, %v2506
    %v2508 = vadd.s32 %v2507, 536870912
    %v2509 = vshrl.u32 %v2508, 30
    %v2510 = vshll.u32 %v2509, 30
    %v2511 = vsub.s32 %v2507, %v2510
    %vm2512 = vcmp.lt.s32.totalorder %v2511, 0
    %v2513 = vsub.s32 0, %v2511
    %v2514 = vsel %vm2512, %v2513, %v2511
    %v2515 = vclz %v2514
    %v2516 = vsub.s32 %v2515, 2
    %vm2517 = vcmp.gt.s32.totalorder 0, %v2516
    %v2518 = vsel %vm2517, 0, %v2516
    %v2519 = vsub.s32 32, %v2518
    %v2520 = vshll.u32 %v2511, %v2518
    %v2521 = vshrl.u32 %v2503, %v2519
    %v2522 = vor.u32 %v2520, %v2521
    %v2523 = vsub.s32 4294967266, %v2518
    %v2524 = vadd.s32 %v2523, 127
    %v2525 = vshll.u32 %v2524, 23
    %v2526 = vor.u32 4788187, %v2525
    %v2527 = vand.u32 2147483647, %v2526
    %v2529 = vcvt.s32.f32 %v2522
    %v2530 = vmul.f32 %v2529, %v2527
    %v2531 = vxor.u32 %v2530, 2147483648
    %v2532 = vsel %vm2449, %v2531, %v2530
    %v2533 = vsub.s32 4, %v2509
    %v2534 = vsel %vm2449, %v2533, %v2509
    %v2535 = vsel %vm2448, %v1716, %v2532
    %v2536 = vsel %vm2448, 0, %v2534
    %v2537 = vcosq.f32.pop %v2535
    %v2538 = vsinq.f32.pop %v2535
    %vm2539 = vweird.f32 %v1716
    %v2540 = vand.u32 %v2536, 3
    %vm2541 = vcmp.lt.s32.totalorder %v2540, 2
    %vm2542 = vcmp.eq.s32.totalorder %v2540, 0
    %v2543 = vxor.u32 %v2538, 2147483648
    %v2544 = vsel %vm2542, %v2537, %v2543
    %vm2545 = vcmp.eq.s32.totalorder %v2540, 2
    %v2546 = vxor.u32 %v2537, 2147483648
    %v2547 = vsel %vm2545, %v2546, %v2538
    %v2548 = vsel %vm2541, %v2544, %v2547
    %v2549 = vsel %vm2539, nan, %v2548
    %s2550 = scalar_lea.vmem [#allocation5], 224
    %2551 = vst [vmem:[%s2550] sm:$0xff] %v2240
    %2552 = vst [vmem:[%s2550 + $0x8] sm:$0xff] %v2343
    %2553 = vst [vmem:[%s2550 + $0x10] sm:$0xff] %v2446
    %2554 = vst [vmem:[%s2550 + $0x18] sm:$0xff] %v2549
    %v2555 = vmul.f32 %v29, 8.0
    %v2556 = vmul.f32 %v30, 8.0
    %v2557 = vmul.f32 %v31, 8.0
    %v2558 = vmul.f32 %v32, 8.0
    %v2559 = vand.u32 2147483647, %v2555
    %vm2560 = vcmp.le.f32.partialorder %v2559, 0.7853982
    %vm2561 = vcmp.lt.s32.totalorder %v2555, 0
    %v2562 = vand.u32 %v2555, 2139095040
    %v2563 = vshrl.u32 %v2562, 23
    %v2564 = vsub.s32 %v2563, 127
    %v2565 = vand.u32 2147483647, %v2555
    %v2566 = vand.u32 %v2565, 8388607
    %v2567 = vor.u32 %v2566, 8388608
    %v2568 = vsub.s32 0, %v2567
    %v2569 = vadd.s32 %v2564, 1
    %vm2570 = vcmp.gt.s32.totalorder %v2569, 0
    %v2571 = vsel %vm2570, %v2569, 0
    %v2572 = vshrl.u32 %v2571, 5
    %v2573 = vand.u32 %v2571, 31
    %v2574 = vsub.s32 32, %v2573
    %v2575 = vshrl.u32 683565275, %v2574
    %v2576 = vshll.u32 683565275, %v2573
    %v2577 = vshrl.u32 2475754826, %v2574
    %v2578 = vor.u32 %v2576, %v2577
    %v2579 = vshll.u32 2475754826, %v2573
    %v2580 = vshrl.u32 2131351028, %v2574
    %v2581 = vor.u32 %v2579, %v2580
    %v2582 = vshll.u32 2131351028, %v2573
    %v2583 = vshrl.u32 2102212464, %v2574
    %v2584 = vor.u32 %v2582, %v2583
    %v2585 = vshll.u32 2102212464, %v2573
    %v2586 = vshrl.u32 920167782, %v2574
    %v2587 = vor.u32 %v2585, %v2586
    %v2588 = vshll.u32 920167782, %v2573
    %v2589 = vshrl.u32 1326507024, %v2574
    %v2590 = vor.u32 %v2588, %v2589
    %vm2591 = vcmp.lt.s32.totalorder %v2572, 1
    %vm2592 = vcmp.lt.s32.totalorder %v2572, 2
    %vm2593 = vcmp.lt.s32.totalorder %v2572, 3
    %vm2594 = vcmp.lt.s32.totalorder %v2572, 4
    %v2595 = vsel %vm2591, %v2575, %v2578
    %v2596 = vsel %vm2594, %v2584, 2102212464
    %v2597 = vsel %vm2593, %v2581, %v2596
    %v2598 = vsel %vm2592, %v2595, %v2597
    %v2599 = vsel %vm2591, %v2578, %v2581
    %v2600 = vsel %vm2594, %v2587, 920167782
    %v2601 = vsel %vm2593, %v2584, %v2600
    %v2602 = vsel %vm2592, %v2599, %v2601
    %v2603 = vsel %vm2591, %v2581, %v2584
    %v2604 = vsel %vm2594, %v2590, 1326507024
    %v2605 = vsel %vm2593, %v2587, %v2604
    %v2606 = vsel %vm2592, %v2603, %v2605
    %v2607 = vshll.u32 %v2567, 8
    %v2608 = vmul.u32.u64.compose %v2607, %v2606
    %v2609 = vextract.low.u32 %v2608
    %v2610 = vextract.high.u32 %v2608
    %v2611 = vmul.u32.u64.compose %v2607, %v2602
    %v2612 = vextract.low.u32 %v2611
    %v2613 = vextract.high.u32 %v2611
    %v2614 = vmul.u32 %v2607, %v2598
    %v2615 = vadd.s32 %v2610, %v2612
    %vm2616 = vc.u32 %v2610, %v2612
    %v2617 = vadd.s32 %v2613, 1
    %v2618 = vsel %vm2616, %v2617, %v2613
    %v2619 = vadd.s32 %v2614, %v2618
    %v2620 = vadd.s32 %v2619, 536870912
    %v2621 = vshrl.u32 %v2620, 30
    %v2622 = vshll.u32 %v2621, 30
    %v2623 = vsub.s32 %v2619, %v2622
    %vm2624 = vcmp.lt.s32.totalorder %v2623, 0
    %v2625 = vsub.s32 0, %v2623
    %v2626 = vsel %vm2624, %v2625, %v2623
    %v2627 = vclz %v2626
    %v2628 = vsub.s32 %v2627, 2
    %vm2629 = vcmp.gt.s32.totalorder 0, %v2628
    %v2630 = vsel %vm2629, 0, %v2628
    %v2631 = vsub.s32 32, %v2630
    %v2632 = vshll.u32 %v2623, %v2630
    %v2633 = vshrl.u32 %v2615, %v2631
    %v2634 = vor.u32 %v2632, %v2633
    %v2635 = vsub.s32 4294967266, %v2630
    %v2636 = vadd.s32 %v2635, 127
    %v2637 = vshll.u32 %v2636, 23
    %v2638 = vor.u32 4788187, %v2637
    %v2639 = vand.u32 2147483647, %v2638
    %v2641 = vcvt.s32.f32 %v2634
    %v2642 = vmul.f32 %v2641, %v2639
    %v2643 = vxor.u32 %v2642, 2147483648
    %v2644 = vsel %vm2561, %v2643, %v2642
    %v2645 = vsub.s32 4, %v2621
    %v2646 = vsel %vm2561, %v2645, %v2621
    %v2647 = vsel %vm2560, %v2555, %v2644
    %v2648 = vsel %vm2560, 0, %v2646
    %v2649 = vcosq.f32.pop %v2647
    %v2650 = vsinq.f32.pop %v2647
    %vm2651 = vweird.f32 %v2555
    %v2652 = vadd.s32 %v2648, 3
    %v2653 = vand.u32 %v2652, 3
    %vm2654 = vcmp.lt.s32.totalorder %v2653, 2
    %vm2655 = vcmp.eq.s32.totalorder %v2653, 0
    %v2656 = vxor.u32 %v2650, 2147483648
    %v2657 = vsel %vm2655, %v2649, %v2656
    %vm2658 = vcmp.eq.s32.totalorder %v2653, 2
    %v2659 = vxor.u32 %v2649, 2147483648
    %v2660 = vsel %vm2658, %v2659, %v2650
    %v2661 = vsel %vm2654, %v2657, %v2660
    %v2662 = vsel %vm2651, nan, %v2661
    %v2663 = vand.u32 2147483647, %v2556
    %vm2664 = vcmp.le.f32.partialorder %v2663, 0.7853982
    %vm2665 = vcmp.lt.s32.totalorder %v2556, 0
    %v2666 = vand.u32 %v2556, 2139095040
    %v2667 = vshrl.u32 %v2666, 23
    %v2668 = vsub.s32 %v2667, 127
    %v2669 = vand.u32 2147483647, %v2556
    %v2670 = vand.u32 %v2669, 8388607
    %v2671 = vor.u32 %v2670, 8388608
    %v2672 = vsub.s32 0, %v2671
    %v2673 = vadd.s32 %v2668, 1
    %vm2674 = vcmp.gt.s32.totalorder %v2673, 0
    %v2675 = vsel %vm2674, %v2673, 0
    %v2676 = vshrl.u32 %v2675, 5
    %v2677 = vand.u32 %v2675, 31
    %v2678 = vsub.s32 32, %v2677
    %v2679 = vshrl.u32 683565275, %v2678
    %v2680 = vshll.u32 683565275, %v2677
    %v2681 = vshrl.u32 2475754826, %v2678
    %v2682 = vor.u32 %v2680, %v2681
    %v2683 = vshll.u32 2475754826, %v2677
    %v2684 = vshrl.u32 2131351028, %v2678
    %v2685 = vor.u32 %v2683, %v2684
    %v2686 = vshll.u32 2131351028, %v2677
    %v2687 = vshrl.u32 2102212464, %v2678
    %v2688 = vor.u32 %v2686, %v2687
    %v2689 = vshll.u32 2102212464, %v2677
    %v2690 = vshrl.u32 920167782, %v2678
    %v2691 = vor.u32 %v2689, %v2690
    %v2692 = vshll.u32 920167782, %v2677
    %v2693 = vshrl.u32 1326507024, %v2678
    %v2694 = vor.u32 %v2692, %v2693
    %vm2695 = vcmp.lt.s32.totalorder %v2676, 1
    %vm2696 = vcmp.lt.s32.totalorder %v2676, 2
    %vm2697 = vcmp.lt.s32.totalorder %v2676, 3
    %vm2698 = vcmp.lt.s32.totalorder %v2676, 4
    %v2699 = vsel %vm2695, %v2679, %v2682
    %v2700 = vsel %vm2698, %v2688, 2102212464
    %v2701 = vsel %vm2697, %v2685, %v2700
    %v2702 = vsel %vm2696, %v2699, %v2701
    %v2703 = vsel %vm2695, %v2682, %v2685
    %v2704 = vsel %vm2698, %v2691, 920167782
    %v2705 = vsel %vm2697, %v2688, %v2704
    %v2706 = vsel %vm2696, %v2703, %v2705
    %v2707 = vsel %vm2695, %v2685, %v2688
    %v2708 = vsel %vm2698, %v2694, 1326507024
    %v2709 = vsel %vm2697, %v2691, %v2708
    %v2710 = vsel %vm2696, %v2707, %v2709
    %v2711 = vshll.u32 %v2671, 8
    %v2712 = vmul.u32.u64.compose %v2711, %v2710
    %v2713 = vextract.low.u32 %v2712
    %v2714 = vextract.high.u32 %v2712
    %v2715 = vmul.u32.u64.compose %v2711, %v2706
    %v2716 = vextract.low.u32 %v2715
    %v2717 = vextract.high.u32 %v2715
    %v2718 = vmul.u32 %v2711, %v2702
    %v2719 = vadd.s32 %v2714, %v2716
    %vm2720 = vc.u32 %v2714, %v2716
    %v2721 = vadd.s32 %v2717, 1
    %v2722 = vsel %vm2720, %v2721, %v2717
    %v2723 = vadd.s32 %v2718, %v2722
    %v2724 = vadd.s32 %v2723, 536870912
    %v2725 = vshrl.u32 %v2724, 30
    %v2726 = vshll.u32 %v2725, 30
    %v2727 = vsub.s32 %v2723, %v2726
    %vm2728 = vcmp.lt.s32.totalorder %v2727, 0
    %v2729 = vsub.s32 0, %v2727
    %v2730 = vsel %vm2728, %v2729, %v2727
    %v2731 = vclz %v2730
    %v2732 = vsub.s32 %v2731, 2
    %vm2733 = vcmp.gt.s32.totalorder 0, %v2732
    %v2734 = vsel %vm2733, 0, %v2732
    %v2735 = vsub.s32 32, %v2734
    %v2736 = vshll.u32 %v2727, %v2734
    %v2737 = vshrl.u32 %v2719, %v2735
    %v2738 = vor.u32 %v2736, %v2737
    %v2739 = vsub.s32 4294967266, %v2734
    %v2740 = vadd.s32 %v2739, 127
    %v2741 = vshll.u32 %v2740, 23
    %v2742 = vor.u32 4788187, %v2741
    %v2743 = vand.u32 2147483647, %v2742
    %v2745 = vcvt.s32.f32 %v2738
    %v2746 = vmul.f32 %v2745, %v2743
    %v2747 = vxor.u32 %v2746, 2147483648
    %v2748 = vsel %vm2665, %v2747, %v2746
    %v2749 = vsub.s32 4, %v2725
    %v2750 = vsel %vm2665, %v2749, %v2725
    %v2751 = vsel %vm2664, %v2556, %v2748
    %v2752 = vsel %vm2664, 0, %v2750
    %v2753 = vcosq.f32.pop %v2751
    %v2754 = vsinq.f32.pop %v2751
    %vm2755 = vweird.f32 %v2556
    %v2756 = vadd.s32 %v2752, 3
    %v2757 = vand.u32 %v2756, 3
    %vm2758 = vcmp.lt.s32.totalorder %v2757, 2
    %vm2759 = vcmp.eq.s32.totalorder %v2757, 0
    %v2760 = vxor.u32 %v2754, 2147483648
    %v2761 = vsel %vm2759, %v2753, %v2760
    %vm2762 = vcmp.eq.s32.totalorder %v2757, 2
    %v2763 = vxor.u32 %v2753, 2147483648
    %v2764 = vsel %vm2762, %v2763, %v2754
    %v2765 = vsel %vm2758, %v2761, %v2764
    %v2766 = vsel %vm2755, nan, %v2765
    %v2767 = vand.u32 2147483647, %v2557
    %vm2768 = vcmp.le.f32.partialorder %v2767, 0.7853982
    %vm2769 = vcmp.lt.s32.totalorder %v2557, 0
    %v2770 = vand.u32 %v2557, 2139095040
    %v2771 = vshrl.u32 %v2770, 23
    %v2772 = vsub.s32 %v2771, 127
    %v2773 = vand.u32 2147483647, %v2557
    %v2774 = vand.u32 %v2773, 8388607
    %v2775 = vor.u32 %v2774, 8388608
    %v2776 = vsub.s32 0, %v2775
    %v2777 = vadd.s32 %v2772, 1
    %vm2778 = vcmp.gt.s32.totalorder %v2777, 0
    %v2779 = vsel %vm2778, %v2777, 0
    %v2780 = vshrl.u32 %v2779, 5
    %v2781 = vand.u32 %v2779, 31
    %v2782 = vsub.s32 32, %v2781
    %v2783 = vshrl.u32 683565275, %v2782
    %v2784 = vshll.u32 683565275, %v2781
    %v2785 = vshrl.u32 2475754826, %v2782
    %v2786 = vor.u32 %v2784, %v2785
    %v2787 = vshll.u32 2475754826, %v2781
    %v2788 = vshrl.u32 2131351028, %v2782
    %v2789 = vor.u32 %v2787, %v2788
    %v2790 = vshll.u32 2131351028, %v2781
    %v2791 = vshrl.u32 2102212464, %v2782
    %v2792 = vor.u32 %v2790, %v2791
    %v2793 = vshll.u32 2102212464, %v2781
    %v2794 = vshrl.u32 920167782, %v2782
    %v2795 = vor.u32 %v2793, %v2794
    %v2796 = vshll.u32 920167782, %v2781
    %v2797 = vshrl.u32 1326507024, %v2782
    %v2798 = vor.u32 %v2796, %v2797
    %vm2799 = vcmp.lt.s32.totalorder %v2780, 1
    %vm2800 = vcmp.lt.s32.totalorder %v2780, 2
    %vm2801 = vcmp.lt.s32.totalorder %v2780, 3
    %vm2802 = vcmp.lt.s32.totalorder %v2780, 4
    %v2803 = vsel %vm2799, %v2783, %v2786
    %v2804 = vsel %vm2802, %v2792, 2102212464
    %v2805 = vsel %vm2801, %v2789, %v2804
    %v2806 = vsel %vm2800, %v2803, %v2805
    %v2807 = vsel %vm2799, %v2786, %v2789
    %v2808 = vsel %vm2802, %v2795, 920167782
    %v2809 = vsel %vm2801, %v2792, %v2808
    %v2810 = vsel %vm2800, %v2807, %v2809
    %v2811 = vsel %vm2799, %v2789, %v2792
    %v2812 = vsel %vm2802, %v2798, 1326507024
    %v2813 = vsel %vm2801, %v2795, %v2812
    %v2814 = vsel %vm2800, %v2811, %v2813
    %v2815 = vshll.u32 %v2775, 8
    %v2816 = vmul.u32.u64.compose %v2815, %v2814
    %v2817 = vextract.low.u32 %v2816
    %v2818 = vextract.high.u32 %v2816
    %v2819 = vmul.u32.u64.compose %v2815, %v2810
    %v2820 = vextract.low.u32 %v2819
    %v2821 = vextract.high.u32 %v2819
    %v2822 = vmul.u32 %v2815, %v2806
    %v2823 = vadd.s32 %v2818, %v2820
    %vm2824 = vc.u32 %v2818, %v2820
    %v2825 = vadd.s32 %v2821, 1
    %v2826 = vsel %vm2824, %v2825, %v2821
    %v2827 = vadd.s32 %v2822, %v2826
    %v2828 = vadd.s32 %v2827, 536870912
    %v2829 = vshrl.u32 %v2828, 30
    %v2830 = vshll.u32 %v2829, 30
    %v2831 = vsub.s32 %v2827, %v2830
    %vm2832 = vcmp.lt.s32.totalorder %v2831, 0
    %v2833 = vsub.s32 0, %v2831
    %v2834 = vsel %vm2832, %v2833, %v2831
    %v2835 = vclz %v2834
    %v2836 = vsub.s32 %v2835, 2
    %vm2837 = vcmp.gt.s32.totalorder 0, %v2836
    %v2838 = vsel %vm2837, 0, %v2836
    %v2839 = vsub.s32 32, %v2838
    %v2840 = vshll.u32 %v2831, %v2838
    %v2841 = vshrl.u32 %v2823, %v2839
    %v2842 = vor.u32 %v2840, %v2841
    %v2843 = vsub.s32 4294967266, %v2838
    %v2844 = vadd.s32 %v2843, 127
    %v2845 = vshll.u32 %v2844, 23
    %v2846 = vor.u32 4788187, %v2845
    %v2847 = vand.u32 2147483647, %v2846
    %v2849 = vcvt.s32.f32 %v2842
    %v2850 = vmul.f32 %v2849, %v2847
    %v2851 = vxor.u32 %v2850, 2147483648
    %v2852 = vsel %vm2769, %v2851, %v2850
    %v2853 = vsub.s32 4, %v2829
    %v2854 = vsel %vm2769, %v2853, %v2829
    %v2855 = vsel %vm2768, %v2557, %v2852
    %v2856 = vsel %vm2768, 0, %v2854
    %v2857 = vcosq.f32.pop %v2855
    %v2858 = vsinq.f32.pop %v2855
    %vm2859 = vweird.f32 %v2557
    %v2860 = vadd.s32 %v2856, 3
    %v2861 = vand.u32 %v2860, 3
    %vm2862 = vcmp.lt.s32.totalorder %v2861, 2
    %vm2863 = vcmp.eq.s32.totalorder %v2861, 0
    %v2864 = vxor.u32 %v2858, 2147483648
    %v2865 = vsel %vm2863, %v2857, %v2864
    %vm2866 = vcmp.eq.s32.totalorder %v2861, 2
    %v2867 = vxor.u32 %v2857, 2147483648
    %v2868 = vsel %vm2866, %v2867, %v2858
    %v2869 = vsel %vm2862, %v2865, %v2868
    %v2870 = vsel %vm2859, nan, %v2869
    %v2871 = vand.u32 2147483647, %v2558
    %vm2872 = vcmp.le.f32.partialorder %v2871, 0.7853982
    %vm2873 = vcmp.lt.s32.totalorder %v2558, 0
    %v2874 = vand.u32 %v2558, 2139095040
    %v2875 = vshrl.u32 %v2874, 23
    %v2876 = vsub.s32 %v2875, 127
    %v2877 = vand.u32 2147483647, %v2558
    %v2878 = vand.u32 %v2877, 8388607
    %v2879 = vor.u32 %v2878, 8388608
    %v2880 = vsub.s32 0, %v2879
    %v2881 = vadd.s32 %v2876, 1
    %vm2882 = vcmp.gt.s32.totalorder %v2881, 0
    %v2883 = vsel %vm2882, %v2881, 0
    %v2884 = vshrl.u32 %v2883, 5
    %v2885 = vand.u32 %v2883, 31
    %v2886 = vsub.s32 32, %v2885
    %v2887 = vshrl.u32 683565275, %v2886
    %v2888 = vshll.u32 683565275, %v2885
    %v2889 = vshrl.u32 2475754826, %v2886
    %v2890 = vor.u32 %v2888, %v2889
    %v2891 = vshll.u32 2475754826, %v2885
    %v2892 = vshrl.u32 2131351028, %v2886
    %v2893 = vor.u32 %v2891, %v2892
    %v2894 = vshll.u32 2131351028, %v2885
    %v2895 = vshrl.u32 2102212464, %v2886
    %v2896 = vor.u32 %v2894, %v2895
    %v2897 = vshll.u32 2102212464, %v2885
    %v2898 = vshrl.u32 920167782, %v2886
    %v2899 = vor.u32 %v2897, %v2898
    %v2900 = vshll.u32 920167782, %v2885
    %v2901 = vshrl.u32 1326507024, %v2886
    %v2902 = vor.u32 %v2900, %v2901
    %vm2903 = vcmp.lt.s32.totalorder %v2884, 1
    %vm2904 = vcmp.lt.s32.totalorder %v2884, 2
    %vm2905 = vcmp.lt.s32.totalorder %v2884, 3
    %vm2906 = vcmp.lt.s32.totalorder %v2884, 4
    %v2907 = vsel %vm2903, %v2887, %v2890
    %v2908 = vsel %vm2906, %v2896, 2102212464
    %v2909 = vsel %vm2905, %v2893, %v2908
    %v2910 = vsel %vm2904, %v2907, %v2909
    %v2911 = vsel %vm2903, %v2890, %v2893
    %v2912 = vsel %vm2906, %v2899, 920167782
    %v2913 = vsel %vm2905, %v2896, %v2912
    %v2914 = vsel %vm2904, %v2911, %v2913
    %v2915 = vsel %vm2903, %v2893, %v2896
    %v2916 = vsel %vm2906, %v2902, 1326507024
    %v2917 = vsel %vm2905, %v2899, %v2916
    %v2918 = vsel %vm2904, %v2915, %v2917
    %v2919 = vshll.u32 %v2879, 8
    %v2920 = vmul.u32.u64.compose %v2919, %v2918
    %v2921 = vextract.low.u32 %v2920
    %v2922 = vextract.high.u32 %v2920
    %v2923 = vmul.u32.u64.compose %v2919, %v2914
    %v2924 = vextract.low.u32 %v2923
    %v2925 = vextract.high.u32 %v2923
    %v2926 = vmul.u32 %v2919, %v2910
    %v2927 = vadd.s32 %v2922, %v2924
    %vm2928 = vc.u32 %v2922, %v2924
    %v2929 = vadd.s32 %v2925, 1
    %v2930 = vsel %vm2928, %v2929, %v2925
    %v2931 = vadd.s32 %v2926, %v2930
    %v2932 = vadd.s32 %v2931, 536870912
    %v2933 = vshrl.u32 %v2932, 30
    %v2934 = vshll.u32 %v2933, 30
    %v2935 = vsub.s32 %v2931, %v2934
    %vm2936 = vcmp.lt.s32.totalorder %v2935, 0
    %v2937 = vsub.s32 0, %v2935
    %v2938 = vsel %vm2936, %v2937, %v2935
    %v2939 = vclz %v2938
    %v2940 = vsub.s32 %v2939, 2
    %vm2941 = vcmp.gt.s32.totalorder 0, %v2940
    %v2942 = vsel %vm2941, 0, %v2940
    %v2943 = vsub.s32 32, %v2942
    %v2944 = vshll.u32 %v2935, %v2942
    %v2945 = vshrl.u32 %v2927, %v2943
    %v2946 = vor.u32 %v2944, %v2945
    %v2947 = vsub.s32 4294967266, %v2942
    %v2948 = vadd.s32 %v2947, 127
    %v2949 = vshll.u32 %v2948, 23
    %v2950 = vor.u32 4788187, %v2949
    %v2951 = vand.u32 2147483647, %v2950
    %v2953 = vcvt.s32.f32 %v2946
    %v2954 = vmul.f32 %v2953, %v2951
    %v2955 = vxor.u32 %v2954, 2147483648
    %v2956 = vsel %vm2873, %v2955, %v2954
    %v2957 = vsub.s32 4, %v2933
    %v2958 = vsel %vm2873, %v2957, %v2933
    %v2959 = vsel %vm2872, %v2558, %v2956
    %v2960 = vsel %vm2872, 0, %v2958
    %v2961 = vcosq.f32.pop %v2959
    %v2962 = vsinq.f32.pop %v2959
    %vm2963 = vweird.f32 %v2558
    %v2964 = vadd.s32 %v2960, 3
    %v2965 = vand.u32 %v2964, 3
    %vm2966 = vcmp.lt.s32.totalorder %v2965, 2
    %vm2967 = vcmp.eq.s32.totalorder %v2965, 0
    %v2968 = vxor.u32 %v2962, 2147483648
    %v2969 = vsel %vm2967, %v2961, %v2968
    %vm2970 = vcmp.eq.s32.totalorder %v2965, 2
    %v2971 = vxor.u32 %v2961, 2147483648
    %v2972 = vsel %vm2970, %v2971, %v2962
    %v2973 = vsel %vm2966, %v2969, %v2972
    %v2974 = vsel %vm2963, nan, %v2973
    %s2975 = scalar_lea.vmem [#allocation5], 128
    %2976 = vst [vmem:[%s2975] sm:$0xff] %v2662
    %2977 = vst [vmem:[%s2975 + $0x8] sm:$0xff] %v2766
    %2978 = vst [vmem:[%s2975 + $0x10] sm:$0xff] %v2870
    %2979 = vst [vmem:[%s2975 + $0x18] sm:$0xff] %v2974
    %v2980 = vand.u32 2147483647, %v2555
    %vm2981 = vcmp.le.f32.partialorder %v2980, 0.7853982
    %vm2982 = vcmp.lt.s32.totalorder %v2555, 0
    %v2983 = vand.u32 %v2555, 2139095040
    %v2984 = vshrl.u32 %v2983, 23
    %v2985 = vsub.s32 %v2984, 127
    %v2986 = vand.u32 2147483647, %v2555
    %v2987 = vand.u32 %v2986, 8388607
    %v2988 = vor.u32 %v2987, 8388608
    %v2989 = vsub.s32 0, %v2988
    %v2990 = vadd.s32 %v2985, 1
    %vm2991 = vcmp.gt.s32.totalorder %v2990, 0
    %v2992 = vsel %vm2991, %v2990, 0
    %v2993 = vshrl.u32 %v2992, 5
    %v2994 = vand.u32 %v2992, 31
    %v2995 = vsub.s32 32, %v2994
    %v2996 = vshrl.u32 683565275, %v2995
    %v2997 = vshll.u32 683565275, %v2994
    %v2998 = vshrl.u32 2475754826, %v2995
    %v2999 = vor.u32 %v2997, %v2998
    %v3000 = vshll.u32 2475754826, %v2994
    %v3001 = vshrl.u32 2131351028, %v2995
    %v3002 = vor.u32 %v3000, %v3001
    %v3003 = vshll.u32 2131351028, %v2994
    %v3004 = vshrl.u32 2102212464, %v2995
    %v3005 = vor.u32 %v3003, %v3004
    %v3006 = vshll.u32 2102212464, %v2994
    %v3007 = vshrl.u32 920167782, %v2995
    %v3008 = vor.u32 %v3006, %v3007
    %v3009 = vshll.u32 920167782, %v2994
    %v3010 = vshrl.u32 1326507024, %v2995
    %v3011 = vor.u32 %v3009, %v3010
    %vm3012 = vcmp.lt.s32.totalorder %v2993, 1
    %vm3013 = vcmp.lt.s32.totalorder %v2993, 2
    %vm3014 = vcmp.lt.s32.totalorder %v2993, 3
    %vm3015 = vcmp.lt.s32.totalorder %v2993, 4
    %v3016 = vsel %vm3012, %v2996, %v2999
    %v3017 = vsel %vm3015, %v3005, 2102212464
    %v3018 = vsel %vm3014, %v3002, %v3017
    %v3019 = vsel %vm3013, %v3016, %v3018
    %v3020 = vsel %vm3012, %v2999, %v3002
    %v3021 = vsel %vm3015, %v3008, 920167782
    %v3022 = vsel %vm3014, %v3005, %v3021
    %v3023 = vsel %vm3013, %v3020, %v3022
    %v3024 = vsel %vm3012, %v3002, %v3005
    %v3025 = vsel %vm3015, %v3011, 1326507024
    %v3026 = vsel %vm3014, %v3008, %v3025
    %v3027 = vsel %vm3013, %v3024, %v3026
    %v3028 = vshll.u32 %v2988, 8
    %v3029 = vmul.u32.u64.compose %v3028, %v3027
    %v3030 = vextract.low.u32 %v3029
    %v3031 = vextract.high.u32 %v3029
    %v3032 = vmul.u32.u64.compose %v3028, %v3023
    %v3033 = vextract.low.u32 %v3032
    %v3034 = vextract.high.u32 %v3032
    %v3035 = vmul.u32 %v3028, %v3019
    %v3036 = vadd.s32 %v3031, %v3033
    %vm3037 = vc.u32 %v3031, %v3033
    %v3038 = vadd.s32 %v3034, 1
    %v3039 = vsel %vm3037, %v3038, %v3034
    %v3040 = vadd.s32 %v3035, %v3039
    %v3041 = vadd.s32 %v3040, 536870912
    %v3042 = vshrl.u32 %v3041, 30
    %v3043 = vshll.u32 %v3042, 30
    %v3044 = vsub.s32 %v3040, %v3043
    %vm3045 = vcmp.lt.s32.totalorder %v3044, 0
    %v3046 = vsub.s32 0, %v3044
    %v3047 = vsel %vm3045, %v3046, %v3044
    %v3048 = vclz %v3047
    %v3049 = vsub.s32 %v3048, 2
    %vm3050 = vcmp.gt.s32.totalorder 0, %v3049
    %v3051 = vsel %vm3050, 0, %v3049
    %v3052 = vsub.s32 32, %v3051
    %v3053 = vshll.u32 %v3044, %v3051
    %v3054 = vshrl.u32 %v3036, %v3052
    %v3055 = vor.u32 %v3053, %v3054
    %v3056 = vsub.s32 4294967266, %v3051
    %v3057 = vadd.s32 %v3056, 127
    %v3058 = vshll.u32 %v3057, 23
    %v3059 = vor.u32 4788187, %v3058
    %v3060 = vand.u32 2147483647, %v3059
    %v3062 = vcvt.s32.f32 %v3055
    %v3063 = vmul.f32 %v3062, %v3060
    %v3064 = vxor.u32 %v3063, 2147483648
    %v3065 = vsel %vm2982, %v3064, %v3063
    %v3066 = vsub.s32 4, %v3042
    %v3067 = vsel %vm2982, %v3066, %v3042
    %v3068 = vsel %vm2981, %v2555, %v3065
    %v3069 = vsel %vm2981, 0, %v3067
    %v3070 = vcosq.f32.pop %v3068
    %v3071 = vsinq.f32.pop %v3068
    %vm3072 = vweird.f32 %v2555
    %v3073 = vand.u32 %v3069, 3
    %vm3074 = vcmp.lt.s32.totalorder %v3073, 2
    %vm3075 = vcmp.eq.s32.totalorder %v3073, 0
    %v3076 = vxor.u32 %v3071, 2147483648
    %v3077 = vsel %vm3075, %v3070, %v3076
    %vm3078 = vcmp.eq.s32.totalorder %v3073, 2
    %v3079 = vxor.u32 %v3070, 2147483648
    %v3080 = vsel %vm3078, %v3079, %v3071
    %v3081 = vsel %vm3074, %v3077, %v3080
    %v3082 = vsel %vm3072, nan, %v3081
    %v3083 = vand.u32 2147483647, %v2556
    %vm3084 = vcmp.le.f32.partialorder %v3083, 0.7853982
    %vm3085 = vcmp.lt.s32.totalorder %v2556, 0
    %v3086 = vand.u32 %v2556, 2139095040
    %v3087 = vshrl.u32 %v3086, 23
    %v3088 = vsub.s32 %v3087, 127
    %v3089 = vand.u32 2147483647, %v2556
    %v3090 = vand.u32 %v3089, 8388607
    %v3091 = vor.u32 %v3090, 8388608
    %v3092 = vsub.s32 0, %v3091
    %v3093 = vadd.s32 %v3088, 1
    %vm3094 = vcmp.gt.s32.totalorder %v3093, 0
    %v3095 = vsel %vm3094, %v3093, 0
    %v3096 = vshrl.u32 %v3095, 5
    %v3097 = vand.u32 %v3095, 31
    %v3098 = vsub.s32 32, %v3097
    %v3099 = vshrl.u32 683565275, %v3098
    %v3100 = vshll.u32 683565275, %v3097
    %v3101 = vshrl.u32 2475754826, %v3098
    %v3102 = vor.u32 %v3100, %v3101
    %v3103 = vshll.u32 2475754826, %v3097
    %v3104 = vshrl.u32 2131351028, %v3098
    %v3105 = vor.u32 %v3103, %v3104
    %v3106 = vshll.u32 2131351028, %v3097
    %v3107 = vshrl.u32 2102212464, %v3098
    %v3108 = vor.u32 %v3106, %v3107
    %v3109 = vshll.u32 2102212464, %v3097
    %v3110 = vshrl.u32 920167782, %v3098
    %v3111 = vor.u32 %v3109, %v3110
    %v3112 = vshll.u32 920167782, %v3097
    %v3113 = vshrl.u32 1326507024, %v3098
    %v3114 = vor.u32 %v3112, %v3113
    %vm3115 = vcmp.lt.s32.totalorder %v3096, 1
    %vm3116 = vcmp.lt.s32.totalorder %v3096, 2
    %vm3117 = vcmp.lt.s32.totalorder %v3096, 3
    %vm3118 = vcmp.lt.s32.totalorder %v3096, 4
    %v3119 = vsel %vm3115, %v3099, %v3102
    %v3120 = vsel %vm3118, %v3108, 2102212464
    %v3121 = vsel %vm3117, %v3105, %v3120
    %v3122 = vsel %vm3116, %v3119, %v3121
    %v3123 = vsel %vm3115, %v3102, %v3105
    %v3124 = vsel %vm3118, %v3111, 920167782
    %v3125 = vsel %vm3117, %v3108, %v3124
    %v3126 = vsel %vm3116, %v3123, %v3125
    %v3127 = vsel %vm3115, %v3105, %v3108
    %v3128 = vsel %vm3118, %v3114, 1326507024
    %v3129 = vsel %vm3117, %v3111, %v3128
    %v3130 = vsel %vm3116, %v3127, %v3129
    %v3131 = vshll.u32 %v3091, 8
    %v3132 = vmul.u32.u64.compose %v3131, %v3130
    %v3133 = vextract.low.u32 %v3132
    %v3134 = vextract.high.u32 %v3132
    %v3135 = vmul.u32.u64.compose %v3131, %v3126
    %v3136 = vextract.low.u32 %v3135
    %v3137 = vextract.high.u32 %v3135
    %v3138 = vmul.u32 %v3131, %v3122
    %v3139 = vadd.s32 %v3134, %v3136
    %vm3140 = vc.u32 %v3134, %v3136
    %v3141 = vadd.s32 %v3137, 1
    %v3142 = vsel %vm3140, %v3141, %v3137
    %v3143 = vadd.s32 %v3138, %v3142
    %v3144 = vadd.s32 %v3143, 536870912
    %v3145 = vshrl.u32 %v3144, 30
    %v3146 = vshll.u32 %v3145, 30
    %v3147 = vsub.s32 %v3143, %v3146
    %vm3148 = vcmp.lt.s32.totalorder %v3147, 0
    %v3149 = vsub.s32 0, %v3147
    %v3150 = vsel %vm3148, %v3149, %v3147
    %v3151 = vclz %v3150
    %v3152 = vsub.s32 %v3151, 2
    %vm3153 = vcmp.gt.s32.totalorder 0, %v3152
    %v3154 = vsel %vm3153, 0, %v3152
    %v3155 = vsub.s32 32, %v3154
    %v3156 = vshll.u32 %v3147, %v3154
    %v3157 = vshrl.u32 %v3139, %v3155
    %v3158 = vor.u32 %v3156, %v3157
    %v3159 = vsub.s32 4294967266, %v3154
    %v3160 = vadd.s32 %v3159, 127
    %v3161 = vshll.u32 %v3160, 23
    %v3162 = vor.u32 4788187, %v3161
    %v3163 = vand.u32 2147483647, %v3162
    %v3165 = vcvt.s32.f32 %v3158
    %v3166 = vmul.f32 %v3165, %v3163
    %v3167 = vxor.u32 %v3166, 2147483648
    %v3168 = vsel %vm3085, %v3167, %v3166
    %v3169 = vsub.s32 4, %v3145
    %v3170 = vsel %vm3085, %v3169, %v3145
    %v3171 = vsel %vm3084, %v2556, %v3168
    %v3172 = vsel %vm3084, 0, %v3170
    %v3173 = vcosq.f32.pop %v3171
    %v3174 = vsinq.f32.pop %v3171
    %vm3175 = vweird.f32 %v2556
    %v3176 = vand.u32 %v3172, 3
    %vm3177 = vcmp.lt.s32.totalorder %v3176, 2
    %vm3178 = vcmp.eq.s32.totalorder %v3176, 0
    %v3179 = vxor.u32 %v3174, 2147483648
    %v3180 = vsel %vm3178, %v3173, %v3179
    %vm3181 = vcmp.eq.s32.totalorder %v3176, 2
    %v3182 = vxor.u32 %v3173, 2147483648
    %v3183 = vsel %vm3181, %v3182, %v3174
    %v3184 = vsel %vm3177, %v3180, %v3183
    %v3185 = vsel %vm3175, nan, %v3184
    %v3186 = vand.u32 2147483647, %v2557
    %vm3187 = vcmp.le.f32.partialorder %v3186, 0.7853982
    %vm3188 = vcmp.lt.s32.totalorder %v2557, 0
    %v3189 = vand.u32 %v2557, 2139095040
    %v3190 = vshrl.u32 %v3189, 23
    %v3191 = vsub.s32 %v3190, 127
    %v3192 = vand.u32 2147483647, %v2557
    %v3193 = vand.u32 %v3192, 8388607
    %v3194 = vor.u32 %v3193, 8388608
    %v3195 = vsub.s32 0, %v3194
    %v3196 = vadd.s32 %v3191, 1
    %vm3197 = vcmp.gt.s32.totalorder %v3196, 0
    %v3198 = vsel %vm3197, %v3196, 0
    %v3199 = vshrl.u32 %v3198, 5
    %v3200 = vand.u32 %v3198, 31
    %v3201 = vsub.s32 32, %v3200
    %v3202 = vshrl.u32 683565275, %v3201
    %v3203 = vshll.u32 683565275, %v3200
    %v3204 = vshrl.u32 2475754826, %v3201
    %v3205 = vor.u32 %v3203, %v3204
    %v3206 = vshll.u32 2475754826, %v3200
    %v3207 = vshrl.u32 2131351028, %v3201
    %v3208 = vor.u32 %v3206, %v3207
    %v3209 = vshll.u32 2131351028, %v3200
    %v3210 = vshrl.u32 2102212464, %v3201
    %v3211 = vor.u32 %v3209, %v3210
    %v3212 = vshll.u32 2102212464, %v3200
    %v3213 = vshrl.u32 920167782, %v3201
    %v3214 = vor.u32 %v3212, %v3213
    %v3215 = vshll.u32 920167782, %v3200
    %v3216 = vshrl.u32 1326507024, %v3201
    %v3217 = vor.u32 %v3215, %v3216
    %vm3218 = vcmp.lt.s32.totalorder %v3199, 1
    %vm3219 = vcmp.lt.s32.totalorder %v3199, 2
    %vm3220 = vcmp.lt.s32.totalorder %v3199, 3
    %vm3221 = vcmp.lt.s32.totalorder %v3199, 4
    %v3222 = vsel %vm3218, %v3202, %v3205
    %v3223 = vsel %vm3221, %v3211, 2102212464
    %v3224 = vsel %vm3220, %v3208, %v3223
    %v3225 = vsel %vm3219, %v3222, %v3224
    %v3226 = vsel %vm3218, %v3205, %v3208
    %v3227 = vsel %vm3221, %v3214, 920167782
    %v3228 = vsel %vm3220, %v3211, %v3227
    %v3229 = vsel %vm3219, %v3226, %v3228
    %v3230 = vsel %vm3218, %v3208, %v3211
    %v3231 = vsel %vm3221, %v3217, 1326507024
    %v3232 = vsel %vm3220, %v3214, %v3231
    %v3233 = vsel %vm3219, %v3230, %v3232
    %v3234 = vshll.u32 %v3194, 8
    %v3235 = vmul.u32.u64.compose %v3234, %v3233
    %v3236 = vextract.low.u32 %v3235
    %v3237 = vextract.high.u32 %v3235
    %v3238 = vmul.u32.u64.compose %v3234, %v3229
    %v3239 = vextract.low.u32 %v3238
    %v3240 = vextract.high.u32 %v3238
    %v3241 = vmul.u32 %v3234, %v3225
    %v3242 = vadd.s32 %v3237, %v3239
    %vm3243 = vc.u32 %v3237, %v3239
    %v3244 = vadd.s32 %v3240, 1
    %v3245 = vsel %vm3243, %v3244, %v3240
    %v3246 = vadd.s32 %v3241, %v3245
    %v3247 = vadd.s32 %v3246, 536870912
    %v3248 = vshrl.u32 %v3247, 30
    %v3249 = vshll.u32 %v3248, 30
    %v3250 = vsub.s32 %v3246, %v3249
    %vm3251 = vcmp.lt.s32.totalorder %v3250, 0
    %v3252 = vsub.s32 0, %v3250
    %v3253 = vsel %vm3251, %v3252, %v3250
    %v3254 = vclz %v3253
    %v3255 = vsub.s32 %v3254, 2
    %vm3256 = vcmp.gt.s32.totalorder 0, %v3255
    %v3257 = vsel %vm3256, 0, %v3255
    %v3258 = vsub.s32 32, %v3257
    %v3259 = vshll.u32 %v3250, %v3257
    %v3260 = vshrl.u32 %v3242, %v3258
    %v3261 = vor.u32 %v3259, %v3260
    %v3262 = vsub.s32 4294967266, %v3257
    %v3263 = vadd.s32 %v3262, 127
    %v3264 = vshll.u32 %v3263, 23
    %v3265 = vor.u32 4788187, %v3264
    %v3266 = vand.u32 2147483647, %v3265
    %v3268 = vcvt.s32.f32 %v3261
    %v3269 = vmul.f32 %v3268, %v3266
    %v3270 = vxor.u32 %v3269, 2147483648
    %v3271 = vsel %vm3188, %v3270, %v3269
    %v3272 = vsub.s32 4, %v3248
    %v3273 = vsel %vm3188, %v3272, %v3248
    %v3274 = vsel %vm3187, %v2557, %v3271
    %v3275 = vsel %vm3187, 0, %v3273
    %v3276 = vcosq.f32.pop %v3274
    %v3277 = vsinq.f32.pop %v3274
    %vm3278 = vweird.f32 %v2557
    %v3279 = vand.u32 %v3275, 3
    %vm3280 = vcmp.lt.s32.totalorder %v3279, 2
    %vm3281 = vcmp.eq.s32.totalorder %v3279, 0
    %v3282 = vxor.u32 %v3277, 2147483648
    %v3283 = vsel %vm3281, %v3276, %v3282
    %vm3284 = vcmp.eq.s32.totalorder %v3279, 2
    %v3285 = vxor.u32 %v3276, 2147483648
    %v3286 = vsel %vm3284, %v3285, %v3277
    %v3287 = vsel %vm3280, %v3283, %v3286
    %v3288 = vsel %vm3278, nan, %v3287
    %v3289 = vand.u32 2147483647, %v2558
    %vm3290 = vcmp.le.f32.partialorder %v3289, 0.7853982
    %vm3291 = vcmp.lt.s32.totalorder %v2558, 0
    %v3292 = vand.u32 %v2558, 2139095040
    %v3293 = vshrl.u32 %v3292, 23
    %v3294 = vsub.s32 %v3293, 127
    %v3295 = vand.u32 2147483647, %v2558
    %v3296 = vand.u32 %v3295, 8388607
    %v3297 = vor.u32 %v3296, 8388608
    %v3298 = vsub.s32 0, %v3297
    %v3299 = vadd.s32 %v3294, 1
    %vm3300 = vcmp.gt.s32.totalorder %v3299, 0
    %v3301 = vsel %vm3300, %v3299, 0
    %v3302 = vshrl.u32 %v3301, 5
    %v3303 = vand.u32 %v3301, 31
    %v3304 = vsub.s32 32, %v3303
    %v3305 = vshrl.u32 683565275, %v3304
    %v3306 = vshll.u32 683565275, %v3303
    %v3307 = vshrl.u32 2475754826, %v3304
    %v3308 = vor.u32 %v3306, %v3307
    %v3309 = vshll.u32 2475754826, %v3303
    %v3310 = vshrl.u32 2131351028, %v3304
    %v3311 = vor.u32 %v3309, %v3310
    %v3312 = vshll.u32 2131351028, %v3303
    %v3313 = vshrl.u32 2102212464, %v3304
    %v3314 = vor.u32 %v3312, %v3313
    %v3315 = vshll.u32 2102212464, %v3303
    %v3316 = vshrl.u32 920167782, %v3304
    %v3317 = vor.u32 %v3315, %v3316
    %v3318 = vshll.u32 920167782, %v3303
    %v3319 = vshrl.u32 1326507024, %v3304
    %v3320 = vor.u32 %v3318, %v3319
    %vm3321 = vcmp.lt.s32.totalorder %v3302, 1
    %vm3322 = vcmp.lt.s32.totalorder %v3302, 2
    %vm3323 = vcmp.lt.s32.totalorder %v3302, 3
    %vm3324 = vcmp.lt.s32.totalorder %v3302, 4
    %v3325 = vsel %vm3321, %v3305, %v3308
    %v3326 = vsel %vm3324, %v3314, 2102212464
    %v3327 = vsel %vm3323, %v3311, %v3326
    %v3328 = vsel %vm3322, %v3325, %v3327
    %v3329 = vsel %vm3321, %v3308, %v3311
    %v3330 = vsel %vm3324, %v3317, 920167782
    %v3331 = vsel %vm3323, %v3314, %v3330
    %v3332 = vsel %vm3322, %v3329, %v3331
    %v3333 = vsel %vm3321, %v3311, %v3314
    %v3334 = vsel %vm3324, %v3320, 1326507024
    %v3335 = vsel %vm3323, %v3317, %v3334
    %v3336 = vsel %vm3322, %v3333, %v3335
    %v3337 = vshll.u32 %v3297, 8
    %v3338 = vmul.u32.u64.compose %v3337, %v3336
    %v3339 = vextract.low.u32 %v3338
    %v3340 = vextract.high.u32 %v3338
    %v3341 = vmul.u32.u64.compose %v3337, %v3332
    %v3342 = vextract.low.u32 %v3341
    %v3343 = vextract.high.u32 %v3341
    %v3344 = vmul.u32 %v3337, %v3328
    %v3345 = vadd.s32 %v3340, %v3342
    %vm3346 = vc.u32 %v3340, %v3342
    %v3347 = vadd.s32 %v3343, 1
    %v3348 = vsel %vm3346, %v3347, %v3343
    %v3349 = vadd.s32 %v3344, %v3348
    %v3350 = vadd.s32 %v3349, 536870912
    %v3351 = vshrl.u32 %v3350, 30
    %v3352 = vshll.u32 %v3351, 30
    %v3353 = vsub.s32 %v3349, %v3352
    %vm3354 = vcmp.lt.s32.totalorder %v3353, 0
    %v3355 = vsub.s32 0, %v3353
    %v3356 = vsel %vm3354, %v3355, %v3353
    %v3357 = vclz %v3356
    %v3358 = vsub.s32 %v3357, 2
    %vm3359 = vcmp.gt.s32.totalorder 0, %v3358
    %v3360 = vsel %vm3359, 0, %v3358
    %v3361 = vsub.s32 32, %v3360
    %v3362 = vshll.u32 %v3353, %v3360
    %v3363 = vshrl.u32 %v3345, %v3361
    %v3364 = vor.u32 %v3362, %v3363
    %v3365 = vsub.s32 4294967266, %v3360
    %v3366 = vadd.s32 %v3365, 127
    %v3367 = vshll.u32 %v3366, 23
    %v3368 = vor.u32 4788187, %v3367
    %v3369 = vand.u32 2147483647, %v3368
    %v3371 = vcvt.s32.f32 %v3364
    %v3372 = vmul.f32 %v3371, %v3369
    %v3373 = vxor.u32 %v3372, 2147483648
    %v3374 = vsel %vm3291, %v3373, %v3372
    %v3375 = vsub.s32 4, %v3351
    %v3376 = vsel %vm3291, %v3375, %v3351
    %v3377 = vsel %vm3290, %v2558, %v3374
    %v3378 = vsel %vm3290, 0, %v3376
    %v3379 = vcosq.f32.pop %v3377
    %v3380 = vsinq.f32.pop %v3377
    %vm3381 = vweird.f32 %v2558
    %v3382 = vand.u32 %v3378, 3
    %vm3383 = vcmp.lt.s32.totalorder %v3382, 2
    %vm3384 = vcmp.eq.s32.totalorder %v3382, 0
    %v3385 = vxor.u32 %v3380, 2147483648
    %v3386 = vsel %vm3384, %v3379, %v3385
    %vm3387 = vcmp.eq.s32.totalorder %v3382, 2
    %v3388 = vxor.u32 %v3379, 2147483648
    %v3389 = vsel %vm3387, %v3388, %v3380
    %v3390 = vsel %vm3383, %v3386, %v3389
    %v3391 = vsel %vm3381, nan, %v3390
    %s3392 = scalar_lea.vmem [#allocation5], 256
    %3393 = vst [vmem:[%s3392] sm:$0xff] %v3082
    %3394 = vst [vmem:[%s3392 + $0x8] sm:$0xff] %v3185
    %3395 = vst [vmem:[%s3392 + $0x10] sm:$0xff] %v3288
    %3396 = vst [vmem:[%s3392 + $0x18] sm:$0xff] %v3391
    // Predicated region
    $region10: #{tpu_custom_call.1} parent=1 // pred_check
      _
    $region11: #{tpu_custom_call.1} parent=1 // pred_check_branch
      %3398 = sbr.rel (0) target = $region13
    $region12: #{tpu_custom_call.1} parent=1 // pred_region
      %s3400 = ssub.s32 4608, 4608
      %3401 = vsyncadd [#allocation4], %s3400
      %s3402 = sshll.u32 [#allocation5], 4
      %s3403 = int_to_ptr.vmem [resolvable:$true] %s3402
      %3408 = dma.vmem_to_hbm [thread:$0]  %s3403, 4608, %s1, [#allocation4], 512, 512, 32
    $region13: #{tpu_custom_call.1} parent=1 // pred_fallthru
      _
    // Predicated region
    $region14: #{tpu_custom_call.1} parent=1 // pred_check
      _
    $region15: #{tpu_custom_call.1} parent=1 // pred_check_branch
      %3410 = sbr.rel (0) target = $region17
    $region16: #{tpu_custom_call.1} parent=1 // pred_region
      %3411 = dma.done [#allocation4], 4608
    $region17: #{tpu_custom_call.1} parent=1 // pred_fallthru
      _
    %3412 = vsyncpa [#allocation3], 1
    %3413 = vsyncpa [#allocation4], 1

</llo_original>
